<compile_context>
chip_gen: v6e
topology: v6e:2x2x1
jax: 0.10.0
libtpu: 0.0.40
codegen_flags: <defaults>
</compile_context>

<pallas_src>
import math

import jax
import jax.numpy as jnp
from jax.experimental import pallas as pl
from jax.experimental.pallas import tpu as pltpu


def _round_up(x, m):
    return ((x + m - 1) // m) * m


def _bfs_decoder_kernel(b_ref, z_ref, h_ref, sz_ref, sh_ref, o_ref):
    # b_ref        : SMEM (1,) f32 bias (resident)
    # z_ref, h_ref : (tnp, W) f32 lane-packed input tiles (pipelined)
    # sz_ref, sh_ref : (W, P) folded weight/segment matrices (resident)
    # o_ref        : (tnp, P) f32 output tile
    zb = z_ref[...].astype(sz_ref.dtype)
    hb = h_ref[...].astype(sh_ref.dtype)
    acc = jnp.dot(zb, sz_ref[...], preferred_element_type=jnp.float32)
    acc = acc + jnp.dot(hb, sh_ref[...], preferred_element_type=jnp.float32)
    o_ref[...] = jax.nn.sigmoid(acc + b_ref[0]).astype(o_ref.dtype)


def bfs_decoder_pallas(z, h, weight, bias, *, tile_np=384,
                       compute_dtype=jnp.bfloat16):
    """z, h: (..., H); weight: (1, 2H); bias: (1,). Returns (..., 1) float32.

    compute_dtype: dtype fed to the MXU (accumulation is always f32).  bf16
    (default) quantizes inputs/weights to ~1e-3 relative; pass jnp.float32 for
    exact f32-Linear parity at lower throughput.
    """
    H = z.shape[-1]
    lead = z.shape[:-1]
    N = math.prod(lead)
    P = 128                      # original rows packed per lane-dense row
    W = P * H                    # packed row width (always a multiple of 128)

    z2 = z.reshape(N, H).astype(jnp.float32)
    h2 = h.reshape(N, H).astype(jnp.float32)

    # Minimal row padding so rows pack into 128-row groups (no tile-level pad).
    NP = -(-N // P)
    n_rows = NP * P
    if n_rows != N:
        z2 = jnp.pad(z2, ((0, n_rows - N), (0, 0)))
        h2 = jnp.pad(h2, ((0, n_rows - N), (0, 0)))
    zp = z2.reshape(NP, W)       # contiguous reshape: free under jit
    hp = h2.reshape(NP, W)

    wz = weight[0, :H].astype(jnp.float32)
    wh = weight[0, H:].astype(jnp.float32)
    b = bias.reshape(1).astype(jnp.float32)

    # Folded weight/segment matrices: S[j, p] = w[j % H] * (j // H == p).
    j = jnp.arange(W)
    seg = (j[:, None] // H) == jnp.arange(P)[None, :]            # (W, P)
    sz = jnp.where(seg, jnp.tile(wz, P)[:, None], 0.0).astype(compute_dtype)
    sh = jnp.where(seg, jnp.tile(wh, P)[:, None], 0.0).astype(compute_dtype)

    # Packed-row tile: full array if small, else a multiple-of-16 tile with a
    # ragged last grid step (OOB rows read garbage / OOB writes are dropped;
    # the garbage only lands in rows we discard below).
    tile_np = max(16, _round_up(tile_np, 16))
    tnp = NP if NP <= tile_np else tile_np
    grid = (-(-NP // tnp),)

    itemsize = jnp.dtype(compute_dtype).itemsize
    cost = pl.CostEstimate(
        flops=4 * NP * W * P,                 # two (tnp,W)@(W,P) matmuls
        transcendentals=NP * P,               # sigmoid exp
        bytes_accessed=2 * NP * W * 4 + NP * P * 4 + 2 * W * P * itemsize,
    )

    out = pl.pallas_call(
        _bfs_decoder_kernel,
        out_shape=jax.ShapeDtypeStruct((NP, P), jnp.float32),
        grid=grid,
        in_specs=[
            pl.BlockSpec(memory_space=pltpu.SMEM),       # bias (resident)
            pl.BlockSpec((tnp, W), lambda i: (i, 0)),    # z tiles (pipelined)
            pl.BlockSpec((tnp, W), lambda i: (i, 0)),    # h tiles (pipelined)
            pl.BlockSpec((W, P), lambda i: (0, 0)),      # Sz (resident)
            pl.BlockSpec((W, P), lambda i: (0, 0)),      # Sh (resident)
        ],
        out_specs=pl.BlockSpec((tnp, P), lambda i: (i, 0)),
        compiler_params=pltpu.CompilerParams(
            dimension_semantics=("parallel",),
            vmem_limit_bytes=48 * 1024 * 1024),
        cost_estimate=cost,
    )(b, zp, hp, sz, sh)

    # (NP, P) flattens back to original row order; drop padded rows.
    return out.reshape(NP * P)[:N].reshape(*lead, 1)


if __name__ == "__main__":
    hidden_dim = 32
    batch, seq = 2, 8

    key = jax.random.PRNGKey(0)
    kz, kh, kw, kb = jax.random.split(key, 4)

    z = jax.random.normal(kz, (batch, seq, hidden_dim), dtype=jnp.float32)
    h = jax.random.normal(kh, (batch, seq, hidden_dim), dtype=jnp.float32)

    # Deterministic synthetic parameters for nn.Linear(2*hidden_dim, 1)
    fan_in = 2 * hidden_dim
    bound = 1.0 / (fan_in ** 0.5)
    weight = jax.random.uniform(kw, (1, fan_in), minval=-bound, maxval=bound,
                                dtype=jnp.float32)
    bias = jax.random.uniform(kb, (1,), minval=-bound, maxval=bound,
                              dtype=jnp.float32)

    out = bfs_decoder_pallas(z, h, weight, bias)
    out = jax.block_until_ready(out)
    assert out.shape == (batch, seq, 1)

    # Reference 1: exact PyTorch-Linear semantics in f32 (bf16-scale tolerance).
    ref_f32 = jax.nn.sigmoid(jnp.concatenate([z, h], axis=-1) @ weight.T + bias)
    err_f32 = float(jnp.max(jnp.abs(out - ref_f32)))
    assert err_f32 < 3e-2, err_f32

    # Reference 2: same bf16 input/weight quantization as the kernel (tight).
    zq = z.astype(jnp.bfloat16).astype(jnp.float32)
    hq = h.astype(jnp.bfloat16).astype(jnp.float32)
    wq = weight.astype(jnp.bfloat16).astype(jnp.float32)
    ref_q = jax.nn.sigmoid(jnp.concatenate([zq, hq], axis=-1) @ wq.T + bias)
    err_q = float(jnp.max(jnp.abs(out - ref_q)))
    assert err_q < 1e-4, err_q

    print("KERNEL_OK")
</pallas_src>

<mosaic_0001>
module attributes {stable_mosaic.version = 11 : i64} {
  func.func @_bfs_decoder_kernel(%arg0: i32, %arg1: memref<1xf32, #tpu.memory_space<smem>>, %arg2: memref<1x4096xf32, #tpu.memory_space<vmem>>, %arg3: memref<1x4096xf32, #tpu.memory_space<vmem>>, %arg4: memref<4096x128xbf16, #tpu.memory_space<vmem>>, %arg5: memref<4096x128xbf16, #tpu.memory_space<vmem>>, %arg6: memref<1x128xf32, #tpu.memory_space<vmem>>) attributes {dimension_semantics = [#tpu.dimension_semantics<parallel>], iteration_bounds = array<i64: 1>, scalar_prefetch = 0 : i64, scratch_operands = 0 : i64, tpu.core_type = #tpu.core_type<tc>, window_params = [{transform_indices = @transform_0, window_bounds = array<i64: 1>}, {transform_indices = @transform_1, window_bounds = array<i64: 1, 4096>}, {transform_indices = @transform_2, window_bounds = array<i64: 1, 4096>}, {pipeline_mode = #tpu.pipeline_mode<synchronous>, transform_indices = @transform_3, window_bounds = array<i64: 4096, 128>}, {pipeline_mode = #tpu.pipeline_mode<synchronous>, transform_indices = @transform_4, window_bounds = array<i64: 4096, 128>}, {transform_indices = @transform_5, window_bounds = array<i64: 1, 128>}]} {
    %c0 = arith.constant 0 : index
    %c0_0 = arith.constant 0 : index
    %0 = vector.load %arg2[%c0, %c0_0] : memref<1x4096xf32, #tpu.memory_space<vmem>>, vector<1x4096xf32>
    %1 = arith.truncf %0 : vector<1x4096xf32> to vector<1x4096xbf16>
    %c0_1 = arith.constant 0 : index
    %c0_2 = arith.constant 0 : index
    %2 = vector.load %arg3[%c0_1, %c0_2] : memref<1x4096xf32, #tpu.memory_space<vmem>>, vector<1x4096xf32>
    %3 = arith.truncf %2 : vector<1x4096xf32> to vector<1x4096xbf16>
    %c0_3 = arith.constant 0 : index
    %c0_4 = arith.constant 0 : index
    %4 = vector.load %arg4[%c0_3, %c0_4] : memref<4096x128xbf16, #tpu.memory_space<vmem>>, vector<4096x128xbf16>
    %cst = arith.constant dense<0.000000e+00> : vector<1x128xf32>
    %5 = tpu.matmul %1, %4, %cst {dimension_numbers = #tpu.dot_dimension_numbers<[1], [0], [0], [1], [0, 0, 1, 1], [], []>} : vector<1x4096xbf16>, vector<4096x128xbf16>, vector<1x128xf32> -> vector<1x128xf32>
    %c0_5 = arith.constant 0 : index
    %c0_6 = arith.constant 0 : index
    %6 = vector.load %arg5[%c0_5, %c0_6] : memref<4096x128xbf16, #tpu.memory_space<vmem>>, vector<4096x128xbf16>
    %cst_7 = arith.constant dense<0.000000e+00> : vector<1x128xf32>
    %7 = tpu.matmul %3, %6, %cst_7 {dimension_numbers = #tpu.dot_dimension_numbers<[1], [0], [0], [1], [0, 0, 1, 1], [], []>} : vector<1x4096xbf16>, vector<4096x128xbf16>, vector<1x128xf32> -> vector<1x128xf32>
    %8 = arith.addf %5, %7 : vector<1x128xf32>
    %c0_8 = arith.constant 0 : index
    %9 = memref.load %arg1[%c0_8] : memref<1xf32, #tpu.memory_space<smem>>
    %10 = vector.broadcast %9 : f32 to vector<1x128xf32>
    %11 = arith.addf %8, %10 : vector<1x128xf32>
    %12 = arith.negf %11 : vector<1x128xf32>
    %13 = math.exp %12 : vector<1x128xf32>
    %cst_9 = arith.constant 1.000000e+00 : f32
    %14 = vector.broadcast %cst_9 : f32 to vector<1x128xf32>
    %15 = arith.addf %14, %13 : vector<1x128xf32>
    %16 = arith.divf %14, %15 : vector<1x128xf32>
    %c0_10 = arith.constant 0 : index
    %c0_11 = arith.constant 0 : index
    %17 = vector.load %arg6[%c0_10, %c0_11] : memref<1x128xf32, #tpu.memory_space<vmem>>, vector<1x128xf32>
    tpu.vector_store %arg6[%c0_10, %c0_11], %16 {strides = array<i32>} : memref<1x128xf32, #tpu.memory_space<vmem>>, vector<1x128xf32>,
    return
  }
  func.func @transform_0(%arg0: i32) -> i32 {
    %c0_i32 = arith.constant 0 : i32
    %c0_i32_0 = arith.constant 0 : i32
    return %c0_i32 : i32
  }
  func.func @transform_1(%arg0: i32) -> (i32, i32) {
    %c0_i32 = arith.constant 0 : i32
    %c0_i32_0 = arith.constant 0 : i32
    return %arg0, %c0_i32 : i32, i32
  }
  func.func @transform_2(%arg0: i32) -> (i32, i32) {
    %c0_i32 = arith.constant 0 : i32
    %c0_i32_0 = arith.constant 0 : i32
    return %arg0, %c0_i32 : i32, i32
  }
  func.func @transform_3(%arg0: i32) -> (i32, i32) {
    %c0_i32 = arith.constant 0 : i32
    %c0_i32_0 = arith.constant 0 : i32
    %c0_i32_1 = arith.constant 0 : i32
    return %c0_i32, %c0_i32_0 : i32, i32
  }
  func.func @transform_4(%arg0: i32) -> (i32, i32) {
    %c0_i32 = arith.constant 0 : i32
    %c0_i32_0 = arith.constant 0 : i32
    %c0_i32_1 = arith.constant 0 : i32
    return %c0_i32, %c0_i32_0 : i32, i32
  }
  func.func @transform_5(%arg0: i32) -> (i32, i32) {
    %c0_i32 = arith.constant 0 : i32
    %c0_i32_0 = arith.constant 0 : i32
    return %arg0, %c0_i32 : i32, i32
  }
}

</mosaic_0001>

<llo_original>
// kernel: tpu_custom_call.1
$region0: #{tpu_custom_call.1}
  #allocation0 [shape = 'u32[]', space=smem, size = 0x4, offset = 0x4, fixed_abs, tag = 'smem constant byte address 0x4 - core index']
  #allocation1 [shape = 'u32[144,128]{1,0:T(1,128)}', space=vmem, size = 0x12000, scoped, tag = 'internal scratch']
  #allocation2 [shape = 'f32[1]{0:T(128)S(6)}', space=smem, size = 0x200, scoped, tag = 'scoped memory for tpu_custom_call.1']
  %s0 = inlined_call_operand.<no memory space> [shape: f32[1], index: 0, kind: input, shape index: {}]
  %s1 = inlined_call_operand.hbm [shape: f32[1,4096], index: 1, kind: input, shape index: {}]
  %s2 = inlined_call_operand.hbm [shape: f32[1,4096], index: 2, kind: input, shape index: {}]
  %s3 = inlined_call_operand.hbm [shape: bf16[4096,128], index: 3, kind: input, shape index: {}]
  %s4 = inlined_call_operand.hbm [shape: bf16[4096,128], index: 4, kind: input, shape index: {}]
  %s5 = inlined_call_operand.hbm [shape: f32[1,128], index: 5, kind: output, shape index: {}]
  %s6 = sld [smem:[#allocation0]]
  $region46: #{tpu_custom_call.1} parent=0
    _
  %s8 = ssub.s32 1, %s6
  %s9 = scalar_select 0, %s8, %s6
  %10 = sst [smem:[#allocation2]] %s0
  $region1: #{tpu_custom_call.1} parent=0
    #allocation3 [shape = 'u8[16384]{0}', space=vmem, size = 0x4000, scoped, tag = 'input window, operand 1, single buffered']
    #allocation4 [shape = 's32[1]{0}', space=sflag, size = 0x4, scoped, tag = 'scoped memory for tpu_custom_call.1']
    #allocation5 [shape = 's32[1]{0}', space=sflag, size = 0x4, scoped, tag = 'scoped memory for tpu_custom_call.1']
    #allocation6 [shape = 'u8[16384]{0}', space=vmem, size = 0x4000, scoped, tag = 'input window, operand 2, single buffered']
    #allocation7 [shape = 's32[1]{0}', space=sflag, size = 0x4, scoped, tag = 'scoped memory for tpu_custom_call.1']
    #allocation8 [shape = 'u8[1048576]{0}', space=vmem, size = 0x100000, scoped, tag = 'input window, operand 3, single buffered']
    #allocation9 [shape = 'u8[1048576]{0}', space=vmem, size = 0x100000, scoped, tag = 'input window, operand 4, single buffered']
    #allocation10 [shape = 's32[1]{0}', space=sflag, size = 0x4, scoped, tag = 'scoped memory for tpu_custom_call.1']
    #allocation11 [shape = 'u8[512]{0}', space=vmem, size = 0x400, scoped, tag = 'output window, operand 0, single buffered']
    %11 = vsyncpa [#allocation4], 0
    %12 = vsyncpa [#allocation7], 0
    %13 = vsyncpa [#allocation10], 0
    %14 = vsyncpa [#allocation5], 0
    // Predicated region
    $region2: #{tpu_custom_call.1} parent=1 // pred_check
      _
    $region3: #{tpu_custom_call.1} parent=1 // pred_check_branch
      %16 = sbr.rel (0) target = $region5
    $region4: #{tpu_custom_call.1} parent=1 // pred_region
      _
    $region5: #{tpu_custom_call.1} parent=1 // pred_fallthru
      _
    // Predicated region
    $region6: #{tpu_custom_call.1} parent=1 // pred_check
      _
    $region7: #{tpu_custom_call.1} parent=1 // pred_check_branch
      %18 = sbr.rel (0) target = $region9
    $region8: #{tpu_custom_call.1} parent=1 // pred_region
      %s20 = ssub.s32 512, 512
      %21 = vsyncadd [#allocation4], %s20
      %s23 = sshll.u32 [#allocation3], 4
      %s24 = int_to_ptr.vmem [resolvable:$true] %s23
      %26 = dma.hbm_to_vmem [thread:$0]  %s1, 512, %s24, [#allocation4]
    $region9: #{tpu_custom_call.1} parent=1 // pred_fallthru
      _
    // Predicated region
    $region10: #{tpu_custom_call.1} parent=1 // pred_check
      _
    $region11: #{tpu_custom_call.1} parent=1 // pred_check_branch
      %28 = sbr.rel (0) target = $region13
    $region12: #{tpu_custom_call.1} parent=1 // pred_region
      %s30 = ssub.s32 512, 512
      %31 = vsyncadd [#allocation7], %s30
      %s33 = sshll.u32 [#allocation6], 4
      %s34 = int_to_ptr.vmem [resolvable:$true] %s33
      %36 = dma.hbm_to_vmem [thread:$0]  %s2, 512, %s34, [#allocation7]
    $region13: #{tpu_custom_call.1} parent=1 // pred_fallthru
      _
    // Predicated region
    $region14: #{tpu_custom_call.1} parent=1 // pred_check
      _
    $region15: #{tpu_custom_call.1} parent=1 // pred_check_branch
      %38 = sbr.rel (0) target = $region17
    $region16: #{tpu_custom_call.1} parent=1 // pred_region
      %s40 = ssub.s32 32768, 32768
      %41 = vsyncadd [#allocation7], %s40
      %s42 = sshll.u32 [#allocation8], 4
      %s43 = int_to_ptr.vmem [resolvable:$true] %s42
      %48 = dma.hbm_to_vmem [thread:$0]  %s3, 32768, %s43, [#allocation7], 64, 64, 4
    $region17: #{tpu_custom_call.1} parent=1 // pred_fallthru
      _
    // Predicated region
    $region18: #{tpu_custom_call.1} parent=1 // pred_check
      _
    $region19: #{tpu_custom_call.1} parent=1 // pred_check_branch
      %50 = sbr.rel (0) target = $region21
    $region20: #{tpu_custom_call.1} parent=1 // pred_region
      %s52 = ssub.s32 32768, 32768
      %53 = vsyncadd [#allocation10], %s52
      %s54 = sshll.u32 [#allocation9], 4
      %s55 = int_to_ptr.vmem [resolvable:$true] %s54
      %60 = dma.hbm_to_vmem [thread:$0]  %s4, 32768, %s55, [#allocation10], 64, 64, 4
    $region21: #{tpu_custom_call.1} parent=1 // pred_fallthru
      _
    // Predicated region
    $region22: #{tpu_custom_call.1} parent=1 // pred_check
      _
    $region23: #{tpu_custom_call.1} parent=1 // pred_check_branch
      %62 = sbr.rel (0) target = $region25
    $region24: #{tpu_custom_call.1} parent=1 // pred_region
      %63 = dma.done [#allocation4], 512
    $region25: #{tpu_custom_call.1} parent=1 // pred_fallthru
      _
    // Predicated region
    $region26: #{tpu_custom_call.1} parent=1 // pred_check
      _
    $region27: #{tpu_custom_call.1} parent=1 // pred_check_branch
      %65 = sbr.rel (0) target = $region29
    $region28: #{tpu_custom_call.1} parent=1 // pred_region
      %66 = dma.done [#allocation7], 512
    $region29: #{tpu_custom_call.1} parent=1 // pred_fallthru
      _
    // Predicated region
    $region30: #{tpu_custom_call.1} parent=1 // pred_check
      _
    $region31: #{tpu_custom_call.1} parent=1 // pred_check_branch
      %68 = sbr.rel (0) target = $region33
    $region32: #{tpu_custom_call.1} parent=1 // pred_region
      %69 = dma.done [#allocation7], 32768
    $region33: #{tpu_custom_call.1} parent=1 // pred_fallthru
      _
    // Predicated region
    $region34: #{tpu_custom_call.1} parent=1 // pred_check
      _
    $region35: #{tpu_custom_call.1} parent=1 // pred_check_branch
      %71 = sbr.rel (0) target = $region37
    $region36: #{tpu_custom_call.1} parent=1 // pred_region
      %72 = dma.done [#allocation10], 32768
    $region37: #{tpu_custom_call.1} parent=1 // pred_fallthru
      _
    %v74 = vld [vmem:[#allocation3] sm:$0xff]
    %v75 = vld [vmem:[#allocation3 + $0x8] sm:$0xff]
    %v76 = vld [vmem:[#allocation3 + $0x10] sm:$0xff]
    %v77 = vld [vmem:[#allocation3 + $0x18] sm:$0xff]
    %v82 = vlaneseq
    %v83 = vshrl.u32 %v82, 7
    %v84 = vsub.s32 0, %v83
    %v85 = vrot.slane %v74, %v84
    %v86 = vlaneseq
    %v87 = vshrl.u32 %v86, 7
    %v88 = vsub.s32 1, %v87
    %v89 = vrot.slane %v74, %v88
    %v90 = vlaneseq
    %v91 = vshrl.u32 %v90, 7
    %v92 = vsub.s32 2, %v91
    %v93 = vrot.slane %v74, %v92
    %v94 = vlaneseq
    %v95 = vshrl.u32 %v94, 7
    %v96 = vsub.s32 3, %v95
    %v97 = vrot.slane %v74, %v96
    %v98 = vlaneseq
    %v99 = vshrl.u32 %v98, 7
    %v100 = vsub.s32 4, %v99
    %v101 = vrot.slane %v74, %v100
    %v102 = vlaneseq
    %v103 = vshrl.u32 %v102, 7
    %v104 = vsub.s32 5, %v103
    %v105 = vrot.slane %v74, %v104
    %v106 = vlaneseq
    %v107 = vshrl.u32 %v106, 7
    %v108 = vsub.s32 6, %v107
    %v109 = vrot.slane %v74, %v108
    %v110 = vlaneseq
    %v111 = vshrl.u32 %v110, 7
    %v112 = vsub.s32 7, %v111
    %v113 = vrot.slane %v74, %v112
    %v114 = vlaneseq
    %v115 = vshrl.u32 %v114, 7
    %v116 = vsub.s32 0, %v115
    %v117 = vrot.slane %v75, %v116
    %v118 = vlaneseq
    %v119 = vshrl.u32 %v118, 7
    %v120 = vsub.s32 1, %v119
    %v121 = vrot.slane %v75, %v120
    %v122 = vlaneseq
    %v123 = vshrl.u32 %v122, 7
    %v124 = vsub.s32 2, %v123
    %v125 = vrot.slane %v75, %v124
    %v126 = vlaneseq
    %v127 = vshrl.u32 %v126, 7
    %v128 = vsub.s32 3, %v127
    %v129 = vrot.slane %v75, %v128
    %v130 = vlaneseq
    %v131 = vshrl.u32 %v130, 7
    %v132 = vsub.s32 4, %v131
    %v133 = vrot.slane %v75, %v132
    %v134 = vlaneseq
    %v135 = vshrl.u32 %v134, 7
    %v136 = vsub.s32 5, %v135
    %v137 = vrot.slane %v75, %v136
    %v138 = vlaneseq
    %v139 = vshrl.u32 %v138, 7
    %v140 = vsub.s32 6, %v139
    %v141 = vrot.slane %v75, %v140
    %v142 = vlaneseq
    %v143 = vshrl.u32 %v142, 7
    %v144 = vsub.s32 7, %v143
    %v145 = vrot.slane %v75, %v144
    %v146 = vlaneseq
    %v147 = vshrl.u32 %v146, 7
    %v148 = vsub.s32 0, %v147
    %v149 = vrot.slane %v76, %v148
    %v150 = vlaneseq
    %v151 = vshrl.u32 %v150, 7
    %v152 = vsub.s32 1, %v151
    %v153 = vrot.slane %v76, %v152
    %v154 = vlaneseq
    %v155 = vshrl.u32 %v154, 7
    %v156 = vsub.s32 2, %v155
    %v157 = vrot.slane %v76, %v156
    %v158 = vlaneseq
    %v159 = vshrl.u32 %v158, 7
    %v160 = vsub.s32 3, %v159
    %v161 = vrot.slane %v76, %v160
    %v162 = vlaneseq
    %v163 = vshrl.u32 %v162, 7
    %v164 = vsub.s32 4, %v163
    %v165 = vrot.slane %v76, %v164
    %v166 = vlaneseq
    %v167 = vshrl.u32 %v166, 7
    %v168 = vsub.s32 5, %v167
    %v169 = vrot.slane %v76, %v168
    %v170 = vlaneseq
    %v171 = vshrl.u32 %v170, 7
    %v172 = vsub.s32 6, %v171
    %v173 = vrot.slane %v76, %v172
    %v174 = vlaneseq
    %v175 = vshrl.u32 %v174, 7
    %v176 = vsub.s32 7, %v175
    %v177 = vrot.slane %v76, %v176
    %v178 = vlaneseq
    %v179 = vshrl.u32 %v178, 7
    %v180 = vsub.s32 0, %v179
    %v181 = vrot.slane %v77, %v180
    %v182 = vlaneseq
    %v183 = vshrl.u32 %v182, 7
    %v184 = vsub.s32 1, %v183
    %v185 = vrot.slane %v77, %v184
    %v186 = vlaneseq
    %v187 = vshrl.u32 %v186, 7
    %v188 = vsub.s32 2, %v187
    %v189 = vrot.slane %v77, %v188
    %v190 = vlaneseq
    %v191 = vshrl.u32 %v190, 7
    %v192 = vsub.s32 3, %v191
    %v193 = vrot.slane %v77, %v192
    %v194 = vlaneseq
    %v195 = vshrl.u32 %v194, 7
    %v196 = vsub.s32 4, %v195
    %v197 = vrot.slane %v77, %v196
    %v198 = vlaneseq
    %v199 = vshrl.u32 %v198, 7
    %v200 = vsub.s32 5, %v199
    %v201 = vrot.slane %v77, %v200
    %v202 = vlaneseq
    %v203 = vshrl.u32 %v202, 7
    %v204 = vsub.s32 6, %v203
    %v205 = vrot.slane %v77, %v204
    %v206 = vlaneseq
    %v207 = vshrl.u32 %v206, 7
    %v208 = vsub.s32 7, %v207
    %v209 = vrot.slane %v77, %v208
    %v242 = vpack.c.bf16 %v85, %v85
    %v243 = vpack.c.bf16 %v89, %v89
    %v244 = vpack.c.bf16 %v93, %v93
    %v245 = vpack.c.bf16 %v97, %v97
    %v246 = vpack.c.bf16 %v101, %v101
    %v247 = vpack.c.bf16 %v105, %v105
    %v248 = vpack.c.bf16 %v109, %v109
    %v249 = vpack.c.bf16 %v113, %v113
    %v250 = vpack.c.bf16 %v117, %v117
    %v251 = vpack.c.bf16 %v121, %v121
    %v252 = vpack.c.bf16 %v125, %v125
    %v253 = vpack.c.bf16 %v129, %v129
    %v254 = vpack.c.bf16 %v133, %v133
    %v255 = vpack.c.bf16 %v137, %v137
    %v256 = vpack.c.bf16 %v141, %v141
    %v257 = vpack.c.bf16 %v145, %v145
    %v258 = vpack.c.bf16 %v149, %v149
    %v259 = vpack.c.bf16 %v153, %v153
    %v260 = vpack.c.bf16 %v157, %v157
    %v261 = vpack.c.bf16 %v161, %v161
    %v262 = vpack.c.bf16 %v165, %v165
    %v263 = vpack.c.bf16 %v169, %v169
    %v264 = vpack.c.bf16 %v173, %v173
    %v265 = vpack.c.bf16 %v177, %v177
    %v266 = vpack.c.bf16 %v181, %v181
    %v267 = vpack.c.bf16 %v185, %v185
    %v268 = vpack.c.bf16 %v189, %v189
    %v269 = vpack.c.bf16 %v193, %v193
    %v270 = vpack.c.bf16 %v197, %v197
    %v271 = vpack.c.bf16 %v201, %v201
    %v272 = vpack.c.bf16 %v205, %v205
    %v273 = vpack.c.bf16 %v209, %v209
    %v274 = vld [vmem:[#allocation6] sm:$0xff]
    %v275 = vld [vmem:[#allocation6 + $0x8] sm:$0xff]
    %v276 = vld [vmem:[#allocation6 + $0x10] sm:$0xff]
    %v277 = vld [vmem:[#allocation6 + $0x18] sm:$0xff]
    %v282 = vlaneseq
    %v283 = vshrl.u32 %v282, 7
    %v284 = vsub.s32 0, %v283
    %v285 = vrot.slane %v274, %v284
    %v286 = vlaneseq
    %v287 = vshrl.u32 %v286, 7
    %v288 = vsub.s32 1, %v287
    %v289 = vrot.slane %v274, %v288
    %v290 = vlaneseq
    %v291 = vshrl.u32 %v290, 7
    %v292 = vsub.s32 2, %v291
    %v293 = vrot.slane %v274, %v292
    %v294 = vlaneseq
    %v295 = vshrl.u32 %v294, 7
    %v296 = vsub.s32 3, %v295
    %v297 = vrot.slane %v274, %v296
    %v298 = vlaneseq
    %v299 = vshrl.u32 %v298, 7
    %v300 = vsub.s32 4, %v299
    %v301 = vrot.slane %v274, %v300
    %v302 = vlaneseq
    %v303 = vshrl.u32 %v302, 7
    %v304 = vsub.s32 5, %v303
    %v305 = vrot.slane %v274, %v304
    %v306 = vlaneseq
    %v307 = vshrl.u32 %v306, 7
    %v308 = vsub.s32 6, %v307
    %v309 = vrot.slane %v274, %v308
    %v310 = vlaneseq
    %v311 = vshrl.u32 %v310, 7
    %v312 = vsub.s32 7, %v311
    %v313 = vrot.slane %v274, %v312
    %v314 = vlaneseq
    %v315 = vshrl.u32 %v314, 7
    %v316 = vsub.s32 0, %v315
    %v317 = vrot.slane %v275, %v316
    %v318 = vlaneseq
    %v319 = vshrl.u32 %v318, 7
    %v320 = vsub.s32 1, %v319
    %v321 = vrot.slane %v275, %v320
    %v322 = vlaneseq
    %v323 = vshrl.u32 %v322, 7
    %v324 = vsub.s32 2, %v323
    %v325 = vrot.slane %v275, %v324
    %v326 = vlaneseq
    %v327 = vshrl.u32 %v326, 7
    %v328 = vsub.s32 3, %v327
    %v329 = vrot.slane %v275, %v328
    %v330 = vlaneseq
    %v331 = vshrl.u32 %v330, 7
    %v332 = vsub.s32 4, %v331
    %v333 = vrot.slane %v275, %v332
    %v334 = vlaneseq
    %v335 = vshrl.u32 %v334, 7
    %v336 = vsub.s32 5, %v335
    %v337 = vrot.slane %v275, %v336
    %v338 = vlaneseq
    %v339 = vshrl.u32 %v338, 7
    %v340 = vsub.s32 6, %v339
    %v341 = vrot.slane %v275, %v340
    %v342 = vlaneseq
    %v343 = vshrl.u32 %v342, 7
    %v344 = vsub.s32 7, %v343
    %v345 = vrot.slane %v275, %v344
    %v346 = vlaneseq
    %v347 = vshrl.u32 %v346, 7
    %v348 = vsub.s32 0, %v347
    %v349 = vrot.slane %v276, %v348
    %v350 = vlaneseq
    %v351 = vshrl.u32 %v350, 7
    %v352 = vsub.s32 1, %v351
    %v353 = vrot.slane %v276, %v352
    %v354 = vlaneseq
    %v355 = vshrl.u32 %v354, 7
    %v356 = vsub.s32 2, %v355
    %v357 = vrot.slane %v276, %v356
    %v358 = vlaneseq
    %v359 = vshrl.u32 %v358, 7
    %v360 = vsub.s32 3, %v359
    %v361 = vrot.slane %v276, %v360
    %v362 = vlaneseq
    %v363 = vshrl.u32 %v362, 7
    %v364 = vsub.s32 4, %v363
    %v365 = vrot.slane %v276, %v364
    %v366 = vlaneseq
    %v367 = vshrl.u32 %v366, 7
    %v368 = vsub.s32 5, %v367
    %v369 = vrot.slane %v276, %v368
    %v370 = vlaneseq
    %v371 = vshrl.u32 %v370, 7
    %v372 = vsub.s32 6, %v371
    %v373 = vrot.slane %v276, %v372
    %v374 = vlaneseq
    %v375 = vshrl.u32 %v374, 7
    %v376 = vsub.s32 7, %v375
    %v377 = vrot.slane %v276, %v376
    %v378 = vlaneseq
    %v379 = vshrl.u32 %v378, 7
    %v380 = vsub.s32 0, %v379
    %v381 = vrot.slane %v277, %v380
    %v382 = vlaneseq
    %v383 = vshrl.u32 %v382, 7
    %v384 = vsub.s32 1, %v383
    %v385 = vrot.slane %v277, %v384
    %v386 = vlaneseq
    %v387 = vshrl.u32 %v386, 7
    %v388 = vsub.s32 2, %v387
    %v389 = vrot.slane %v277, %v388
    %v390 = vlaneseq
    %v391 = vshrl.u32 %v390, 7
    %v392 = vsub.s32 3, %v391
    %v393 = vrot.slane %v277, %v392
    %v394 = vlaneseq
    %v395 = vshrl.u32 %v394, 7
    %v396 = vsub.s32 4, %v395
    %v397 = vrot.slane %v277, %v396
    %v398 = vlaneseq
    %v399 = vshrl.u32 %v398, 7
    %v400 = vsub.s32 5, %v399
    %v401 = vrot.slane %v277, %v400
    %v402 = vlaneseq
    %v403 = vshrl.u32 %v402, 7
    %v404 = vsub.s32 6, %v403
    %v405 = vrot.slane %v277, %v404
    %v406 = vlaneseq
    %v407 = vshrl.u32 %v406, 7
    %v408 = vsub.s32 7, %v407
    %v409 = vrot.slane %v277, %v408
    %v442 = vpack.c.bf16 %v285, %v285
    %v443 = vpack.c.bf16 %v289, %v289
    %v444 = vpack.c.bf16 %v293, %v293
    %v445 = vpack.c.bf16 %v297, %v297
    %v446 = vpack.c.bf16 %v301, %v301
    %v447 = vpack.c.bf16 %v305, %v305
    %v448 = vpack.c.bf16 %v309, %v309
    %v449 = vpack.c.bf16 %v313, %v313
    %v450 = vpack.c.bf16 %v317, %v317
    %v451 = vpack.c.bf16 %v321, %v321
    %v452 = vpack.c.bf16 %v325, %v325
    %v453 = vpack.c.bf16 %v329, %v329
    %v454 = vpack.c.bf16 %v333, %v333
    %v455 = vpack.c.bf16 %v337, %v337
    %v456 = vpack.c.bf16 %v341, %v341
    %v457 = vpack.c.bf16 %v345, %v345
    %v458 = vpack.c.bf16 %v349, %v349
    %v459 = vpack.c.bf16 %v353, %v353
    %v460 = vpack.c.bf16 %v357, %v357
    %v461 = vpack.c.bf16 %v361, %v361
    %v462 = vpack.c.bf16 %v365, %v365
    %v463 = vpack.c.bf16 %v369, %v369
    %v464 = vpack.c.bf16 %v373, %v373
    %v465 = vpack.c.bf16 %v377, %v377
    %v466 = vpack.c.bf16 %v381, %v381
    %v467 = vpack.c.bf16 %v385, %v385
    %v468 = vpack.c.bf16 %v389, %v389
    %v469 = vpack.c.bf16 %v393, %v393
    %v470 = vpack.c.bf16 %v397, %v397
    %v471 = vpack.c.bf16 %v401, %v401
    %v472 = vpack.c.bf16 %v405, %v405
    %v473 = vpack.c.bf16 %v409, %v409
    %v474 = vld [vmem:[#allocation8] sm:$0xf]
    %v475 = vld [vmem:[#allocation8 + $0x4] sm:$0xf]
    %v476 = vld [vmem:[#allocation8 + $0x8] sm:$0xf]
    %v477 = vld [vmem:[#allocation8 + $0xc] sm:$0xf]
    %v478 = vld [vmem:[#allocation8 + $0x10] sm:$0xf]
    %v479 = vld [vmem:[#allocation8 + $0x14] sm:$0xf]
    %v480 = vld [vmem:[#allocation8 + $0x18] sm:$0xf]
    %v481 = vld [vmem:[#allocation8 + $0x1c] sm:$0xf]
    %v482 = vld [vmem:[#allocation8 + $0x20] sm:$0xf]
    %v483 = vld [vmem:[#allocation8 + $0x24] sm:$0xf]
    %v484 = vld [vmem:[#allocation8 + $0x28] sm:$0xf]
    %v485 = vld [vmem:[#allocation8 + $0x2c] sm:$0xf]
    %v486 = vld [vmem:[#allocation8 + $0x30] sm:$0xf]
    %v487 = vld [vmem:[#allocation8 + $0x34] sm:$0xf]
    %v488 = vld [vmem:[#allocation8 + $0x38] sm:$0xf]
    %v489 = vld [vmem:[#allocation8 + $0x3c] sm:$0xf]
    %v490 = vld [vmem:[#allocation8 + $0x40] sm:$0xf]
    %v491 = vld [vmem:[#allocation8 + $0x44] sm:$0xf]
    %v492 = vld [vmem:[#allocation8 + $0x48] sm:$0xf]
    %v493 = vld [vmem:[#allocation8 + $0x4c] sm:$0xf]
    %v494 = vld [vmem:[#allocation8 + $0x50] sm:$0xf]
    %v495 = vld [vmem:[#allocation8 + $0x54] sm:$0xf]
    %v496 = vld [vmem:[#allocation8 + $0x58] sm:$0xf]
    %v497 = vld [vmem:[#allocation8 + $0x5c] sm:$0xf]
    %v498 = vld [vmem:[#allocation8 + $0x60] sm:$0xf]
    %v499 = vld [vmem:[#allocation8 + $0x64] sm:$0xf]
    %v500 = vld [vmem:[#allocation8 + $0x68] sm:$0xf]
    %v501 = vld [vmem:[#allocation8 + $0x6c] sm:$0xf]
    %v502 = vld [vmem:[#allocation8 + $0x70] sm:$0xf]
    %v503 = vld [vmem:[#allocation8 + $0x74] sm:$0xf]
    %v504 = vld [vmem:[#allocation8 + $0x78] sm:$0xf]
    %v505 = vld [vmem:[#allocation8 + $0x7c] sm:$0xf]
    %v506 = vld [vmem:[#allocation8 + $0x80] sm:$0xf]
    %v507 = vld [vmem:[#allocation8 + $0x84] sm:$0xf]
    %v508 = vld [vmem:[#allocation8 + $0x88] sm:$0xf]
    %v509 = vld [vmem:[#allocation8 + $0x8c] sm:$0xf]
    %v510 = vld [vmem:[#allocation8 + $0x90] sm:$0xf]
    %v511 = vld [vmem:[#allocation8 + $0x94] sm:$0xf]
    %v512 = vld [vmem:[#allocation8 + $0x98] sm:$0xf]
    %v513 = vld [vmem:[#allocation8 + $0x9c] sm:$0xf]
    %v514 = vld [vmem:[#allocation8 + $0xa0] sm:$0xf]
    %v515 = vld [vmem:[#allocation8 + $0xa4] sm:$0xf]
    %v516 = vld [vmem:[#allocation8 + $0xa8] sm:$0xf]
    %v517 = vld [vmem:[#allocation8 + $0xac] sm:$0xf]
    %v518 = vld [vmem:[#allocation8 + $0xb0] sm:$0xf]
    %v519 = vld [vmem:[#allocation8 + $0xb4] sm:$0xf]
    %v520 = vld [vmem:[#allocation8 + $0xb8] sm:$0xf]
    %v521 = vld [vmem:[#allocation8 + $0xbc] sm:$0xf]
    %v522 = vld [vmem:[#allocation8 + $0xc0] sm:$0xf]
    %v523 = vld [vmem:[#allocation8 + $0xc4] sm:$0xf]
    %v524 = vld [vmem:[#allocation8 + $0xc8] sm:$0xf]
    %v525 = vld [vmem:[#allocation8 + $0xcc] sm:$0xf]
    %v526 = vld [vmem:[#allocation8 + $0xd0] sm:$0xf]
    %v527 = vld [vmem:[#allocation8 + $0xd4] sm:$0xf]
    %v528 = vld [vmem:[#allocation8 + $0xd8] sm:$0xf]
    %v529 = vld [vmem:[#allocation8 + $0xdc] sm:$0xf]
    %v530 = vld [vmem:[#allocation8 + $0xe0] sm:$0xf]
    %v531 = vld [vmem:[#allocation8 + $0xe4] sm:$0xf]
    %v532 = vld [vmem:[#allocation8 + $0xe8] sm:$0xf]
    %v533 = vld [vmem:[#allocation8 + $0xec] sm:$0xf]
    %v534 = vld [vmem:[#allocation8 + $0xf0] sm:$0xf]
    %v535 = vld [vmem:[#allocation8 + $0xf4] sm:$0xf]
    %v536 = vld [vmem:[#allocation8 + $0xf8] sm:$0xf]
    %v537 = vld [vmem:[#allocation8 + $0xfc] sm:$0xf]
    %v538 = vld [vmem:[#allocation8 + $0x100] sm:$0xf]
    %v539 = vld [vmem:[#allocation8 + $0x104] sm:$0xf]
    %v540 = vld [vmem:[#allocation8 + $0x108] sm:$0xf]
    %v541 = vld [vmem:[#allocation8 + $0x10c] sm:$0xf]
    %v542 = vld [vmem:[#allocation8 + $0x110] sm:$0xf]
    %v543 = vld [vmem:[#allocation8 + $0x114] sm:$0xf]
    %v544 = vld [vmem:[#allocation8 + $0x118] sm:$0xf]
    %v545 = vld [vmem:[#allocation8 + $0x11c] sm:$0xf]
    %v546 = vld [vmem:[#allocation8 + $0x120] sm:$0xf]
    %v547 = vld [vmem:[#allocation8 + $0x124] sm:$0xf]
    %v548 = vld [vmem:[#allocation8 + $0x128] sm:$0xf]
    %v549 = vld [vmem:[#allocation8 + $0x12c] sm:$0xf]
    %v550 = vld [vmem:[#allocation8 + $0x130] sm:$0xf]
    %v551 = vld [vmem:[#allocation8 + $0x134] sm:$0xf]
    %v552 = vld [vmem:[#allocation8 + $0x138] sm:$0xf]
    %v553 = vld [vmem:[#allocation8 + $0x13c] sm:$0xf]
    %v554 = vld [vmem:[#allocation8 + $0x140] sm:$0xf]
    %v555 = vld [vmem:[#allocation8 + $0x144] sm:$0xf]
    %v556 = vld [vmem:[#allocation8 + $0x148] sm:$0xf]
    %v557 = vld [vmem:[#allocation8 + $0x14c] sm:$0xf]
    %v558 = vld [vmem:[#allocation8 + $0x150] sm:$0xf]
    %v559 = vld [vmem:[#allocation8 + $0x154] sm:$0xf]
    %v560 = vld [vmem:[#allocation8 + $0x158] sm:$0xf]
    %v561 = vld [vmem:[#allocation8 + $0x15c] sm:$0xf]
    %v562 = vld [vmem:[#allocation8 + $0x160] sm:$0xf]
    %v563 = vld [vmem:[#allocation8 + $0x164] sm:$0xf]
    %v564 = vld [vmem:[#allocation8 + $0x168] sm:$0xf]
    %v565 = vld [vmem:[#allocation8 + $0x16c] sm:$0xf]
    %v566 = vld [vmem:[#allocation8 + $0x170] sm:$0xf]
    %v567 = vld [vmem:[#allocation8 + $0x174] sm:$0xf]
    %v568 = vld [vmem:[#allocation8 + $0x178] sm:$0xf]
    %v569 = vld [vmem:[#allocation8 + $0x17c] sm:$0xf]
    %v570 = vld [vmem:[#allocation8 + $0x180] sm:$0xf]
    %v571 = vld [vmem:[#allocation8 + $0x184] sm:$0xf]
    %v572 = vld [vmem:[#allocation8 + $0x188] sm:$0xf]
    %v573 = vld [vmem:[#allocation8 + $0x18c] sm:$0xf]
    %v574 = vld [vmem:[#allocation8 + $0x190] sm:$0xf]
    %v575 = vld [vmem:[#allocation8 + $0x194] sm:$0xf]
    %v576 = vld [vmem:[#allocation8 + $0x198] sm:$0xf]
    %v577 = vld [vmem:[#allocation8 + $0x19c] sm:$0xf]
    %v578 = vld [vmem:[#allocation8 + $0x1a0] sm:$0xf]
    %v579 = vld [vmem:[#allocation8 + $0x1a4] sm:$0xf]
    %v580 = vld [vmem:[#allocation8 + $0x1a8] sm:$0xf]
    %v581 = vld [vmem:[#allocation8 + $0x1ac] sm:$0xf]
    %v582 = vld [vmem:[#allocation8 + $0x1b0] sm:$0xf]
    %v583 = vld [vmem:[#allocation8 + $0x1b4] sm:$0xf]
    %v584 = vld [vmem:[#allocation8 + $0x1b8] sm:$0xf]
    %v585 = vld [vmem:[#allocation8 + $0x1bc] sm:$0xf]
    %v586 = vld [vmem:[#allocation8 + $0x1c0] sm:$0xf]
    %v587 = vld [vmem:[#allocation8 + $0x1c4] sm:$0xf]
    %v588 = vld [vmem:[#allocation8 + $0x1c8] sm:$0xf]
    %v589 = vld [vmem:[#allocation8 + $0x1cc] sm:$0xf]
    %v590 = vld [vmem:[#allocation8 + $0x1d0] sm:$0xf]
    %v591 = vld [vmem:[#allocation8 + $0x1d4] sm:$0xf]
    %v592 = vld [vmem:[#allocation8 + $0x1d8] sm:$0xf]
    %v593 = vld [vmem:[#allocation8 + $0x1dc] sm:$0xf]
    %v594 = vld [vmem:[#allocation8 + $0x1e0] sm:$0xf]
    %v595 = vld [vmem:[#allocation8 + $0x1e4] sm:$0xf]
    %v596 = vld [vmem:[#allocation8 + $0x1e8] sm:$0xf]
    %v597 = vld [vmem:[#allocation8 + $0x1ec] sm:$0xf]
    %v598 = vld [vmem:[#allocation8 + $0x1f0] sm:$0xf]
    %v599 = vld [vmem:[#allocation8 + $0x1f4] sm:$0xf]
    %v600 = vld [vmem:[#allocation8 + $0x1f8] sm:$0xf]
    %v601 = vld [vmem:[#allocation8 + $0x1fc] sm:$0xf]
    %v602 = vld [vmem:[#allocation8 + $0x200] sm:$0xf]
    %v603 = vld [vmem:[#allocation8 + $0x204] sm:$0xf]
    %v604 = vld [vmem:[#allocation8 + $0x208] sm:$0xf]
    %v605 = vld [vmem:[#allocation8 + $0x20c] sm:$0xf]
    %v606 = vld [vmem:[#allocation8 + $0x210] sm:$0xf]
    %v607 = vld [vmem:[#allocation8 + $0x214] sm:$0xf]
    %v608 = vld [vmem:[#allocation8 + $0x218] sm:$0xf]
    %v609 = vld [vmem:[#allocation8 + $0x21c] sm:$0xf]
    %v610 = vld [vmem:[#allocation8 + $0x220] sm:$0xf]
    %v611 = vld [vmem:[#allocation8 + $0x224] sm:$0xf]
    %v612 = vld [vmem:[#allocation8 + $0x228] sm:$0xf]
    %v613 = vld [vmem:[#allocation8 + $0x22c] sm:$0xf]
    %v614 = vld [vmem:[#allocation8 + $0x230] sm:$0xf]
    %v615 = vld [vmem:[#allocation8 + $0x234] sm:$0xf]
    %v616 = vld [vmem:[#allocation8 + $0x238] sm:$0xf]
    %v617 = vld [vmem:[#allocation8 + $0x23c] sm:$0xf]
    %v618 = vld [vmem:[#allocation8 + $0x240] sm:$0xf]
    %v619 = vld [vmem:[#allocation8 + $0x244] sm:$0xf]
    %v620 = vld [vmem:[#allocation8 + $0x248] sm:$0xf]
    %v621 = vld [vmem:[#allocation8 + $0x24c] sm:$0xf]
    %v622 = vld [vmem:[#allocation8 + $0x250] sm:$0xf]
    %v623 = vld [vmem:[#allocation8 + $0x254] sm:$0xf]
    %v624 = vld [vmem:[#allocation8 + $0x258] sm:$0xf]
    %v625 = vld [vmem:[#allocation8 + $0x25c] sm:$0xf]
    %v626 = vld [vmem:[#allocation8 + $0x260] sm:$0xf]
    %v627 = vld [vmem:[#allocation8 + $0x264] sm:$0xf]
    %v628 = vld [vmem:[#allocation8 + $0x268] sm:$0xf]
    %v629 = vld [vmem:[#allocation8 + $0x26c] sm:$0xf]
    %v630 = vld [vmem:[#allocation8 + $0x270] sm:$0xf]
    %v631 = vld [vmem:[#allocation8 + $0x274] sm:$0xf]
    %v632 = vld [vmem:[#allocation8 + $0x278] sm:$0xf]
    %v633 = vld [vmem:[#allocation8 + $0x27c] sm:$0xf]
    %v634 = vld [vmem:[#allocation8 + $0x280] sm:$0xf]
    %v635 = vld [vmem:[#allocation8 + $0x284] sm:$0xf]
    %v636 = vld [vmem:[#allocation8 + $0x288] sm:$0xf]
    %v637 = vld [vmem:[#allocation8 + $0x28c] sm:$0xf]
    %v638 = vld [vmem:[#allocation8 + $0x290] sm:$0xf]
    %v639 = vld [vmem:[#allocation8 + $0x294] sm:$0xf]
    %v640 = vld [vmem:[#allocation8 + $0x298] sm:$0xf]
    %v641 = vld [vmem:[#allocation8 + $0x29c] sm:$0xf]
    %v642 = vld [vmem:[#allocation8 + $0x2a0] sm:$0xf]
    %v643 = vld [vmem:[#allocation8 + $0x2a4] sm:$0xf]
    %v644 = vld [vmem:[#allocation8 + $0x2a8] sm:$0xf]
    %v645 = vld [vmem:[#allocation8 + $0x2ac] sm:$0xf]
    %v646 = vld [vmem:[#allocation8 + $0x2b0] sm:$0xf]
    %v647 = vld [vmem:[#allocation8 + $0x2b4] sm:$0xf]
    %v648 = vld [vmem:[#allocation8 + $0x2b8] sm:$0xf]
    %v649 = vld [vmem:[#allocation8 + $0x2bc] sm:$0xf]
    %v650 = vld [vmem:[#allocation8 + $0x2c0] sm:$0xf]
    %v651 = vld [vmem:[#allocation8 + $0x2c4] sm:$0xf]
    %v652 = vld [vmem:[#allocation8 + $0x2c8] sm:$0xf]
    %v653 = vld [vmem:[#allocation8 + $0x2cc] sm:$0xf]
    %v654 = vld [vmem:[#allocation8 + $0x2d0] sm:$0xf]
    %v655 = vld [vmem:[#allocation8 + $0x2d4] sm:$0xf]
    %v656 = vld [vmem:[#allocation8 + $0x2d8] sm:$0xf]
    %v657 = vld [vmem:[#allocation8 + $0x2dc] sm:$0xf]
    %v658 = vld [vmem:[#allocation8 + $0x2e0] sm:$0xf]
    %v659 = vld [vmem:[#allocation8 + $0x2e4] sm:$0xf]
    %v660 = vld [vmem:[#allocation8 + $0x2e8] sm:$0xf]
    %v661 = vld [vmem:[#allocation8 + $0x2ec] sm:$0xf]
    %v662 = vld [vmem:[#allocation8 + $0x2f0] sm:$0xf]
    %v663 = vld [vmem:[#allocation8 + $0x2f4] sm:$0xf]
    %v664 = vld [vmem:[#allocation8 + $0x2f8] sm:$0xf]
    %v665 = vld [vmem:[#allocation8 + $0x2fc] sm:$0xf]
    %v666 = vld [vmem:[#allocation8 + $0x300] sm:$0xf]
    %v667 = vld [vmem:[#allocation8 + $0x304] sm:$0xf]
    %v668 = vld [vmem:[#allocation8 + $0x308] sm:$0xf]
    %v669 = vld [vmem:[#allocation8 + $0x30c] sm:$0xf]
    %v670 = vld [vmem:[#allocation8 + $0x310] sm:$0xf]
    %v671 = vld [vmem:[#allocation8 + $0x314] sm:$0xf]
    %v672 = vld [vmem:[#allocation8 + $0x318] sm:$0xf]
    %v673 = vld [vmem:[#allocation8 + $0x31c] sm:$0xf]
    %v674 = vld [vmem:[#allocation8 + $0x320] sm:$0xf]
    %v675 = vld [vmem:[#allocation8 + $0x324] sm:$0xf]
    %v676 = vld [vmem:[#allocation8 + $0x328] sm:$0xf]
    %v677 = vld [vmem:[#allocation8 + $0x32c] sm:$0xf]
    %v678 = vld [vmem:[#allocation8 + $0x330] sm:$0xf]
    %v679 = vld [vmem:[#allocation8 + $0x334] sm:$0xf]
    %v680 = vld [vmem:[#allocation8 + $0x338] sm:$0xf]
    %v681 = vld [vmem:[#allocation8 + $0x33c] sm:$0xf]
    %v682 = vld [vmem:[#allocation8 + $0x340] sm:$0xf]
    %v683 = vld [vmem:[#allocation8 + $0x344] sm:$0xf]
    %v684 = vld [vmem:[#allocation8 + $0x348] sm:$0xf]
    %v685 = vld [vmem:[#allocation8 + $0x34c] sm:$0xf]
    %v686 = vld [vmem:[#allocation8 + $0x350] sm:$0xf]
    %v687 = vld [vmem:[#allocation8 + $0x354] sm:$0xf]
    %v688 = vld [vmem:[#allocation8 + $0x358] sm:$0xf]
    %v689 = vld [vmem:[#allocation8 + $0x35c] sm:$0xf]
    %v690 = vld [vmem:[#allocation8 + $0x360] sm:$0xf]
    %v691 = vld [vmem:[#allocation8 + $0x364] sm:$0xf]
    %v692 = vld [vmem:[#allocation8 + $0x368] sm:$0xf]
    %v693 = vld [vmem:[#allocation8 + $0x36c] sm:$0xf]
    %v694 = vld [vmem:[#allocation8 + $0x370] sm:$0xf]
    %v695 = vld [vmem:[#allocation8 + $0x374] sm:$0xf]
    %v696 = vld [vmem:[#allocation8 + $0x378] sm:$0xf]
    %v697 = vld [vmem:[#allocation8 + $0x37c] sm:$0xf]
    %v698 = vld [vmem:[#allocation8 + $0x380] sm:$0xf]
    %v699 = vld [vmem:[#allocation8 + $0x384] sm:$0xf]
    %v700 = vld [vmem:[#allocation8 + $0x388] sm:$0xf]
    %v701 = vld [vmem:[#allocation8 + $0x38c] sm:$0xf]
    %v702 = vld [vmem:[#allocation8 + $0x390] sm:$0xf]
    %v703 = vld [vmem:[#allocation8 + $0x394] sm:$0xf]
    %v704 = vld [vmem:[#allocation8 + $0x398] sm:$0xf]
    %v705 = vld [vmem:[#allocation8 + $0x39c] sm:$0xf]
    %v706 = vld [vmem:[#allocation8 + $0x3a0] sm:$0xf]
    %v707 = vld [vmem:[#allocation8 + $0x3a4] sm:$0xf]
    %v708 = vld [vmem:[#allocation8 + $0x3a8] sm:$0xf]
    %v709 = vld [vmem:[#allocation8 + $0x3ac] sm:$0xf]
    %v710 = vld [vmem:[#allocation8 + $0x3b0] sm:$0xf]
    %v711 = vld [vmem:[#allocation8 + $0x3b4] sm:$0xf]
    %v712 = vld [vmem:[#allocation8 + $0x3b8] sm:$0xf]
    %v713 = vld [vmem:[#allocation8 + $0x3bc] sm:$0xf]
    %v714 = vld [vmem:[#allocation8 + $0x3c0] sm:$0xf]
    %v715 = vld [vmem:[#allocation8 + $0x3c4] sm:$0xf]
    %v716 = vld [vmem:[#allocation8 + $0x3c8] sm:$0xf]
    %v717 = vld [vmem:[#allocation8 + $0x3cc] sm:$0xf]
    %v718 = vld [vmem:[#allocation8 + $0x3d0] sm:$0xf]
    %v719 = vld [vmem:[#allocation8 + $0x3d4] sm:$0xf]
    %v720 = vld [vmem:[#allocation8 + $0x3d8] sm:$0xf]
    %v721 = vld [vmem:[#allocation8 + $0x3dc] sm:$0xf]
    %v722 = vld [vmem:[#allocation8 + $0x3e0] sm:$0xf]
    %v723 = vld [vmem:[#allocation8 + $0x3e4] sm:$0xf]
    %v724 = vld [vmem:[#allocation8 + $0x3e8] sm:$0xf]
    %v725 = vld [vmem:[#allocation8 + $0x3ec] sm:$0xf]
    %v726 = vld [vmem:[#allocation8 + $0x3f0] sm:$0xf]
    %v727 = vld [vmem:[#allocation8 + $0x3f4] sm:$0xf]
    %v728 = vld [vmem:[#allocation8 + $0x3f8] sm:$0xf]
    %v729 = vld [vmem:[#allocation8 + $0x3fc] sm:$0xf]
    %v730 = vld [vmem:[#allocation8 + $0x400] sm:$0xf]
    %v731 = vld [vmem:[#allocation8 + $0x404] sm:$0xf]
    %v732 = vld [vmem:[#allocation8 + $0x408] sm:$0xf]
    %v733 = vld [vmem:[#allocation8 + $0x40c] sm:$0xf]
    %v734 = vld [vmem:[#allocation8 + $0x410] sm:$0xf]
    %v735 = vld [vmem:[#allocation8 + $0x414] sm:$0xf]
    %v736 = vld [vmem:[#allocation8 + $0x418] sm:$0xf]
    %v737 = vld [vmem:[#allocation8 + $0x41c] sm:$0xf]
    %v738 = vld [vmem:[#allocation8 + $0x420] sm:$0xf]
    %v739 = vld [vmem:[#allocation8 + $0x424] sm:$0xf]
    %v740 = vld [vmem:[#allocation8 + $0x428] sm:$0xf]
    %v741 = vld [vmem:[#allocation8 + $0x42c] sm:$0xf]
    %v742 = vld [vmem:[#allocation8 + $0x430] sm:$0xf]
    %v743 = vld [vmem:[#allocation8 + $0x434] sm:$0xf]
    %v744 = vld [vmem:[#allocation8 + $0x438] sm:$0xf]
    %v745 = vld [vmem:[#allocation8 + $0x43c] sm:$0xf]
    %v746 = vld [vmem:[#allocation8 + $0x440] sm:$0xf]
    %v747 = vld [vmem:[#allocation8 + $0x444] sm:$0xf]
    %v748 = vld [vmem:[#allocation8 + $0x448] sm:$0xf]
    %v749 = vld [vmem:[#allocation8 + $0x44c] sm:$0xf]
    %v750 = vld [vmem:[#allocation8 + $0x450] sm:$0xf]
    %v751 = vld [vmem:[#allocation8 + $0x454] sm:$0xf]
    %v752 = vld [vmem:[#allocation8 + $0x458] sm:$0xf]
    %v753 = vld [vmem:[#allocation8 + $0x45c] sm:$0xf]
    %v754 = vld [vmem:[#allocation8 + $0x460] sm:$0xf]
    %v755 = vld [vmem:[#allocation8 + $0x464] sm:$0xf]
    %v756 = vld [vmem:[#allocation8 + $0x468] sm:$0xf]
    %v757 = vld [vmem:[#allocation8 + $0x46c] sm:$0xf]
    %v758 = vld [vmem:[#allocation8 + $0x470] sm:$0xf]
    %v759 = vld [vmem:[#allocation8 + $0x474] sm:$0xf]
    %v760 = vld [vmem:[#allocation8 + $0x478] sm:$0xf]
    %v761 = vld [vmem:[#allocation8 + $0x47c] sm:$0xf]
    %v762 = vld [vmem:[#allocation8 + $0x480] sm:$0xf]
    %v763 = vld [vmem:[#allocation8 + $0x484] sm:$0xf]
    %v764 = vld [vmem:[#allocation8 + $0x488] sm:$0xf]
    %v765 = vld [vmem:[#allocation8 + $0x48c] sm:$0xf]
    %v766 = vld [vmem:[#allocation8 + $0x490] sm:$0xf]
    %v767 = vld [vmem:[#allocation8 + $0x494] sm:$0xf]
    %v768 = vld [vmem:[#allocation8 + $0x498] sm:$0xf]
    %v769 = vld [vmem:[#allocation8 + $0x49c] sm:$0xf]
    %v770 = vld [vmem:[#allocation8 + $0x4a0] sm:$0xf]
    %v771 = vld [vmem:[#allocation8 + $0x4a4] sm:$0xf]
    %v772 = vld [vmem:[#allocation8 + $0x4a8] sm:$0xf]
    %v773 = vld [vmem:[#allocation8 + $0x4ac] sm:$0xf]
    %v774 = vld [vmem:[#allocation8 + $0x4b0] sm:$0xf]
    %v775 = vld [vmem:[#allocation8 + $0x4b4] sm:$0xf]
    %v776 = vld [vmem:[#allocation8 + $0x4b8] sm:$0xf]
    %v777 = vld [vmem:[#allocation8 + $0x4bc] sm:$0xf]
    %v778 = vld [vmem:[#allocation8 + $0x4c0] sm:$0xf]
    %v779 = vld [vmem:[#allocation8 + $0x4c4] sm:$0xf]
    %v780 = vld [vmem:[#allocation8 + $0x4c8] sm:$0xf]
    %v781 = vld [vmem:[#allocation8 + $0x4cc] sm:$0xf]
    %v782 = vld [vmem:[#allocation8 + $0x4d0] sm:$0xf]
    %v783 = vld [vmem:[#allocation8 + $0x4d4] sm:$0xf]
    %v784 = vld [vmem:[#allocation8 + $0x4d8] sm:$0xf]
    %v785 = vld [vmem:[#allocation8 + $0x4dc] sm:$0xf]
    %v786 = vld [vmem:[#allocation8 + $0x4e0] sm:$0xf]
    %v787 = vld [vmem:[#allocation8 + $0x4e4] sm:$0xf]
    %v788 = vld [vmem:[#allocation8 + $0x4e8] sm:$0xf]
    %v789 = vld [vmem:[#allocation8 + $0x4ec] sm:$0xf]
    %v790 = vld [vmem:[#allocation8 + $0x4f0] sm:$0xf]
    %v791 = vld [vmem:[#allocation8 + $0x4f4] sm:$0xf]
    %v792 = vld [vmem:[#allocation8 + $0x4f8] sm:$0xf]
    %v793 = vld [vmem:[#allocation8 + $0x4fc] sm:$0xf]
    %v794 = vld [vmem:[#allocation8 + $0x500] sm:$0xf]
    %v795 = vld [vmem:[#allocation8 + $0x504] sm:$0xf]
    %v796 = vld [vmem:[#allocation8 + $0x508] sm:$0xf]
    %v797 = vld [vmem:[#allocation8 + $0x50c] sm:$0xf]
    %v798 = vld [vmem:[#allocation8 + $0x510] sm:$0xf]
    %v799 = vld [vmem:[#allocation8 + $0x514] sm:$0xf]
    %v800 = vld [vmem:[#allocation8 + $0x518] sm:$0xf]
    %v801 = vld [vmem:[#allocation8 + $0x51c] sm:$0xf]
    %v802 = vld [vmem:[#allocation8 + $0x520] sm:$0xf]
    %v803 = vld [vmem:[#allocation8 + $0x524] sm:$0xf]
    %v804 = vld [vmem:[#allocation8 + $0x528] sm:$0xf]
    %v805 = vld [vmem:[#allocation8 + $0x52c] sm:$0xf]
    %v806 = vld [vmem:[#allocation8 + $0x530] sm:$0xf]
    %v807 = vld [vmem:[#allocation8 + $0x534] sm:$0xf]
    %v808 = vld [vmem:[#allocation8 + $0x538] sm:$0xf]
    %v809 = vld [vmem:[#allocation8 + $0x53c] sm:$0xf]
    %v810 = vld [vmem:[#allocation8 + $0x540] sm:$0xf]
    %v811 = vld [vmem:[#allocation8 + $0x544] sm:$0xf]
    %v812 = vld [vmem:[#allocation8 + $0x548] sm:$0xf]
    %v813 = vld [vmem:[#allocation8 + $0x54c] sm:$0xf]
    %v814 = vld [vmem:[#allocation8 + $0x550] sm:$0xf]
    %v815 = vld [vmem:[#allocation8 + $0x554] sm:$0xf]
    %v816 = vld [vmem:[#allocation8 + $0x558] sm:$0xf]
    %v817 = vld [vmem:[#allocation8 + $0x55c] sm:$0xf]
    %v818 = vld [vmem:[#allocation8 + $0x560] sm:$0xf]
    %v819 = vld [vmem:[#allocation8 + $0x564] sm:$0xf]
    %v820 = vld [vmem:[#allocation8 + $0x568] sm:$0xf]
    %v821 = vld [vmem:[#allocation8 + $0x56c] sm:$0xf]
    %v822 = vld [vmem:[#allocation8 + $0x570] sm:$0xf]
    %v823 = vld [vmem:[#allocation8 + $0x574] sm:$0xf]
    %v824 = vld [vmem:[#allocation8 + $0x578] sm:$0xf]
    %v825 = vld [vmem:[#allocation8 + $0x57c] sm:$0xf]
    %v826 = vld [vmem:[#allocation8 + $0x580] sm:$0xf]
    %v827 = vld [vmem:[#allocation8 + $0x584] sm:$0xf]
    %v828 = vld [vmem:[#allocation8 + $0x588] sm:$0xf]
    %v829 = vld [vmem:[#allocation8 + $0x58c] sm:$0xf]
    %v830 = vld [vmem:[#allocation8 + $0x590] sm:$0xf]
    %v831 = vld [vmem:[#allocation8 + $0x594] sm:$0xf]
    %v832 = vld [vmem:[#allocation8 + $0x598] sm:$0xf]
    %v833 = vld [vmem:[#allocation8 + $0x59c] sm:$0xf]
    %v834 = vld [vmem:[#allocation8 + $0x5a0] sm:$0xf]
    %v835 = vld [vmem:[#allocation8 + $0x5a4] sm:$0xf]
    %v836 = vld [vmem:[#allocation8 + $0x5a8] sm:$0xf]
    %v837 = vld [vmem:[#allocation8 + $0x5ac] sm:$0xf]
    %v838 = vld [vmem:[#allocation8 + $0x5b0] sm:$0xf]
    %v839 = vld [vmem:[#allocation8 + $0x5b4] sm:$0xf]
    %v840 = vld [vmem:[#allocation8 + $0x5b8] sm:$0xf]
    %v841 = vld [vmem:[#allocation8 + $0x5bc] sm:$0xf]
    %v842 = vld [vmem:[#allocation8 + $0x5c0] sm:$0xf]
    %v843 = vld [vmem:[#allocation8 + $0x5c4] sm:$0xf]
    %v844 = vld [vmem:[#allocation8 + $0x5c8] sm:$0xf]
    %v845 = vld [vmem:[#allocation8 + $0x5cc] sm:$0xf]
    %v846 = vld [vmem:[#allocation8 + $0x5d0] sm:$0xf]
    %v847 = vld [vmem:[#allocation8 + $0x5d4] sm:$0xf]
    %v848 = vld [vmem:[#allocation8 + $0x5d8] sm:$0xf]
    %v849 = vld [vmem:[#allocation8 + $0x5dc] sm:$0xf]
    %v850 = vld [vmem:[#allocation8 + $0x5e0] sm:$0xf]
    %v851 = vld [vmem:[#allocation8 + $0x5e4] sm:$0xf]
    %v852 = vld [vmem:[#allocation8 + $0x5e8] sm:$0xf]
    %v853 = vld [vmem:[#allocation8 + $0x5ec] sm:$0xf]
    %v854 = vld [vmem:[#allocation8 + $0x5f0] sm:$0xf]
    %v855 = vld [vmem:[#allocation8 + $0x5f4] sm:$0xf]
    %v856 = vld [vmem:[#allocation8 + $0x5f8] sm:$0xf]
    %v857 = vld [vmem:[#allocation8 + $0x5fc] sm:$0xf]
    %v858 = vld [vmem:[#allocation8 + $0x600] sm:$0xf]
    %v859 = vld [vmem:[#allocation8 + $0x604] sm:$0xf]
    %v860 = vld [vmem:[#allocation8 + $0x608] sm:$0xf]
    %v861 = vld [vmem:[#allocation8 + $0x60c] sm:$0xf]
    %v862 = vld [vmem:[#allocation8 + $0x610] sm:$0xf]
    %v863 = vld [vmem:[#allocation8 + $0x614] sm:$0xf]
    %v864 = vld [vmem:[#allocation8 + $0x618] sm:$0xf]
    %v865 = vld [vmem:[#allocation8 + $0x61c] sm:$0xf]
    %v866 = vld [vmem:[#allocation8 + $0x620] sm:$0xf]
    %v867 = vld [vmem:[#allocation8 + $0x624] sm:$0xf]
    %v868 = vld [vmem:[#allocation8 + $0x628] sm:$0xf]
    %v869 = vld [vmem:[#allocation8 + $0x62c] sm:$0xf]
    %v870 = vld [vmem:[#allocation8 + $0x630] sm:$0xf]
    %v871 = vld [vmem:[#allocation8 + $0x634] sm:$0xf]
    %v872 = vld [vmem:[#allocation8 + $0x638] sm:$0xf]
    %v873 = vld [vmem:[#allocation8 + $0x63c] sm:$0xf]
    %v874 = vld [vmem:[#allocation8 + $0x640] sm:$0xf]
    %v875 = vld [vmem:[#allocation8 + $0x644] sm:$0xf]
    %v876 = vld [vmem:[#allocation8 + $0x648] sm:$0xf]
    %v877 = vld [vmem:[#allocation8 + $0x64c] sm:$0xf]
    %v878 = vld [vmem:[#allocation8 + $0x650] sm:$0xf]
    %v879 = vld [vmem:[#allocation8 + $0x654] sm:$0xf]
    %v880 = vld [vmem:[#allocation8 + $0x658] sm:$0xf]
    %v881 = vld [vmem:[#allocation8 + $0x65c] sm:$0xf]
    %v882 = vld [vmem:[#allocation8 + $0x660] sm:$0xf]
    %v883 = vld [vmem:[#allocation8 + $0x664] sm:$0xf]
    %v884 = vld [vmem:[#allocation8 + $0x668] sm:$0xf]
    %v885 = vld [vmem:[#allocation8 + $0x66c] sm:$0xf]
    %v886 = vld [vmem:[#allocation8 + $0x670] sm:$0xf]
    %v887 = vld [vmem:[#allocation8 + $0x674] sm:$0xf]
    %v888 = vld [vmem:[#allocation8 + $0x678] sm:$0xf]
    %v889 = vld [vmem:[#allocation8 + $0x67c] sm:$0xf]
    %v890 = vld [vmem:[#allocation8 + $0x680] sm:$0xf]
    %v891 = vld [vmem:[#allocation8 + $0x684] sm:$0xf]
    %v892 = vld [vmem:[#allocation8 + $0x688] sm:$0xf]
    %v893 = vld [vmem:[#allocation8 + $0x68c] sm:$0xf]
    %v894 = vld [vmem:[#allocation8 + $0x690] sm:$0xf]
    %v895 = vld [vmem:[#allocation8 + $0x694] sm:$0xf]
    %v896 = vld [vmem:[#allocation8 + $0x698] sm:$0xf]
    %v897 = vld [vmem:[#allocation8 + $0x69c] sm:$0xf]
    %v898 = vld [vmem:[#allocation8 + $0x6a0] sm:$0xf]
    %v899 = vld [vmem:[#allocation8 + $0x6a4] sm:$0xf]
    %v900 = vld [vmem:[#allocation8 + $0x6a8] sm:$0xf]
    %v901 = vld [vmem:[#allocation8 + $0x6ac] sm:$0xf]
    %v902 = vld [vmem:[#allocation8 + $0x6b0] sm:$0xf]
    %v903 = vld [vmem:[#allocation8 + $0x6b4] sm:$0xf]
    %v904 = vld [vmem:[#allocation8 + $0x6b8] sm:$0xf]
    %v905 = vld [vmem:[#allocation8 + $0x6bc] sm:$0xf]
    %v906 = vld [vmem:[#allocation8 + $0x6c0] sm:$0xf]
    %v907 = vld [vmem:[#allocation8 + $0x6c4] sm:$0xf]
    %v908 = vld [vmem:[#allocation8 + $0x6c8] sm:$0xf]
    %v909 = vld [vmem:[#allocation8 + $0x6cc] sm:$0xf]
    %v910 = vld [vmem:[#allocation8 + $0x6d0] sm:$0xf]
    %v911 = vld [vmem:[#allocation8 + $0x6d4] sm:$0xf]
    %v912 = vld [vmem:[#allocation8 + $0x6d8] sm:$0xf]
    %v913 = vld [vmem:[#allocation8 + $0x6dc] sm:$0xf]
    %v914 = vld [vmem:[#allocation8 + $0x6e0] sm:$0xf]
    %v915 = vld [vmem:[#allocation8 + $0x6e4] sm:$0xf]
    %v916 = vld [vmem:[#allocation8 + $0x6e8] sm:$0xf]
    %v917 = vld [vmem:[#allocation8 + $0x6ec] sm:$0xf]
    %v918 = vld [vmem:[#allocation8 + $0x6f0] sm:$0xf]
    %v919 = vld [vmem:[#allocation8 + $0x6f4] sm:$0xf]
    %v920 = vld [vmem:[#allocation8 + $0x6f8] sm:$0xf]
    %v921 = vld [vmem:[#allocation8 + $0x6fc] sm:$0xf]
    %v922 = vld [vmem:[#allocation8 + $0x700] sm:$0xf]
    %v923 = vld [vmem:[#allocation8 + $0x704] sm:$0xf]
    %v924 = vld [vmem:[#allocation8 + $0x708] sm:$0xf]
    %v925 = vld [vmem:[#allocation8 + $0x70c] sm:$0xf]
    %v926 = vld [vmem:[#allocation8 + $0x710] sm:$0xf]
    %v927 = vld [vmem:[#allocation8 + $0x714] sm:$0xf]
    %v928 = vld [vmem:[#allocation8 + $0x718] sm:$0xf]
    %v929 = vld [vmem:[#allocation8 + $0x71c] sm:$0xf]
    %v930 = vld [vmem:[#allocation8 + $0x720] sm:$0xf]
    %v931 = vld [vmem:[#allocation8 + $0x724] sm:$0xf]
    %v932 = vld [vmem:[#allocation8 + $0x728] sm:$0xf]
    %v933 = vld [vmem:[#allocation8 + $0x72c] sm:$0xf]
    %v934 = vld [vmem:[#allocation8 + $0x730] sm:$0xf]
    %v935 = vld [vmem:[#allocation8 + $0x734] sm:$0xf]
    %v936 = vld [vmem:[#allocation8 + $0x738] sm:$0xf]
    %v937 = vld [vmem:[#allocation8 + $0x73c] sm:$0xf]
    %v938 = vld [vmem:[#allocation8 + $0x740] sm:$0xf]
    %v939 = vld [vmem:[#allocation8 + $0x744] sm:$0xf]
    %v940 = vld [vmem:[#allocation8 + $0x748] sm:$0xf]
    %v941 = vld [vmem:[#allocation8 + $0x74c] sm:$0xf]
    %v942 = vld [vmem:[#allocation8 + $0x750] sm:$0xf]
    %v943 = vld [vmem:[#allocation8 + $0x754] sm:$0xf]
    %v944 = vld [vmem:[#allocation8 + $0x758] sm:$0xf]
    %v945 = vld [vmem:[#allocation8 + $0x75c] sm:$0xf]
    %v946 = vld [vmem:[#allocation8 + $0x760] sm:$0xf]
    %v947 = vld [vmem:[#allocation8 + $0x764] sm:$0xf]
    %v948 = vld [vmem:[#allocation8 + $0x768] sm:$0xf]
    %v949 = vld [vmem:[#allocation8 + $0x76c] sm:$0xf]
    %v950 = vld [vmem:[#allocation8 + $0x770] sm:$0xf]
    %v951 = vld [vmem:[#allocation8 + $0x774] sm:$0xf]
    %v952 = vld [vmem:[#allocation8 + $0x778] sm:$0xf]
    %v953 = vld [vmem:[#allocation8 + $0x77c] sm:$0xf]
    %v954 = vld [vmem:[#allocation8 + $0x780] sm:$0xf]
    %v955 = vld [vmem:[#allocation8 + $0x784] sm:$0xf]
    %v956 = vld [vmem:[#allocation8 + $0x788] sm:$0xf]
    %v957 = vld [vmem:[#allocation8 + $0x78c] sm:$0xf]
    %v958 = vld [vmem:[#allocation8 + $0x790] sm:$0xf]
    %v959 = vld [vmem:[#allocation8 + $0x794] sm:$0xf]
    %v960 = vld [vmem:[#allocation8 + $0x798] sm:$0xf]
    %v961 = vld [vmem:[#allocation8 + $0x79c] sm:$0xf]
    %v962 = vld [vmem:[#allocation8 + $0x7a0] sm:$0xf]
    %v963 = vld [vmem:[#allocation8 + $0x7a4] sm:$0xf]
    %v964 = vld [vmem:[#allocation8 + $0x7a8] sm:$0xf]
    %v965 = vld [vmem:[#allocation8 + $0x7ac] sm:$0xf]
    %v966 = vld [vmem:[#allocation8 + $0x7b0] sm:$0xf]
    %v967 = vld [vmem:[#allocation8 + $0x7b4] sm:$0xf]
    %v968 = vld [vmem:[#allocation8 + $0x7b8] sm:$0xf]
    %v969 = vld [vmem:[#allocation8 + $0x7bc] sm:$0xf]
    %v970 = vld [vmem:[#allocation8 + $0x7c0] sm:$0xf]
    %v971 = vld [vmem:[#allocation8 + $0x7c4] sm:$0xf]
    %v972 = vld [vmem:[#allocation8 + $0x7c8] sm:$0xf]
    %v973 = vld [vmem:[#allocation8 + $0x7cc] sm:$0xf]
    %v974 = vld [vmem:[#allocation8 + $0x7d0] sm:$0xf]
    %v975 = vld [vmem:[#allocation8 + $0x7d4] sm:$0xf]
    %v976 = vld [vmem:[#allocation8 + $0x7d8] sm:$0xf]
    %v977 = vld [vmem:[#allocation8 + $0x7dc] sm:$0xf]
    %v978 = vld [vmem:[#allocation8 + $0x7e0] sm:$0xf]
    %v979 = vld [vmem:[#allocation8 + $0x7e4] sm:$0xf]
    %v980 = vld [vmem:[#allocation8 + $0x7e8] sm:$0xf]
    %v981 = vld [vmem:[#allocation8 + $0x7ec] sm:$0xf]
    %v982 = vld [vmem:[#allocation8 + $0x7f0] sm:$0xf]
    %v983 = vld [vmem:[#allocation8 + $0x7f4] sm:$0xf]
    %v984 = vld [vmem:[#allocation8 + $0x7f8] sm:$0xf]
    %v985 = vld [vmem:[#allocation8 + $0x7fc] sm:$0xf]
    %v986 = vld [vmem:[#allocation9] sm:$0xf]
    %v987 = vld [vmem:[#allocation9 + $0x4] sm:$0xf]
    %v988 = vld [vmem:[#allocation9 + $0x8] sm:$0xf]
    %v989 = vld [vmem:[#allocation9 + $0xc] sm:$0xf]
    %v990 = vld [vmem:[#allocation9 + $0x10] sm:$0xf]
    %v991 = vld [vmem:[#allocation9 + $0x14] sm:$0xf]
    %v992 = vld [vmem:[#allocation9 + $0x18] sm:$0xf]
    %v993 = vld [vmem:[#allocation9 + $0x1c] sm:$0xf]
    %v994 = vld [vmem:[#allocation9 + $0x20] sm:$0xf]
    %v995 = vld [vmem:[#allocation9 + $0x24] sm:$0xf]
    %v996 = vld [vmem:[#allocation9 + $0x28] sm:$0xf]
    %v997 = vld [vmem:[#allocation9 + $0x2c] sm:$0xf]
    %v998 = vld [vmem:[#allocation9 + $0x30] sm:$0xf]
    %v999 = vld [vmem:[#allocation9 + $0x34] sm:$0xf]
    %v1000 = vld [vmem:[#allocation9 + $0x38] sm:$0xf]
    %v1001 = vld [vmem:[#allocation9 + $0x3c] sm:$0xf]
    %v1002 = vld [vmem:[#allocation9 + $0x40] sm:$0xf]
    %v1003 = vld [vmem:[#allocation9 + $0x44] sm:$0xf]
    %v1004 = vld [vmem:[#allocation9 + $0x48] sm:$0xf]
    %v1005 = vld [vmem:[#allocation9 + $0x4c] sm:$0xf]
    %v1006 = vld [vmem:[#allocation9 + $0x50] sm:$0xf]
    %v1007 = vld [vmem:[#allocation9 + $0x54] sm:$0xf]
    %v1008 = vld [vmem:[#allocation9 + $0x58] sm:$0xf]
    %v1009 = vld [vmem:[#allocation9 + $0x5c] sm:$0xf]
    %v1010 = vld [vmem:[#allocation9 + $0x60] sm:$0xf]
    %v1011 = vld [vmem:[#allocation9 + $0x64] sm:$0xf]
    %v1012 = vld [vmem:[#allocation9 + $0x68] sm:$0xf]
    %v1013 = vld [vmem:[#allocation9 + $0x6c] sm:$0xf]
    %v1014 = vld [vmem:[#allocation9 + $0x70] sm:$0xf]
    %v1015 = vld [vmem:[#allocation9 + $0x74] sm:$0xf]
    %v1016 = vld [vmem:[#allocation9 + $0x78] sm:$0xf]
    %v1017 = vld [vmem:[#allocation9 + $0x7c] sm:$0xf]
    %v1018 = vld [vmem:[#allocation9 + $0x80] sm:$0xf]
    %v1019 = vld [vmem:[#allocation9 + $0x84] sm:$0xf]
    %v1020 = vld [vmem:[#allocation9 + $0x88] sm:$0xf]
    %v1021 = vld [vmem:[#allocation9 + $0x8c] sm:$0xf]
    %v1022 = vld [vmem:[#allocation9 + $0x90] sm:$0xf]
    %v1023 = vld [vmem:[#allocation9 + $0x94] sm:$0xf]
    %v1024 = vld [vmem:[#allocation9 + $0x98] sm:$0xf]
    %v1025 = vld [vmem:[#allocation9 + $0x9c] sm:$0xf]
    %v1026 = vld [vmem:[#allocation9 + $0xa0] sm:$0xf]
    %v1027 = vld [vmem:[#allocation9 + $0xa4] sm:$0xf]
    %v1028 = vld [vmem:[#allocation9 + $0xa8] sm:$0xf]
    %v1029 = vld [vmem:[#allocation9 + $0xac] sm:$0xf]
    %v1030 = vld [vmem:[#allocation9 + $0xb0] sm:$0xf]
    %v1031 = vld [vmem:[#allocation9 + $0xb4] sm:$0xf]
    %v1032 = vld [vmem:[#allocation9 + $0xb8] sm:$0xf]
    %v1033 = vld [vmem:[#allocation9 + $0xbc] sm:$0xf]
    %v1034 = vld [vmem:[#allocation9 + $0xc0] sm:$0xf]
    %v1035 = vld [vmem:[#allocation9 + $0xc4] sm:$0xf]
    %v1036 = vld [vmem:[#allocation9 + $0xc8] sm:$0xf]
    %v1037 = vld [vmem:[#allocation9 + $0xcc] sm:$0xf]
    %v1038 = vld [vmem:[#allocation9 + $0xd0] sm:$0xf]
    %v1039 = vld [vmem:[#allocation9 + $0xd4] sm:$0xf]
    %v1040 = vld [vmem:[#allocation9 + $0xd8] sm:$0xf]
    %v1041 = vld [vmem:[#allocation9 + $0xdc] sm:$0xf]
    %v1042 = vld [vmem:[#allocation9 + $0xe0] sm:$0xf]
    %v1043 = vld [vmem:[#allocation9 + $0xe4] sm:$0xf]
    %v1044 = vld [vmem:[#allocation9 + $0xe8] sm:$0xf]
    %v1045 = vld [vmem:[#allocation9 + $0xec] sm:$0xf]
    %v1046 = vld [vmem:[#allocation9 + $0xf0] sm:$0xf]
    %v1047 = vld [vmem:[#allocation9 + $0xf4] sm:$0xf]
    %v1048 = vld [vmem:[#allocation9 + $0xf8] sm:$0xf]
    %v1049 = vld [vmem:[#allocation9 + $0xfc] sm:$0xf]
    %v1050 = vld [vmem:[#allocation9 + $0x100] sm:$0xf]
    %v1051 = vld [vmem:[#allocation9 + $0x104] sm:$0xf]
    %v1052 = vld [vmem:[#allocation9 + $0x108] sm:$0xf]
    %v1053 = vld [vmem:[#allocation9 + $0x10c] sm:$0xf]
    %v1054 = vld [vmem:[#allocation9 + $0x110] sm:$0xf]
    %v1055 = vld [vmem:[#allocation9 + $0x114] sm:$0xf]
    %v1056 = vld [vmem:[#allocation9 + $0x118] sm:$0xf]
    %v1057 = vld [vmem:[#allocation9 + $0x11c] sm:$0xf]
    %v1058 = vld [vmem:[#allocation9 + $0x120] sm:$0xf]
    %v1059 = vld [vmem:[#allocation9 + $0x124] sm:$0xf]
    %v1060 = vld [vmem:[#allocation9 + $0x128] sm:$0xf]
    %v1061 = vld [vmem:[#allocation9 + $0x12c] sm:$0xf]
    %v1062 = vld [vmem:[#allocation9 + $0x130] sm:$0xf]
    %v1063 = vld [vmem:[#allocation9 + $0x134] sm:$0xf]
    %v1064 = vld [vmem:[#allocation9 + $0x138] sm:$0xf]
    %v1065 = vld [vmem:[#allocation9 + $0x13c] sm:$0xf]
    %v1066 = vld [vmem:[#allocation9 + $0x140] sm:$0xf]
    %v1067 = vld [vmem:[#allocation9 + $0x144] sm:$0xf]
    %v1068 = vld [vmem:[#allocation9 + $0x148] sm:$0xf]
    %v1069 = vld [vmem:[#allocation9 + $0x14c] sm:$0xf]
    %v1070 = vld [vmem:[#allocation9 + $0x150] sm:$0xf]
    %v1071 = vld [vmem:[#allocation9 + $0x154] sm:$0xf]
    %v1072 = vld [vmem:[#allocation9 + $0x158] sm:$0xf]
    %v1073 = vld [vmem:[#allocation9 + $0x15c] sm:$0xf]
    %v1074 = vld [vmem:[#allocation9 + $0x160] sm:$0xf]
    %v1075 = vld [vmem:[#allocation9 + $0x164] sm:$0xf]
    %v1076 = vld [vmem:[#allocation9 + $0x168] sm:$0xf]
    %v1077 = vld [vmem:[#allocation9 + $0x16c] sm:$0xf]
    %v1078 = vld [vmem:[#allocation9 + $0x170] sm:$0xf]
    %v1079 = vld [vmem:[#allocation9 + $0x174] sm:$0xf]
    %v1080 = vld [vmem:[#allocation9 + $0x178] sm:$0xf]
    %v1081 = vld [vmem:[#allocation9 + $0x17c] sm:$0xf]
    %v1082 = vld [vmem:[#allocation9 + $0x180] sm:$0xf]
    %v1083 = vld [vmem:[#allocation9 + $0x184] sm:$0xf]
    %v1084 = vld [vmem:[#allocation9 + $0x188] sm:$0xf]
    %v1085 = vld [vmem:[#allocation9 + $0x18c] sm:$0xf]
    %v1086 = vld [vmem:[#allocation9 + $0x190] sm:$0xf]
    %v1087 = vld [vmem:[#allocation9 + $0x194] sm:$0xf]
    %v1088 = vld [vmem:[#allocation9 + $0x198] sm:$0xf]
    %v1089 = vld [vmem:[#allocation9 + $0x19c] sm:$0xf]
    %v1090 = vld [vmem:[#allocation9 + $0x1a0] sm:$0xf]
    %v1091 = vld [vmem:[#allocation9 + $0x1a4] sm:$0xf]
    %v1092 = vld [vmem:[#allocation9 + $0x1a8] sm:$0xf]
    %v1093 = vld [vmem:[#allocation9 + $0x1ac] sm:$0xf]
    %v1094 = vld [vmem:[#allocation9 + $0x1b0] sm:$0xf]
    %v1095 = vld [vmem:[#allocation9 + $0x1b4] sm:$0xf]
    %v1096 = vld [vmem:[#allocation9 + $0x1b8] sm:$0xf]
    %v1097 = vld [vmem:[#allocation9 + $0x1bc] sm:$0xf]
    %v1098 = vld [vmem:[#allocation9 + $0x1c0] sm:$0xf]
    %v1099 = vld [vmem:[#allocation9 + $0x1c4] sm:$0xf]
    %v1100 = vld [vmem:[#allocation9 + $0x1c8] sm:$0xf]
    %v1101 = vld [vmem:[#allocation9 + $0x1cc] sm:$0xf]
    %v1102 = vld [vmem:[#allocation9 + $0x1d0] sm:$0xf]
    %v1103 = vld [vmem:[#allocation9 + $0x1d4] sm:$0xf]
    %v1104 = vld [vmem:[#allocation9 + $0x1d8] sm:$0xf]
    %v1105 = vld [vmem:[#allocation9 + $0x1dc] sm:$0xf]
    %v1106 = vld [vmem:[#allocation9 + $0x1e0] sm:$0xf]
    %v1107 = vld [vmem:[#allocation9 + $0x1e4] sm:$0xf]
    %v1108 = vld [vmem:[#allocation9 + $0x1e8] sm:$0xf]
    %v1109 = vld [vmem:[#allocation9 + $0x1ec] sm:$0xf]
    %v1110 = vld [vmem:[#allocation9 + $0x1f0] sm:$0xf]
    %v1111 = vld [vmem:[#allocation9 + $0x1f4] sm:$0xf]
    %v1112 = vld [vmem:[#allocation9 + $0x1f8] sm:$0xf]
    %v1113 = vld [vmem:[#allocation9 + $0x1fc] sm:$0xf]
    %v1114 = vld [vmem:[#allocation9 + $0x200] sm:$0xf]
    %v1115 = vld [vmem:[#allocation9 + $0x204] sm:$0xf]
    %v1116 = vld [vmem:[#allocation9 + $0x208] sm:$0xf]
    %v1117 = vld [vmem:[#allocation9 + $0x20c] sm:$0xf]
    %v1118 = vld [vmem:[#allocation9 + $0x210] sm:$0xf]
    %v1119 = vld [vmem:[#allocation9 + $0x214] sm:$0xf]
    %v1120 = vld [vmem:[#allocation9 + $0x218] sm:$0xf]
    %v1121 = vld [vmem:[#allocation9 + $0x21c] sm:$0xf]
    %v1122 = vld [vmem:[#allocation9 + $0x220] sm:$0xf]
    %v1123 = vld [vmem:[#allocation9 + $0x224] sm:$0xf]
    %v1124 = vld [vmem:[#allocation9 + $0x228] sm:$0xf]
    %v1125 = vld [vmem:[#allocation9 + $0x22c] sm:$0xf]
    %v1126 = vld [vmem:[#allocation9 + $0x230] sm:$0xf]
    %v1127 = vld [vmem:[#allocation9 + $0x234] sm:$0xf]
    %v1128 = vld [vmem:[#allocation9 + $0x238] sm:$0xf]
    %v1129 = vld [vmem:[#allocation9 + $0x23c] sm:$0xf]
    %v1130 = vld [vmem:[#allocation9 + $0x240] sm:$0xf]
    %v1131 = vld [vmem:[#allocation9 + $0x244] sm:$0xf]
    %v1132 = vld [vmem:[#allocation9 + $0x248] sm:$0xf]
    %v1133 = vld [vmem:[#allocation9 + $0x24c] sm:$0xf]
    %v1134 = vld [vmem:[#allocation9 + $0x250] sm:$0xf]
    %v1135 = vld [vmem:[#allocation9 + $0x254] sm:$0xf]
    %v1136 = vld [vmem:[#allocation9 + $0x258] sm:$0xf]
    %v1137 = vld [vmem:[#allocation9 + $0x25c] sm:$0xf]
    %v1138 = vld [vmem:[#allocation9 + $0x260] sm:$0xf]
    %v1139 = vld [vmem:[#allocation9 + $0x264] sm:$0xf]
    %v1140 = vld [vmem:[#allocation9 + $0x268] sm:$0xf]
    %v1141 = vld [vmem:[#allocation9 + $0x26c] sm:$0xf]
    %v1142 = vld [vmem:[#allocation9 + $0x270] sm:$0xf]
    %v1143 = vld [vmem:[#allocation9 + $0x274] sm:$0xf]
    %v1144 = vld [vmem:[#allocation9 + $0x278] sm:$0xf]
    %v1145 = vld [vmem:[#allocation9 + $0x27c] sm:$0xf]
    %v1146 = vld [vmem:[#allocation9 + $0x280] sm:$0xf]
    %v1147 = vld [vmem:[#allocation9 + $0x284] sm:$0xf]
    %v1148 = vld [vmem:[#allocation9 + $0x288] sm:$0xf]
    %v1149 = vld [vmem:[#allocation9 + $0x28c] sm:$0xf]
    %v1150 = vld [vmem:[#allocation9 + $0x290] sm:$0xf]
    %v1151 = vld [vmem:[#allocation9 + $0x294] sm:$0xf]
    %v1152 = vld [vmem:[#allocation9 + $0x298] sm:$0xf]
    %v1153 = vld [vmem:[#allocation9 + $0x29c] sm:$0xf]
    %v1154 = vld [vmem:[#allocation9 + $0x2a0] sm:$0xf]
    %v1155 = vld [vmem:[#allocation9 + $0x2a4] sm:$0xf]
    %v1156 = vld [vmem:[#allocation9 + $0x2a8] sm:$0xf]
    %v1157 = vld [vmem:[#allocation9 + $0x2ac] sm:$0xf]
    %v1158 = vld [vmem:[#allocation9 + $0x2b0] sm:$0xf]
    %v1159 = vld [vmem:[#allocation9 + $0x2b4] sm:$0xf]
    %v1160 = vld [vmem:[#allocation9 + $0x2b8] sm:$0xf]
    %v1161 = vld [vmem:[#allocation9 + $0x2bc] sm:$0xf]
    %v1162 = vld [vmem:[#allocation9 + $0x2c0] sm:$0xf]
    %v1163 = vld [vmem:[#allocation9 + $0x2c4] sm:$0xf]
    %v1164 = vld [vmem:[#allocation9 + $0x2c8] sm:$0xf]
    %v1165 = vld [vmem:[#allocation9 + $0x2cc] sm:$0xf]
    %v1166 = vld [vmem:[#allocation9 + $0x2d0] sm:$0xf]
    %v1167 = vld [vmem:[#allocation9 + $0x2d4] sm:$0xf]
    %v1168 = vld [vmem:[#allocation9 + $0x2d8] sm:$0xf]
    %v1169 = vld [vmem:[#allocation9 + $0x2dc] sm:$0xf]
    %v1170 = vld [vmem:[#allocation9 + $0x2e0] sm:$0xf]
    %v1171 = vld [vmem:[#allocation9 + $0x2e4] sm:$0xf]
    %v1172 = vld [vmem:[#allocation9 + $0x2e8] sm:$0xf]
    %v1173 = vld [vmem:[#allocation9 + $0x2ec] sm:$0xf]
    %v1174 = vld [vmem:[#allocation9 + $0x2f0] sm:$0xf]
    %v1175 = vld [vmem:[#allocation9 + $0x2f4] sm:$0xf]
    %v1176 = vld [vmem:[#allocation9 + $0x2f8] sm:$0xf]
    %v1177 = vld [vmem:[#allocation9 + $0x2fc] sm:$0xf]
    %v1178 = vld [vmem:[#allocation9 + $0x300] sm:$0xf]
    %v1179 = vld [vmem:[#allocation9 + $0x304] sm:$0xf]
    %v1180 = vld [vmem:[#allocation9 + $0x308] sm:$0xf]
    %v1181 = vld [vmem:[#allocation9 + $0x30c] sm:$0xf]
    %v1182 = vld [vmem:[#allocation9 + $0x310] sm:$0xf]
    %v1183 = vld [vmem:[#allocation9 + $0x314] sm:$0xf]
    %v1184 = vld [vmem:[#allocation9 + $0x318] sm:$0xf]
    %v1185 = vld [vmem:[#allocation9 + $0x31c] sm:$0xf]
    %v1186 = vld [vmem:[#allocation9 + $0x320] sm:$0xf]
    %v1187 = vld [vmem:[#allocation9 + $0x324] sm:$0xf]
    %v1188 = vld [vmem:[#allocation9 + $0x328] sm:$0xf]
    %v1189 = vld [vmem:[#allocation9 + $0x32c] sm:$0xf]
    %v1190 = vld [vmem:[#allocation9 + $0x330] sm:$0xf]
    %v1191 = vld [vmem:[#allocation9 + $0x334] sm:$0xf]
    %v1192 = vld [vmem:[#allocation9 + $0x338] sm:$0xf]
    %v1193 = vld [vmem:[#allocation9 + $0x33c] sm:$0xf]
    %v1194 = vld [vmem:[#allocation9 + $0x340] sm:$0xf]
    %v1195 = vld [vmem:[#allocation9 + $0x344] sm:$0xf]
    %v1196 = vld [vmem:[#allocation9 + $0x348] sm:$0xf]
    %v1197 = vld [vmem:[#allocation9 + $0x34c] sm:$0xf]
    %v1198 = vld [vmem:[#allocation9 + $0x350] sm:$0xf]
    %v1199 = vld [vmem:[#allocation9 + $0x354] sm:$0xf]
    %v1200 = vld [vmem:[#allocation9 + $0x358] sm:$0xf]
    %v1201 = vld [vmem:[#allocation9 + $0x35c] sm:$0xf]
    %v1202 = vld [vmem:[#allocation9 + $0x360] sm:$0xf]
    %v1203 = vld [vmem:[#allocation9 + $0x364] sm:$0xf]
    %v1204 = vld [vmem:[#allocation9 + $0x368] sm:$0xf]
    %v1205 = vld [vmem:[#allocation9 + $0x36c] sm:$0xf]
    %v1206 = vld [vmem:[#allocation9 + $0x370] sm:$0xf]
    %v1207 = vld [vmem:[#allocation9 + $0x374] sm:$0xf]
    %v1208 = vld [vmem:[#allocation9 + $0x378] sm:$0xf]
    %v1209 = vld [vmem:[#allocation9 + $0x37c] sm:$0xf]
    %v1210 = vld [vmem:[#allocation9 + $0x380] sm:$0xf]
    %v1211 = vld [vmem:[#allocation9 + $0x384] sm:$0xf]
    %v1212 = vld [vmem:[#allocation9 + $0x388] sm:$0xf]
    %v1213 = vld [vmem:[#allocation9 + $0x38c] sm:$0xf]
    %v1214 = vld [vmem:[#allocation9 + $0x390] sm:$0xf]
    %v1215 = vld [vmem:[#allocation9 + $0x394] sm:$0xf]
    %v1216 = vld [vmem:[#allocation9 + $0x398] sm:$0xf]
    %v1217 = vld [vmem:[#allocation9 + $0x39c] sm:$0xf]
    %v1218 = vld [vmem:[#allocation9 + $0x3a0] sm:$0xf]
    %v1219 = vld [vmem:[#allocation9 + $0x3a4] sm:$0xf]
    %v1220 = vld [vmem:[#allocation9 + $0x3a8] sm:$0xf]
    %v1221 = vld [vmem:[#allocation9 + $0x3ac] sm:$0xf]
    %v1222 = vld [vmem:[#allocation9 + $0x3b0] sm:$0xf]
    %v1223 = vld [vmem:[#allocation9 + $0x3b4] sm:$0xf]
    %v1224 = vld [vmem:[#allocation9 + $0x3b8] sm:$0xf]
    %v1225 = vld [vmem:[#allocation9 + $0x3bc] sm:$0xf]
    %v1226 = vld [vmem:[#allocation9 + $0x3c0] sm:$0xf]
    %v1227 = vld [vmem:[#allocation9 + $0x3c4] sm:$0xf]
    %v1228 = vld [vmem:[#allocation9 + $0x3c8] sm:$0xf]
    %v1229 = vld [vmem:[#allocation9 + $0x3cc] sm:$0xf]
    %v1230 = vld [vmem:[#allocation9 + $0x3d0] sm:$0xf]
    %v1231 = vld [vmem:[#allocation9 + $0x3d4] sm:$0xf]
    %v1232 = vld [vmem:[#allocation9 + $0x3d8] sm:$0xf]
    %v1233 = vld [vmem:[#allocation9 + $0x3dc] sm:$0xf]
    %v1234 = vld [vmem:[#allocation9 + $0x3e0] sm:$0xf]
    %v1235 = vld [vmem:[#allocation9 + $0x3e4] sm:$0xf]
    %v1236 = vld [vmem:[#allocation9 + $0x3e8] sm:$0xf]
    %v1237 = vld [vmem:[#allocation9 + $0x3ec] sm:$0xf]
    %v1238 = vld [vmem:[#allocation9 + $0x3f0] sm:$0xf]
    %v1239 = vld [vmem:[#allocation9 + $0x3f4] sm:$0xf]
    %v1240 = vld [vmem:[#allocation9 + $0x3f8] sm:$0xf]
    %v1241 = vld [vmem:[#allocation9 + $0x3fc] sm:$0xf]
    %v1242 = vld [vmem:[#allocation9 + $0x400] sm:$0xf]
    %v1243 = vld [vmem:[#allocation9 + $0x404] sm:$0xf]
    %v1244 = vld [vmem:[#allocation9 + $0x408] sm:$0xf]
    %v1245 = vld [vmem:[#allocation9 + $0x40c] sm:$0xf]
    %v1246 = vld [vmem:[#allocation9 + $0x410] sm:$0xf]
    %v1247 = vld [vmem:[#allocation9 + $0x414] sm:$0xf]
    %v1248 = vld [vmem:[#allocation9 + $0x418] sm:$0xf]
    %v1249 = vld [vmem:[#allocation9 + $0x41c] sm:$0xf]
    %v1250 = vld [vmem:[#allocation9 + $0x420] sm:$0xf]
    %v1251 = vld [vmem:[#allocation9 + $0x424] sm:$0xf]
    %v1252 = vld [vmem:[#allocation9 + $0x428] sm:$0xf]
    %v1253 = vld [vmem:[#allocation9 + $0x42c] sm:$0xf]
    %v1254 = vld [vmem:[#allocation9 + $0x430] sm:$0xf]
    %v1255 = vld [vmem:[#allocation9 + $0x434] sm:$0xf]
    %v1256 = vld [vmem:[#allocation9 + $0x438] sm:$0xf]
    %v1257 = vld [vmem:[#allocation9 + $0x43c] sm:$0xf]
    %v1258 = vld [vmem:[#allocation9 + $0x440] sm:$0xf]
    %v1259 = vld [vmem:[#allocation9 + $0x444] sm:$0xf]
    %v1260 = vld [vmem:[#allocation9 + $0x448] sm:$0xf]
    %v1261 = vld [vmem:[#allocation9 + $0x44c] sm:$0xf]
    %v1262 = vld [vmem:[#allocation9 + $0x450] sm:$0xf]
    %v1263 = vld [vmem:[#allocation9 + $0x454] sm:$0xf]
    %v1264 = vld [vmem:[#allocation9 + $0x458] sm:$0xf]
    %v1265 = vld [vmem:[#allocation9 + $0x45c] sm:$0xf]
    %v1266 = vld [vmem:[#allocation9 + $0x460] sm:$0xf]
    %v1267 = vld [vmem:[#allocation9 + $0x464] sm:$0xf]
    %v1268 = vld [vmem:[#allocation9 + $0x468] sm:$0xf]
    %v1269 = vld [vmem:[#allocation9 + $0x46c] sm:$0xf]
    %v1270 = vld [vmem:[#allocation9 + $0x470] sm:$0xf]
    %v1271 = vld [vmem:[#allocation9 + $0x474] sm:$0xf]
    %v1272 = vld [vmem:[#allocation9 + $0x478] sm:$0xf]
    %v1273 = vld [vmem:[#allocation9 + $0x47c] sm:$0xf]
    %v1274 = vld [vmem:[#allocation9 + $0x480] sm:$0xf]
    %v1275 = vld [vmem:[#allocation9 + $0x484] sm:$0xf]
    %v1276 = vld [vmem:[#allocation9 + $0x488] sm:$0xf]
    %v1277 = vld [vmem:[#allocation9 + $0x48c] sm:$0xf]
    %v1278 = vld [vmem:[#allocation9 + $0x490] sm:$0xf]
    %v1279 = vld [vmem:[#allocation9 + $0x494] sm:$0xf]
    %v1280 = vld [vmem:[#allocation9 + $0x498] sm:$0xf]
    %v1281 = vld [vmem:[#allocation9 + $0x49c] sm:$0xf]
    %v1282 = vld [vmem:[#allocation9 + $0x4a0] sm:$0xf]
    %v1283 = vld [vmem:[#allocation9 + $0x4a4] sm:$0xf]
    %v1284 = vld [vmem:[#allocation9 + $0x4a8] sm:$0xf]
    %v1285 = vld [vmem:[#allocation9 + $0x4ac] sm:$0xf]
    %v1286 = vld [vmem:[#allocation9 + $0x4b0] sm:$0xf]
    %v1287 = vld [vmem:[#allocation9 + $0x4b4] sm:$0xf]
    %v1288 = vld [vmem:[#allocation9 + $0x4b8] sm:$0xf]
    %v1289 = vld [vmem:[#allocation9 + $0x4bc] sm:$0xf]
    %v1290 = vld [vmem:[#allocation9 + $0x4c0] sm:$0xf]
    %v1291 = vld [vmem:[#allocation9 + $0x4c4] sm:$0xf]
    %v1292 = vld [vmem:[#allocation9 + $0x4c8] sm:$0xf]
    %v1293 = vld [vmem:[#allocation9 + $0x4cc] sm:$0xf]
    %v1294 = vld [vmem:[#allocation9 + $0x4d0] sm:$0xf]
    %v1295 = vld [vmem:[#allocation9 + $0x4d4] sm:$0xf]
    %v1296 = vld [vmem:[#allocation9 + $0x4d8] sm:$0xf]
    %v1297 = vld [vmem:[#allocation9 + $0x4dc] sm:$0xf]
    %v1298 = vld [vmem:[#allocation9 + $0x4e0] sm:$0xf]
    %v1299 = vld [vmem:[#allocation9 + $0x4e4] sm:$0xf]
    %v1300 = vld [vmem:[#allocation9 + $0x4e8] sm:$0xf]
    %v1301 = vld [vmem:[#allocation9 + $0x4ec] sm:$0xf]
    %v1302 = vld [vmem:[#allocation9 + $0x4f0] sm:$0xf]
    %v1303 = vld [vmem:[#allocation9 + $0x4f4] sm:$0xf]
    %v1304 = vld [vmem:[#allocation9 + $0x4f8] sm:$0xf]
    %v1305 = vld [vmem:[#allocation9 + $0x4fc] sm:$0xf]
    %v1306 = vld [vmem:[#allocation9 + $0x500] sm:$0xf]
    %v1307 = vld [vmem:[#allocation9 + $0x504] sm:$0xf]
    %v1308 = vld [vmem:[#allocation9 + $0x508] sm:$0xf]
    %v1309 = vld [vmem:[#allocation9 + $0x50c] sm:$0xf]
    %v1310 = vld [vmem:[#allocation9 + $0x510] sm:$0xf]
    %v1311 = vld [vmem:[#allocation9 + $0x514] sm:$0xf]
    %v1312 = vld [vmem:[#allocation9 + $0x518] sm:$0xf]
    %v1313 = vld [vmem:[#allocation9 + $0x51c] sm:$0xf]
    %v1314 = vld [vmem:[#allocation9 + $0x520] sm:$0xf]
    %v1315 = vld [vmem:[#allocation9 + $0x524] sm:$0xf]
    %v1316 = vld [vmem:[#allocation9 + $0x528] sm:$0xf]
    %v1317 = vld [vmem:[#allocation9 + $0x52c] sm:$0xf]
    %v1318 = vld [vmem:[#allocation9 + $0x530] sm:$0xf]
    %v1319 = vld [vmem:[#allocation9 + $0x534] sm:$0xf]
    %v1320 = vld [vmem:[#allocation9 + $0x538] sm:$0xf]
    %v1321 = vld [vmem:[#allocation9 + $0x53c] sm:$0xf]
    %v1322 = vld [vmem:[#allocation9 + $0x540] sm:$0xf]
    %v1323 = vld [vmem:[#allocation9 + $0x544] sm:$0xf]
    %v1324 = vld [vmem:[#allocation9 + $0x548] sm:$0xf]
    %v1325 = vld [vmem:[#allocation9 + $0x54c] sm:$0xf]
    %v1326 = vld [vmem:[#allocation9 + $0x550] sm:$0xf]
    %v1327 = vld [vmem:[#allocation9 + $0x554] sm:$0xf]
    %v1328 = vld [vmem:[#allocation9 + $0x558] sm:$0xf]
    %v1329 = vld [vmem:[#allocation9 + $0x55c] sm:$0xf]
    %v1330 = vld [vmem:[#allocation9 + $0x560] sm:$0xf]
    %v1331 = vld [vmem:[#allocation9 + $0x564] sm:$0xf]
    %v1332 = vld [vmem:[#allocation9 + $0x568] sm:$0xf]
    %v1333 = vld [vmem:[#allocation9 + $0x56c] sm:$0xf]
    %v1334 = vld [vmem:[#allocation9 + $0x570] sm:$0xf]
    %v1335 = vld [vmem:[#allocation9 + $0x574] sm:$0xf]
    %v1336 = vld [vmem:[#allocation9 + $0x578] sm:$0xf]
    %v1337 = vld [vmem:[#allocation9 + $0x57c] sm:$0xf]
    %v1338 = vld [vmem:[#allocation9 + $0x580] sm:$0xf]
    %v1339 = vld [vmem:[#allocation9 + $0x584] sm:$0xf]
    %v1340 = vld [vmem:[#allocation9 + $0x588] sm:$0xf]
    %v1341 = vld [vmem:[#allocation9 + $0x58c] sm:$0xf]
    %v1342 = vld [vmem:[#allocation9 + $0x590] sm:$0xf]
    %v1343 = vld [vmem:[#allocation9 + $0x594] sm:$0xf]
    %v1344 = vld [vmem:[#allocation9 + $0x598] sm:$0xf]
    %v1345 = vld [vmem:[#allocation9 + $0x59c] sm:$0xf]
    %v1346 = vld [vmem:[#allocation9 + $0x5a0] sm:$0xf]
    %v1347 = vld [vmem:[#allocation9 + $0x5a4] sm:$0xf]
    %v1348 = vld [vmem:[#allocation9 + $0x5a8] sm:$0xf]
    %v1349 = vld [vmem:[#allocation9 + $0x5ac] sm:$0xf]
    %v1350 = vld [vmem:[#allocation9 + $0x5b0] sm:$0xf]
    %v1351 = vld [vmem:[#allocation9 + $0x5b4] sm:$0xf]
    %v1352 = vld [vmem:[#allocation9 + $0x5b8] sm:$0xf]
    %v1353 = vld [vmem:[#allocation9 + $0x5bc] sm:$0xf]
    %v1354 = vld [vmem:[#allocation9 + $0x5c0] sm:$0xf]
    %v1355 = vld [vmem:[#allocation9 + $0x5c4] sm:$0xf]
    %v1356 = vld [vmem:[#allocation9 + $0x5c8] sm:$0xf]
    %v1357 = vld [vmem:[#allocation9 + $0x5cc] sm:$0xf]
    %v1358 = vld [vmem:[#allocation9 + $0x5d0] sm:$0xf]
    %v1359 = vld [vmem:[#allocation9 + $0x5d4] sm:$0xf]
    %v1360 = vld [vmem:[#allocation9 + $0x5d8] sm:$0xf]
    %v1361 = vld [vmem:[#allocation9 + $0x5dc] sm:$0xf]
    %v1362 = vld [vmem:[#allocation9 + $0x5e0] sm:$0xf]
    %v1363 = vld [vmem:[#allocation9 + $0x5e4] sm:$0xf]
    %v1364 = vld [vmem:[#allocation9 + $0x5e8] sm:$0xf]
    %v1365 = vld [vmem:[#allocation9 + $0x5ec] sm:$0xf]
    %v1366 = vld [vmem:[#allocation9 + $0x5f0] sm:$0xf]
    %v1367 = vld [vmem:[#allocation9 + $0x5f4] sm:$0xf]
    %v1368 = vld [vmem:[#allocation9 + $0x5f8] sm:$0xf]
    %v1369 = vld [vmem:[#allocation9 + $0x5fc] sm:$0xf]
    %v1370 = vld [vmem:[#allocation9 + $0x600] sm:$0xf]
    %v1371 = vld [vmem:[#allocation9 + $0x604] sm:$0xf]
    %v1372 = vld [vmem:[#allocation9 + $0x608] sm:$0xf]
    %v1373 = vld [vmem:[#allocation9 + $0x60c] sm:$0xf]
    %v1374 = vld [vmem:[#allocation9 + $0x610] sm:$0xf]
    %v1375 = vld [vmem:[#allocation9 + $0x614] sm:$0xf]
    %v1376 = vld [vmem:[#allocation9 + $0x618] sm:$0xf]
    %v1377 = vld [vmem:[#allocation9 + $0x61c] sm:$0xf]
    %v1378 = vld [vmem:[#allocation9 + $0x620] sm:$0xf]
    %v1379 = vld [vmem:[#allocation9 + $0x624] sm:$0xf]
    %v1380 = vld [vmem:[#allocation9 + $0x628] sm:$0xf]
    %v1381 = vld [vmem:[#allocation9 + $0x62c] sm:$0xf]
    %v1382 = vld [vmem:[#allocation9 + $0x630] sm:$0xf]
    %v1383 = vld [vmem:[#allocation9 + $0x634] sm:$0xf]
    %v1384 = vld [vmem:[#allocation9 + $0x638] sm:$0xf]
    %v1385 = vld [vmem:[#allocation9 + $0x63c] sm:$0xf]
    %v1386 = vld [vmem:[#allocation9 + $0x640] sm:$0xf]
    %v1387 = vld [vmem:[#allocation9 + $0x644] sm:$0xf]
    %v1388 = vld [vmem:[#allocation9 + $0x648] sm:$0xf]
    %v1389 = vld [vmem:[#allocation9 + $0x64c] sm:$0xf]
    %v1390 = vld [vmem:[#allocation9 + $0x650] sm:$0xf]
    %v1391 = vld [vmem:[#allocation9 + $0x654] sm:$0xf]
    %v1392 = vld [vmem:[#allocation9 + $0x658] sm:$0xf]
    %v1393 = vld [vmem:[#allocation9 + $0x65c] sm:$0xf]
    %v1394 = vld [vmem:[#allocation9 + $0x660] sm:$0xf]
    %v1395 = vld [vmem:[#allocation9 + $0x664] sm:$0xf]
    %v1396 = vld [vmem:[#allocation9 + $0x668] sm:$0xf]
    %v1397 = vld [vmem:[#allocation9 + $0x66c] sm:$0xf]
    %v1398 = vld [vmem:[#allocation9 + $0x670] sm:$0xf]
    %v1399 = vld [vmem:[#allocation9 + $0x674] sm:$0xf]
    %v1400 = vld [vmem:[#allocation9 + $0x678] sm:$0xf]
    %v1401 = vld [vmem:[#allocation9 + $0x67c] sm:$0xf]
    %v1402 = vld [vmem:[#allocation9 + $0x680] sm:$0xf]
    %v1403 = vld [vmem:[#allocation9 + $0x684] sm:$0xf]
    %v1404 = vld [vmem:[#allocation9 + $0x688] sm:$0xf]
    %v1405 = vld [vmem:[#allocation9 + $0x68c] sm:$0xf]
    %v1406 = vld [vmem:[#allocation9 + $0x690] sm:$0xf]
    %v1407 = vld [vmem:[#allocation9 + $0x694] sm:$0xf]
    %v1408 = vld [vmem:[#allocation9 + $0x698] sm:$0xf]
    %v1409 = vld [vmem:[#allocation9 + $0x69c] sm:$0xf]
    %v1410 = vld [vmem:[#allocation9 + $0x6a0] sm:$0xf]
    %v1411 = vld [vmem:[#allocation9 + $0x6a4] sm:$0xf]
    %v1412 = vld [vmem:[#allocation9 + $0x6a8] sm:$0xf]
    %v1413 = vld [vmem:[#allocation9 + $0x6ac] sm:$0xf]
    %v1414 = vld [vmem:[#allocation9 + $0x6b0] sm:$0xf]
    %v1415 = vld [vmem:[#allocation9 + $0x6b4] sm:$0xf]
    %v1416 = vld [vmem:[#allocation9 + $0x6b8] sm:$0xf]
    %v1417 = vld [vmem:[#allocation9 + $0x6bc] sm:$0xf]
    %v1418 = vld [vmem:[#allocation9 + $0x6c0] sm:$0xf]
    %v1419 = vld [vmem:[#allocation9 + $0x6c4] sm:$0xf]
    %v1420 = vld [vmem:[#allocation9 + $0x6c8] sm:$0xf]
    %v1421 = vld [vmem:[#allocation9 + $0x6cc] sm:$0xf]
    %v1422 = vld [vmem:[#allocation9 + $0x6d0] sm:$0xf]
    %v1423 = vld [vmem:[#allocation9 + $0x6d4] sm:$0xf]
    %v1424 = vld [vmem:[#allocation9 + $0x6d8] sm:$0xf]
    %v1425 = vld [vmem:[#allocation9 + $0x6dc] sm:$0xf]
    %v1426 = vld [vmem:[#allocation9 + $0x6e0] sm:$0xf]
    %v1427 = vld [vmem:[#allocation9 + $0x6e4] sm:$0xf]
    %v1428 = vld [vmem:[#allocation9 + $0x6e8] sm:$0xf]
    %v1429 = vld [vmem:[#allocation9 + $0x6ec] sm:$0xf]
    %v1430 = vld [vmem:[#allocation9 + $0x6f0] sm:$0xf]
    %v1431 = vld [vmem:[#allocation9 + $0x6f4] sm:$0xf]
    %v1432 = vld [vmem:[#allocation9 + $0x6f8] sm:$0xf]
    %v1433 = vld [vmem:[#allocation9 + $0x6fc] sm:$0xf]
    %v1434 = vld [vmem:[#allocation9 + $0x700] sm:$0xf]
    %v1435 = vld [vmem:[#allocation9 + $0x704] sm:$0xf]
    %v1436 = vld [vmem:[#allocation9 + $0x708] sm:$0xf]
    %v1437 = vld [vmem:[#allocation9 + $0x70c] sm:$0xf]
    %v1438 = vld [vmem:[#allocation9 + $0x710] sm:$0xf]
    %v1439 = vld [vmem:[#allocation9 + $0x714] sm:$0xf]
    %v1440 = vld [vmem:[#allocation9 + $0x718] sm:$0xf]
    %v1441 = vld [vmem:[#allocation9 + $0x71c] sm:$0xf]
    %v1442 = vld [vmem:[#allocation9 + $0x720] sm:$0xf]
    %v1443 = vld [vmem:[#allocation9 + $0x724] sm:$0xf]
    %v1444 = vld [vmem:[#allocation9 + $0x728] sm:$0xf]
    %v1445 = vld [vmem:[#allocation9 + $0x72c] sm:$0xf]
    %v1446 = vld [vmem:[#allocation9 + $0x730] sm:$0xf]
    %v1447 = vld [vmem:[#allocation9 + $0x734] sm:$0xf]
    %v1448 = vld [vmem:[#allocation9 + $0x738] sm:$0xf]
    %v1449 = vld [vmem:[#allocation9 + $0x73c] sm:$0xf]
    %v1450 = vld [vmem:[#allocation9 + $0x740] sm:$0xf]
    %v1451 = vld [vmem:[#allocation9 + $0x744] sm:$0xf]
    %v1452 = vld [vmem:[#allocation9 + $0x748] sm:$0xf]
    %v1453 = vld [vmem:[#allocation9 + $0x74c] sm:$0xf]
    %v1454 = vld [vmem:[#allocation9 + $0x750] sm:$0xf]
    %v1455 = vld [vmem:[#allocation9 + $0x754] sm:$0xf]
    %v1456 = vld [vmem:[#allocation9 + $0x758] sm:$0xf]
    %v1457 = vld [vmem:[#allocation9 + $0x75c] sm:$0xf]
    %v1458 = vld [vmem:[#allocation9 + $0x760] sm:$0xf]
    %v1459 = vld [vmem:[#allocation9 + $0x764] sm:$0xf]
    %v1460 = vld [vmem:[#allocation9 + $0x768] sm:$0xf]
    %v1461 = vld [vmem:[#allocation9 + $0x76c] sm:$0xf]
    %v1462 = vld [vmem:[#allocation9 + $0x770] sm:$0xf]
    %v1463 = vld [vmem:[#allocation9 + $0x774] sm:$0xf]
    %v1464 = vld [vmem:[#allocation9 + $0x778] sm:$0xf]
    %v1465 = vld [vmem:[#allocation9 + $0x77c] sm:$0xf]
    %v1466 = vld [vmem:[#allocation9 + $0x780] sm:$0xf]
    %v1467 = vld [vmem:[#allocation9 + $0x784] sm:$0xf]
    %v1468 = vld [vmem:[#allocation9 + $0x788] sm:$0xf]
    %v1469 = vld [vmem:[#allocation9 + $0x78c] sm:$0xf]
    %v1470 = vld [vmem:[#allocation9 + $0x790] sm:$0xf]
    %v1471 = vld [vmem:[#allocation9 + $0x794] sm:$0xf]
    %v1472 = vld [vmem:[#allocation9 + $0x798] sm:$0xf]
    %v1473 = vld [vmem:[#allocation9 + $0x79c] sm:$0xf]
    %v1474 = vld [vmem:[#allocation9 + $0x7a0] sm:$0xf]
    %v1475 = vld [vmem:[#allocation9 + $0x7a4] sm:$0xf]
    %v1476 = vld [vmem:[#allocation9 + $0x7a8] sm:$0xf]
    %v1477 = vld [vmem:[#allocation9 + $0x7ac] sm:$0xf]
    %v1478 = vld [vmem:[#allocation9 + $0x7b0] sm:$0xf]
    %v1479 = vld [vmem:[#allocation9 + $0x7b4] sm:$0xf]
    %v1480 = vld [vmem:[#allocation9 + $0x7b8] sm:$0xf]
    %v1481 = vld [vmem:[#allocation9 + $0x7bc] sm:$0xf]
    %v1482 = vld [vmem:[#allocation9 + $0x7c0] sm:$0xf]
    %v1483 = vld [vmem:[#allocation9 + $0x7c4] sm:$0xf]
    %v1484 = vld [vmem:[#allocation9 + $0x7c8] sm:$0xf]
    %v1485 = vld [vmem:[#allocation9 + $0x7cc] sm:$0xf]
    %v1486 = vld [vmem:[#allocation9 + $0x7d0] sm:$0xf]
    %v1487 = vld [vmem:[#allocation9 + $0x7d4] sm:$0xf]
    %v1488 = vld [vmem:[#allocation9 + $0x7d8] sm:$0xf]
    %v1489 = vld [vmem:[#allocation9 + $0x7dc] sm:$0xf]
    %v1490 = vld [vmem:[#allocation9 + $0x7e0] sm:$0xf]
    %v1491 = vld [vmem:[#allocation9 + $0x7e4] sm:$0xf]
    %v1492 = vld [vmem:[#allocation9 + $0x7e8] sm:$0xf]
    %v1493 = vld [vmem:[#allocation9 + $0x7ec] sm:$0xf]
    %v1494 = vld [vmem:[#allocation9 + $0x7f0] sm:$0xf]
    %v1495 = vld [vmem:[#allocation9 + $0x7f4] sm:$0xf]
    %v1496 = vld [vmem:[#allocation9 + $0x7f8] sm:$0xf]
    %v1497 = vld [vmem:[#allocation9 + $0x7fc] sm:$0xf]
    %v2010 = vunpack.c.l.b16 %v986
    %v2011 = vunpack.c.l.b16 %v987
    %v2012 = vunpack.c.l.b16 %v988
    %v2013 = vunpack.c.l.b16 %v989
    %v2014 = vunpack.c.l.b16 %v990
    %v2015 = vunpack.c.l.b16 %v991
    %v2016 = vunpack.c.l.b16 %v992
    %v2017 = vunpack.c.l.b16 %v993
    %v2018 = vunpack.c.l.b16 %v994
    %v2019 = vunpack.c.l.b16 %v995
    %v2020 = vunpack.c.l.b16 %v996
    %v2021 = vunpack.c.l.b16 %v997
    %v2022 = vunpack.c.l.b16 %v998
    %v2023 = vunpack.c.l.b16 %v999
    %v2024 = vunpack.c.l.b16 %v1000
    %v2025 = vunpack.c.l.b16 %v1001
    %v2026 = vunpack.c.l.b16 %v1002
    %v2027 = vunpack.c.l.b16 %v1003
    %v2028 = vunpack.c.l.b16 %v1004
    %v2029 = vunpack.c.l.b16 %v1005
    %v2030 = vunpack.c.l.b16 %v1006
    %v2031 = vunpack.c.l.b16 %v1007
    %v2032 = vunpack.c.l.b16 %v1008
    %v2033 = vunpack.c.l.b16 %v1009
    %v2034 = vunpack.c.l.b16 %v1010
    %v2035 = vunpack.c.l.b16 %v1011
    %v2036 = vunpack.c.l.b16 %v1012
    %v2037 = vunpack.c.l.b16 %v1013
    %v2038 = vunpack.c.l.b16 %v1014
    %v2039 = vunpack.c.l.b16 %v1015
    %v2040 = vunpack.c.l.b16 %v1016
    %v2041 = vunpack.c.l.b16 %v1017
    %v2042 = vunpack.c.l.b16 %v1018
    %v2043 = vunpack.c.l.b16 %v1019
    %v2044 = vunpack.c.l.b16 %v1020
    %v2045 = vunpack.c.l.b16 %v1021
    %v2046 = vunpack.c.l.b16 %v1022
    %v2047 = vunpack.c.l.b16 %v1023
    %v2048 = vunpack.c.l.b16 %v1024
    %v2049 = vunpack.c.l.b16 %v1025
    %v2050 = vunpack.c.l.b16 %v1026
    %v2051 = vunpack.c.l.b16 %v1027
    %v2052 = vunpack.c.l.b16 %v1028
    %v2053 = vunpack.c.l.b16 %v1029
    %v2054 = vunpack.c.l.b16 %v1030
    %v2055 = vunpack.c.l.b16 %v1031
    %v2056 = vunpack.c.l.b16 %v1032
    %v2057 = vunpack.c.l.b16 %v1033
    %v2058 = vunpack.c.l.b16 %v1034
    %v2059 = vunpack.c.l.b16 %v1035
    %v2060 = vunpack.c.l.b16 %v1036
    %v2061 = vunpack.c.l.b16 %v1037
    %v2062 = vunpack.c.l.b16 %v1038
    %v2063 = vunpack.c.l.b16 %v1039
    %v2064 = vunpack.c.l.b16 %v1040
    %v2065 = vunpack.c.l.b16 %v1041
    %v2066 = vunpack.c.l.b16 %v1042
    %v2067 = vunpack.c.l.b16 %v1043
    %v2068 = vunpack.c.l.b16 %v1044
    %v2069 = vunpack.c.l.b16 %v1045
    %v2070 = vunpack.c.l.b16 %v1046
    %v2071 = vunpack.c.l.b16 %v1047
    %v2072 = vunpack.c.l.b16 %v1048
    %v2073 = vunpack.c.l.b16 %v1049
    %v2074 = vunpack.c.l.b16 %v1050
    %v2075 = vunpack.c.l.b16 %v1051
    %v2076 = vunpack.c.l.b16 %v1052
    %v2077 = vunpack.c.l.b16 %v1053
    %v2078 = vunpack.c.l.b16 %v1054
    %v2079 = vunpack.c.l.b16 %v1055
    %v2080 = vunpack.c.l.b16 %v1056
    %v2081 = vunpack.c.l.b16 %v1057
    %v2082 = vunpack.c.l.b16 %v1058
    %v2083 = vunpack.c.l.b16 %v1059
    %v2084 = vunpack.c.l.b16 %v1060
    %v2085 = vunpack.c.l.b16 %v1061
    %v2086 = vunpack.c.l.b16 %v1062
    %v2087 = vunpack.c.l.b16 %v1063
    %v2088 = vunpack.c.l.b16 %v1064
    %v2089 = vunpack.c.l.b16 %v1065
    %v2090 = vunpack.c.l.b16 %v1066
    %v2091 = vunpack.c.l.b16 %v1067
    %v2092 = vunpack.c.l.b16 %v1068
    %v2093 = vunpack.c.l.b16 %v1069
    %v2094 = vunpack.c.l.b16 %v1070
    %v2095 = vunpack.c.l.b16 %v1071
    %v2096 = vunpack.c.l.b16 %v1072
    %v2097 = vunpack.c.l.b16 %v1073
    %v2098 = vunpack.c.l.b16 %v1074
    %v2099 = vunpack.c.l.b16 %v1075
    %v2100 = vunpack.c.l.b16 %v1076
    %v2101 = vunpack.c.l.b16 %v1077
    %v2102 = vunpack.c.l.b16 %v1078
    %v2103 = vunpack.c.l.b16 %v1079
    %v2104 = vunpack.c.l.b16 %v1080
    %v2105 = vunpack.c.l.b16 %v1081
    %v2106 = vunpack.c.l.b16 %v1082
    %v2107 = vunpack.c.l.b16 %v1083
    %v2108 = vunpack.c.l.b16 %v1084
    %v2109 = vunpack.c.l.b16 %v1085
    %v2110 = vunpack.c.l.b16 %v1086
    %v2111 = vunpack.c.l.b16 %v1087
    %v2112 = vunpack.c.l.b16 %v1088
    %v2113 = vunpack.c.l.b16 %v1089
    %v2114 = vunpack.c.l.b16 %v1090
    %v2115 = vunpack.c.l.b16 %v1091
    %v2116 = vunpack.c.l.b16 %v1092
    %v2117 = vunpack.c.l.b16 %v1093
    %v2118 = vunpack.c.l.b16 %v1094
    %v2119 = vunpack.c.l.b16 %v1095
    %v2120 = vunpack.c.l.b16 %v1096
    %v2121 = vunpack.c.l.b16 %v1097
    %v2122 = vunpack.c.l.b16 %v1098
    %v2123 = vunpack.c.l.b16 %v1099
    %v2124 = vunpack.c.l.b16 %v1100
    %v2125 = vunpack.c.l.b16 %v1101
    %v2126 = vunpack.c.l.b16 %v1102
    %v2127 = vunpack.c.l.b16 %v1103
    %v2128 = vunpack.c.l.b16 %v1104
    %v2129 = vunpack.c.l.b16 %v1105
    %v2130 = vunpack.c.l.b16 %v1106
    %v2131 = vunpack.c.l.b16 %v1107
    %v2132 = vunpack.c.l.b16 %v1108
    %v2133 = vunpack.c.l.b16 %v1109
    %v2134 = vunpack.c.l.b16 %v1110
    %v2135 = vunpack.c.l.b16 %v1111
    %v2136 = vunpack.c.l.b16 %v1112
    %v2137 = vunpack.c.l.b16 %v1113
    %v2138 = vunpack.c.l.b16 %v1114
    %v2139 = vunpack.c.l.b16 %v1115
    %v2140 = vunpack.c.l.b16 %v1116
    %v2141 = vunpack.c.l.b16 %v1117
    %v2142 = vunpack.c.l.b16 %v1118
    %v2143 = vunpack.c.l.b16 %v1119
    %v2144 = vunpack.c.l.b16 %v1120
    %v2145 = vunpack.c.l.b16 %v1121
    %v2146 = vunpack.c.l.b16 %v1122
    %v2147 = vunpack.c.l.b16 %v1123
    %v2148 = vunpack.c.l.b16 %v1124
    %v2149 = vunpack.c.l.b16 %v1125
    %v2150 = vunpack.c.l.b16 %v1126
    %v2151 = vunpack.c.l.b16 %v1127
    %v2152 = vunpack.c.l.b16 %v1128
    %v2153 = vunpack.c.l.b16 %v1129
    %v2154 = vunpack.c.l.b16 %v1130
    %v2155 = vunpack.c.l.b16 %v1131
    %v2156 = vunpack.c.l.b16 %v1132
    %v2157 = vunpack.c.l.b16 %v1133
    %v2158 = vunpack.c.l.b16 %v1134
    %v2159 = vunpack.c.l.b16 %v1135
    %v2160 = vunpack.c.l.b16 %v1136
    %v2161 = vunpack.c.l.b16 %v1137
    %v2162 = vunpack.c.l.b16 %v1138
    %v2163 = vunpack.c.l.b16 %v1139
    %v2164 = vunpack.c.l.b16 %v1140
    %v2165 = vunpack.c.l.b16 %v1141
    %v2166 = vunpack.c.l.b16 %v1142
    %v2167 = vunpack.c.l.b16 %v1143
    %v2168 = vunpack.c.l.b16 %v1144
    %v2169 = vunpack.c.l.b16 %v1145
    %v2170 = vunpack.c.l.b16 %v1146
    %v2171 = vunpack.c.l.b16 %v1147
    %v2172 = vunpack.c.l.b16 %v1148
    %v2173 = vunpack.c.l.b16 %v1149
    %v2174 = vunpack.c.l.b16 %v1150
    %v2175 = vunpack.c.l.b16 %v1151
    %v2176 = vunpack.c.l.b16 %v1152
    %v2177 = vunpack.c.l.b16 %v1153
    %v2178 = vunpack.c.l.b16 %v1154
    %v2179 = vunpack.c.l.b16 %v1155
    %v2180 = vunpack.c.l.b16 %v1156
    %v2181 = vunpack.c.l.b16 %v1157
    %v2182 = vunpack.c.l.b16 %v1158
    %v2183 = vunpack.c.l.b16 %v1159
    %v2184 = vunpack.c.l.b16 %v1160
    %v2185 = vunpack.c.l.b16 %v1161
    %v2186 = vunpack.c.l.b16 %v1162
    %v2187 = vunpack.c.l.b16 %v1163
    %v2188 = vunpack.c.l.b16 %v1164
    %v2189 = vunpack.c.l.b16 %v1165
    %v2190 = vunpack.c.l.b16 %v1166
    %v2191 = vunpack.c.l.b16 %v1167
    %v2192 = vunpack.c.l.b16 %v1168
    %v2193 = vunpack.c.l.b16 %v1169
    %v2194 = vunpack.c.l.b16 %v1170
    %v2195 = vunpack.c.l.b16 %v1171
    %v2196 = vunpack.c.l.b16 %v1172
    %v2197 = vunpack.c.l.b16 %v1173
    %v2198 = vunpack.c.l.b16 %v1174
    %v2199 = vunpack.c.l.b16 %v1175
    %v2200 = vunpack.c.l.b16 %v1176
    %v2201 = vunpack.c.l.b16 %v1177
    %v2202 = vunpack.c.l.b16 %v1178
    %v2203 = vunpack.c.l.b16 %v1179
    %v2204 = vunpack.c.l.b16 %v1180
    %v2205 = vunpack.c.l.b16 %v1181
    %v2206 = vunpack.c.l.b16 %v1182
    %v2207 = vunpack.c.l.b16 %v1183
    %v2208 = vunpack.c.l.b16 %v1184
    %v2209 = vunpack.c.l.b16 %v1185
    %v2210 = vunpack.c.l.b16 %v1186
    %v2211 = vunpack.c.l.b16 %v1187
    %v2212 = vunpack.c.l.b16 %v1188
    %v2213 = vunpack.c.l.b16 %v1189
    %v2214 = vunpack.c.l.b16 %v1190
    %v2215 = vunpack.c.l.b16 %v1191
    %v2216 = vunpack.c.l.b16 %v1192
    %v2217 = vunpack.c.l.b16 %v1193
    %v2218 = vunpack.c.l.b16 %v1194
    %v2219 = vunpack.c.l.b16 %v1195
    %v2220 = vunpack.c.l.b16 %v1196
    %v2221 = vunpack.c.l.b16 %v1197
    %v2222 = vunpack.c.l.b16 %v1198
    %v2223 = vunpack.c.l.b16 %v1199
    %v2224 = vunpack.c.l.b16 %v1200
    %v2225 = vunpack.c.l.b16 %v1201
    %v2226 = vunpack.c.l.b16 %v1202
    %v2227 = vunpack.c.l.b16 %v1203
    %v2228 = vunpack.c.l.b16 %v1204
    %v2229 = vunpack.c.l.b16 %v1205
    %v2230 = vunpack.c.l.b16 %v1206
    %v2231 = vunpack.c.l.b16 %v1207
    %v2232 = vunpack.c.l.b16 %v1208
    %v2233 = vunpack.c.l.b16 %v1209
    %v2234 = vunpack.c.l.b16 %v1210
    %v2235 = vunpack.c.l.b16 %v1211
    %v2236 = vunpack.c.l.b16 %v1212
    %v2237 = vunpack.c.l.b16 %v1213
    %v2238 = vunpack.c.l.b16 %v1214
    %v2239 = vunpack.c.l.b16 %v1215
    %v2240 = vunpack.c.l.b16 %v1216
    %v2241 = vunpack.c.l.b16 %v1217
    %v2242 = vunpack.c.l.b16 %v1218
    %v2243 = vunpack.c.l.b16 %v1219
    %v2244 = vunpack.c.l.b16 %v1220
    %v2245 = vunpack.c.l.b16 %v1221
    %v2246 = vunpack.c.l.b16 %v1222
    %v2247 = vunpack.c.l.b16 %v1223
    %v2248 = vunpack.c.l.b16 %v1224
    %v2249 = vunpack.c.l.b16 %v1225
    %v2250 = vunpack.c.l.b16 %v1226
    %v2251 = vunpack.c.l.b16 %v1227
    %v2252 = vunpack.c.l.b16 %v1228
    %v2253 = vunpack.c.l.b16 %v1229
    %v2254 = vunpack.c.l.b16 %v1230
    %v2255 = vunpack.c.l.b16 %v1231
    %v2256 = vunpack.c.l.b16 %v1232
    %v2257 = vunpack.c.l.b16 %v1233
    %v2258 = vunpack.c.l.b16 %v1234
    %v2259 = vunpack.c.l.b16 %v1235
    %v2260 = vunpack.c.l.b16 %v1236
    %v2261 = vunpack.c.l.b16 %v1237
    %v2262 = vunpack.c.l.b16 %v1238
    %v2263 = vunpack.c.l.b16 %v1239
    %v2264 = vunpack.c.l.b16 %v1240
    %v2265 = vunpack.c.l.b16 %v1241
    %v2266 = vunpack.c.l.b16 %v1242
    %v2267 = vunpack.c.l.b16 %v1243
    %v2268 = vunpack.c.l.b16 %v1244
    %v2269 = vunpack.c.l.b16 %v1245
    %v2270 = vunpack.c.l.b16 %v1246
    %v2271 = vunpack.c.l.b16 %v1247
    %v2272 = vunpack.c.l.b16 %v1248
    %v2273 = vunpack.c.l.b16 %v1249
    %v2274 = vunpack.c.l.b16 %v1250
    %v2275 = vunpack.c.l.b16 %v1251
    %v2276 = vunpack.c.l.b16 %v1252
    %v2277 = vunpack.c.l.b16 %v1253
    %v2278 = vunpack.c.l.b16 %v1254
    %v2279 = vunpack.c.l.b16 %v1255
    %v2280 = vunpack.c.l.b16 %v1256
    %v2281 = vunpack.c.l.b16 %v1257
    %v2282 = vunpack.c.l.b16 %v1258
    %v2283 = vunpack.c.l.b16 %v1259
    %v2284 = vunpack.c.l.b16 %v1260
    %v2285 = vunpack.c.l.b16 %v1261
    %v2286 = vunpack.c.l.b16 %v1262
    %v2287 = vunpack.c.l.b16 %v1263
    %v2288 = vunpack.c.l.b16 %v1264
    %v2289 = vunpack.c.l.b16 %v1265
    %v2290 = vunpack.c.l.b16 %v1266
    %v2291 = vunpack.c.l.b16 %v1267
    %v2292 = vunpack.c.l.b16 %v1268
    %v2293 = vunpack.c.l.b16 %v1269
    %v2294 = vunpack.c.l.b16 %v1270
    %v2295 = vunpack.c.l.b16 %v1271
    %v2296 = vunpack.c.l.b16 %v1272
    %v2297 = vunpack.c.l.b16 %v1273
    %v2298 = vunpack.c.l.b16 %v1274
    %v2299 = vunpack.c.l.b16 %v1275
    %v2300 = vunpack.c.l.b16 %v1276
    %v2301 = vunpack.c.l.b16 %v1277
    %v2302 = vunpack.c.l.b16 %v1278
    %v2303 = vunpack.c.l.b16 %v1279
    %v2304 = vunpack.c.l.b16 %v1280
    %v2305 = vunpack.c.l.b16 %v1281
    %v2306 = vunpack.c.l.b16 %v1282
    %v2307 = vunpack.c.l.b16 %v1283
    %v2308 = vunpack.c.l.b16 %v1284
    %v2309 = vunpack.c.l.b16 %v1285
    %v2310 = vunpack.c.l.b16 %v1286
    %v2311 = vunpack.c.l.b16 %v1287
    %v2312 = vunpack.c.l.b16 %v1288
    %v2313 = vunpack.c.l.b16 %v1289
    %v2314 = vunpack.c.l.b16 %v1290
    %v2315 = vunpack.c.l.b16 %v1291
    %v2316 = vunpack.c.l.b16 %v1292
    %v2317 = vunpack.c.l.b16 %v1293
    %v2318 = vunpack.c.l.b16 %v1294
    %v2319 = vunpack.c.l.b16 %v1295
    %v2320 = vunpack.c.l.b16 %v1296
    %v2321 = vunpack.c.l.b16 %v1297
    %v2322 = vunpack.c.l.b16 %v1298
    %v2323 = vunpack.c.l.b16 %v1299
    %v2324 = vunpack.c.l.b16 %v1300
    %v2325 = vunpack.c.l.b16 %v1301
    %v2326 = vunpack.c.l.b16 %v1302
    %v2327 = vunpack.c.l.b16 %v1303
    %v2328 = vunpack.c.l.b16 %v1304
    %v2329 = vunpack.c.l.b16 %v1305
    %v2330 = vunpack.c.l.b16 %v1306
    %v2331 = vunpack.c.l.b16 %v1307
    %v2332 = vunpack.c.l.b16 %v1308
    %v2333 = vunpack.c.l.b16 %v1309
    %v2334 = vunpack.c.l.b16 %v1310
    %v2335 = vunpack.c.l.b16 %v1311
    %v2336 = vunpack.c.l.b16 %v1312
    %v2337 = vunpack.c.l.b16 %v1313
    %v2338 = vunpack.c.l.b16 %v1314
    %v2339 = vunpack.c.l.b16 %v1315
    %v2340 = vunpack.c.l.b16 %v1316
    %v2341 = vunpack.c.l.b16 %v1317
    %v2342 = vunpack.c.l.b16 %v1318
    %v2343 = vunpack.c.l.b16 %v1319
    %v2344 = vunpack.c.l.b16 %v1320
    %v2345 = vunpack.c.l.b16 %v1321
    %v2346 = vunpack.c.l.b16 %v1322
    %v2347 = vunpack.c.l.b16 %v1323
    %v2348 = vunpack.c.l.b16 %v1324
    %v2349 = vunpack.c.l.b16 %v1325
    %v2350 = vunpack.c.l.b16 %v1326
    %v2351 = vunpack.c.l.b16 %v1327
    %v2352 = vunpack.c.l.b16 %v1328
    %v2353 = vunpack.c.l.b16 %v1329
    %v2354 = vunpack.c.l.b16 %v1330
    %v2355 = vunpack.c.l.b16 %v1331
    %v2356 = vunpack.c.l.b16 %v1332
    %v2357 = vunpack.c.l.b16 %v1333
    %v2358 = vunpack.c.l.b16 %v1334
    %v2359 = vunpack.c.l.b16 %v1335
    %v2360 = vunpack.c.l.b16 %v1336
    %v2361 = vunpack.c.l.b16 %v1337
    %v2362 = vunpack.c.l.b16 %v1338
    %v2363 = vunpack.c.l.b16 %v1339
    %v2364 = vunpack.c.l.b16 %v1340
    %v2365 = vunpack.c.l.b16 %v1341
    %v2366 = vunpack.c.l.b16 %v1342
    %v2367 = vunpack.c.l.b16 %v1343
    %v2368 = vunpack.c.l.b16 %v1344
    %v2369 = vunpack.c.l.b16 %v1345
    %v2370 = vunpack.c.l.b16 %v1346
    %v2371 = vunpack.c.l.b16 %v1347
    %v2372 = vunpack.c.l.b16 %v1348
    %v2373 = vunpack.c.l.b16 %v1349
    %v2374 = vunpack.c.l.b16 %v1350
    %v2375 = vunpack.c.l.b16 %v1351
    %v2376 = vunpack.c.l.b16 %v1352
    %v2377 = vunpack.c.l.b16 %v1353
    %v2378 = vunpack.c.l.b16 %v1354
    %v2379 = vunpack.c.l.b16 %v1355
    %v2380 = vunpack.c.l.b16 %v1356
    %v2381 = vunpack.c.l.b16 %v1357
    %v2382 = vunpack.c.l.b16 %v1358
    %v2383 = vunpack.c.l.b16 %v1359
    %v2384 = vunpack.c.l.b16 %v1360
    %v2385 = vunpack.c.l.b16 %v1361
    %v2386 = vunpack.c.l.b16 %v1362
    %v2387 = vunpack.c.l.b16 %v1363
    %v2388 = vunpack.c.l.b16 %v1364
    %v2389 = vunpack.c.l.b16 %v1365
    %v2390 = vunpack.c.l.b16 %v1366
    %v2391 = vunpack.c.l.b16 %v1367
    %v2392 = vunpack.c.l.b16 %v1368
    %v2393 = vunpack.c.l.b16 %v1369
    %v2394 = vunpack.c.l.b16 %v1370
    %v2395 = vunpack.c.l.b16 %v1371
    %v2396 = vunpack.c.l.b16 %v1372
    %v2397 = vunpack.c.l.b16 %v1373
    %v2398 = vunpack.c.l.b16 %v1374
    %v2399 = vunpack.c.l.b16 %v1375
    %v2400 = vunpack.c.l.b16 %v1376
    %v2401 = vunpack.c.l.b16 %v1377
    %v2402 = vunpack.c.l.b16 %v1378
    %v2403 = vunpack.c.l.b16 %v1379
    %v2404 = vunpack.c.l.b16 %v1380
    %v2405 = vunpack.c.l.b16 %v1381
    %v2406 = vunpack.c.l.b16 %v1382
    %v2407 = vunpack.c.l.b16 %v1383
    %v2408 = vunpack.c.l.b16 %v1384
    %v2409 = vunpack.c.l.b16 %v1385
    %v2410 = vunpack.c.l.b16 %v1386
    %v2411 = vunpack.c.l.b16 %v1387
    %v2412 = vunpack.c.l.b16 %v1388
    %v2413 = vunpack.c.l.b16 %v1389
    %v2414 = vunpack.c.l.b16 %v1390
    %v2415 = vunpack.c.l.b16 %v1391
    %v2416 = vunpack.c.l.b16 %v1392
    %v2417 = vunpack.c.l.b16 %v1393
    %v2418 = vunpack.c.l.b16 %v1394
    %v2419 = vunpack.c.l.b16 %v1395
    %v2420 = vunpack.c.l.b16 %v1396
    %v2421 = vunpack.c.l.b16 %v1397
    %v2422 = vunpack.c.l.b16 %v1398
    %v2423 = vunpack.c.l.b16 %v1399
    %v2424 = vunpack.c.l.b16 %v1400
    %v2425 = vunpack.c.l.b16 %v1401
    %v2426 = vunpack.c.l.b16 %v1402
    %v2427 = vunpack.c.l.b16 %v1403
    %v2428 = vunpack.c.l.b16 %v1404
    %v2429 = vunpack.c.l.b16 %v1405
    %v2430 = vunpack.c.l.b16 %v1406
    %v2431 = vunpack.c.l.b16 %v1407
    %v2432 = vunpack.c.l.b16 %v1408
    %v2433 = vunpack.c.l.b16 %v1409
    %v2434 = vunpack.c.l.b16 %v1410
    %v2435 = vunpack.c.l.b16 %v1411
    %v2436 = vunpack.c.l.b16 %v1412
    %v2437 = vunpack.c.l.b16 %v1413
    %v2438 = vunpack.c.l.b16 %v1414
    %v2439 = vunpack.c.l.b16 %v1415
    %v2440 = vunpack.c.l.b16 %v1416
    %v2441 = vunpack.c.l.b16 %v1417
    %v2442 = vunpack.c.l.b16 %v1418
    %v2443 = vunpack.c.l.b16 %v1419
    %v2444 = vunpack.c.l.b16 %v1420
    %v2445 = vunpack.c.l.b16 %v1421
    %v2446 = vunpack.c.l.b16 %v1422
    %v2447 = vunpack.c.l.b16 %v1423
    %v2448 = vunpack.c.l.b16 %v1424
    %v2449 = vunpack.c.l.b16 %v1425
    %v2450 = vunpack.c.l.b16 %v1426
    %v2451 = vunpack.c.l.b16 %v1427
    %v2452 = vunpack.c.l.b16 %v1428
    %v2453 = vunpack.c.l.b16 %v1429
    %v2454 = vunpack.c.l.b16 %v1430
    %v2455 = vunpack.c.l.b16 %v1431
    %v2456 = vunpack.c.l.b16 %v1432
    %v2457 = vunpack.c.l.b16 %v1433
    %v2458 = vunpack.c.l.b16 %v1434
    %v2459 = vunpack.c.l.b16 %v1435
    %v2460 = vunpack.c.l.b16 %v1436
    %v2461 = vunpack.c.l.b16 %v1437
    %v2462 = vunpack.c.l.b16 %v1438
    %v2463 = vunpack.c.l.b16 %v1439
    %v2464 = vunpack.c.l.b16 %v1440
    %v2465 = vunpack.c.l.b16 %v1441
    %v2466 = vunpack.c.l.b16 %v1442
    %v2467 = vunpack.c.l.b16 %v1443
    %v2468 = vunpack.c.l.b16 %v1444
    %v2469 = vunpack.c.l.b16 %v1445
    %v2470 = vunpack.c.l.b16 %v1446
    %v2471 = vunpack.c.l.b16 %v1447
    %v2472 = vunpack.c.l.b16 %v1448
    %v2473 = vunpack.c.l.b16 %v1449
    %v2474 = vunpack.c.l.b16 %v1450
    %v2475 = vunpack.c.l.b16 %v1451
    %v2476 = vunpack.c.l.b16 %v1452
    %v2477 = vunpack.c.l.b16 %v1453
    %v2478 = vunpack.c.l.b16 %v1454
    %v2479 = vunpack.c.l.b16 %v1455
    %v2480 = vunpack.c.l.b16 %v1456
    %v2481 = vunpack.c.l.b16 %v1457
    %v2482 = vunpack.c.l.b16 %v1458
    %v2483 = vunpack.c.l.b16 %v1459
    %v2484 = vunpack.c.l.b16 %v1460
    %v2485 = vunpack.c.l.b16 %v1461
    %v2486 = vunpack.c.l.b16 %v1462
    %v2487 = vunpack.c.l.b16 %v1463
    %v2488 = vunpack.c.l.b16 %v1464
    %v2489 = vunpack.c.l.b16 %v1465
    %v2490 = vunpack.c.l.b16 %v1466
    %v2491 = vunpack.c.l.b16 %v1467
    %v2492 = vunpack.c.l.b16 %v1468
    %v2493 = vunpack.c.l.b16 %v1469
    %v2494 = vunpack.c.l.b16 %v1470
    %v2495 = vunpack.c.l.b16 %v1471
    %v2496 = vunpack.c.l.b16 %v1472
    %v2497 = vunpack.c.l.b16 %v1473
    %v2498 = vunpack.c.l.b16 %v1474
    %v2499 = vunpack.c.l.b16 %v1475
    %v2500 = vunpack.c.l.b16 %v1476
    %v2501 = vunpack.c.l.b16 %v1477
    %v2502 = vunpack.c.l.b16 %v1478
    %v2503 = vunpack.c.l.b16 %v1479
    %v2504 = vunpack.c.l.b16 %v1480
    %v2505 = vunpack.c.l.b16 %v1481
    %v2506 = vunpack.c.l.b16 %v1482
    %v2507 = vunpack.c.l.b16 %v1483
    %v2508 = vunpack.c.l.b16 %v1484
    %v2509 = vunpack.c.l.b16 %v1485
    %v2510 = vunpack.c.l.b16 %v1486
    %v2511 = vunpack.c.l.b16 %v1487
    %v2512 = vunpack.c.l.b16 %v1488
    %v2513 = vunpack.c.l.b16 %v1489
    %v2514 = vunpack.c.l.b16 %v1490
    %v2515 = vunpack.c.l.b16 %v1491
    %v2516 = vunpack.c.l.b16 %v1492
    %v2517 = vunpack.c.l.b16 %v1493
    %v2518 = vunpack.c.l.b16 %v1494
    %v2519 = vunpack.c.l.b16 %v1495
    %v2520 = vunpack.c.l.b16 %v1496
    %v2521 = vunpack.c.l.b16 %v1497
    %v2522 = vpack.c.b16 %v2011, %v2010
    %v2523 = vpack.c.b16 %v2013, %v2012
    %v2524 = vpack.c.b16 %v2015, %v2014
    %v2525 = vpack.c.b16 %v2017, %v2016
    %v2526 = vpack.c.b16 %v2019, %v2018
    %v2527 = vpack.c.b16 %v2021, %v2020
    %v2528 = vpack.c.b16 %v2023, %v2022
    %v2529 = vpack.c.b16 %v2025, %v2024
    %v2530 = vpack.c.b16 %v2027, %v2026
    %v2531 = vpack.c.b16 %v2029, %v2028
    %v2532 = vpack.c.b16 %v2031, %v2030
    %v2533 = vpack.c.b16 %v2033, %v2032
    %v2534 = vpack.c.b16 %v2035, %v2034
    %v2535 = vpack.c.b16 %v2037, %v2036
    %v2536 = vpack.c.b16 %v2039, %v2038
    %v2537 = vpack.c.b16 %v2041, %v2040
    %v2538 = vpack.c.b16 %v2043, %v2042
    %v2539 = vpack.c.b16 %v2045, %v2044
    %v2540 = vpack.c.b16 %v2047, %v2046
    %v2541 = vpack.c.b16 %v2049, %v2048
    %v2542 = vpack.c.b16 %v2051, %v2050
    %v2543 = vpack.c.b16 %v2053, %v2052
    %v2544 = vpack.c.b16 %v2055, %v2054
    %v2545 = vpack.c.b16 %v2057, %v2056
    %v2546 = vpack.c.b16 %v2059, %v2058
    %v2547 = vpack.c.b16 %v2061, %v2060
    %v2548 = vpack.c.b16 %v2063, %v2062
    %v2549 = vpack.c.b16 %v2065, %v2064
    %v2550 = vpack.c.b16 %v2067, %v2066
    %v2551 = vpack.c.b16 %v2069, %v2068
    %v2552 = vpack.c.b16 %v2071, %v2070
    %v2553 = vpack.c.b16 %v2073, %v2072
    %v2554 = vpack.c.b16 %v2075, %v2074
    %v2555 = vpack.c.b16 %v2077, %v2076
    %v2556 = vpack.c.b16 %v2079, %v2078
    %v2557 = vpack.c.b16 %v2081, %v2080
    %v2558 = vpack.c.b16 %v2083, %v2082
    %v2559 = vpack.c.b16 %v2085, %v2084
    %v2560 = vpack.c.b16 %v2087, %v2086
    %v2561 = vpack.c.b16 %v2089, %v2088
    %v2562 = vpack.c.b16 %v2091, %v2090
    %v2563 = vpack.c.b16 %v2093, %v2092
    %v2564 = vpack.c.b16 %v2095, %v2094
    %v2565 = vpack.c.b16 %v2097, %v2096
    %v2566 = vpack.c.b16 %v2099, %v2098
    %v2567 = vpack.c.b16 %v2101, %v2100
    %v2568 = vpack.c.b16 %v2103, %v2102
    %v2569 = vpack.c.b16 %v2105, %v2104
    %v2570 = vpack.c.b16 %v2107, %v2106
    %v2571 = vpack.c.b16 %v2109, %v2108
    %v2572 = vpack.c.b16 %v2111, %v2110
    %v2573 = vpack.c.b16 %v2113, %v2112
    %v2574 = vpack.c.b16 %v2115, %v2114
    %v2575 = vpack.c.b16 %v2117, %v2116
    %v2576 = vpack.c.b16 %v2119, %v2118
    %v2577 = vpack.c.b16 %v2121, %v2120
    %v2578 = vpack.c.b16 %v2123, %v2122
    %v2579 = vpack.c.b16 %v2125, %v2124
    %v2580 = vpack.c.b16 %v2127, %v2126
    %v2581 = vpack.c.b16 %v2129, %v2128
    %v2582 = vpack.c.b16 %v2131, %v2130
    %v2583 = vpack.c.b16 %v2133, %v2132
    %v2584 = vpack.c.b16 %v2135, %v2134
    %v2585 = vpack.c.b16 %v2137, %v2136
    %v2586 = vpack.c.b16 %v2139, %v2138
    %v2587 = vpack.c.b16 %v2141, %v2140
    %v2588 = vpack.c.b16 %v2143, %v2142
    %v2589 = vpack.c.b16 %v2145, %v2144
    %v2590 = vpack.c.b16 %v2147, %v2146
    %v2591 = vpack.c.b16 %v2149, %v2148
    %v2592 = vpack.c.b16 %v2151, %v2150
    %v2593 = vpack.c.b16 %v2153, %v2152
    %v2594 = vpack.c.b16 %v2155, %v2154
    %v2595 = vpack.c.b16 %v2157, %v2156
    %v2596 = vpack.c.b16 %v2159, %v2158
    %v2597 = vpack.c.b16 %v2161, %v2160
    %v2598 = vpack.c.b16 %v2163, %v2162
    %v2599 = vpack.c.b16 %v2165, %v2164
    %v2600 = vpack.c.b16 %v2167, %v2166
    %v2601 = vpack.c.b16 %v2169, %v2168
    %v2602 = vpack.c.b16 %v2171, %v2170
    %v2603 = vpack.c.b16 %v2173, %v2172
    %v2604 = vpack.c.b16 %v2175, %v2174
    %v2605 = vpack.c.b16 %v2177, %v2176
    %v2606 = vpack.c.b16 %v2179, %v2178
    %v2607 = vpack.c.b16 %v2181, %v2180
    %v2608 = vpack.c.b16 %v2183, %v2182
    %v2609 = vpack.c.b16 %v2185, %v2184
    %v2610 = vpack.c.b16 %v2187, %v2186
    %v2611 = vpack.c.b16 %v2189, %v2188
    %v2612 = vpack.c.b16 %v2191, %v2190
    %v2613 = vpack.c.b16 %v2193, %v2192
    %v2614 = vpack.c.b16 %v2195, %v2194
    %v2615 = vpack.c.b16 %v2197, %v2196
    %v2616 = vpack.c.b16 %v2199, %v2198
    %v2617 = vpack.c.b16 %v2201, %v2200
    %v2618 = vpack.c.b16 %v2203, %v2202
    %v2619 = vpack.c.b16 %v2205, %v2204
    %v2620 = vpack.c.b16 %v2207, %v2206
    %v2621 = vpack.c.b16 %v2209, %v2208
    %v2622 = vpack.c.b16 %v2211, %v2210
    %v2623 = vpack.c.b16 %v2213, %v2212
    %v2624 = vpack.c.b16 %v2215, %v2214
    %v2625 = vpack.c.b16 %v2217, %v2216
    %v2626 = vpack.c.b16 %v2219, %v2218
    %v2627 = vpack.c.b16 %v2221, %v2220
    %v2628 = vpack.c.b16 %v2223, %v2222
    %v2629 = vpack.c.b16 %v2225, %v2224
    %v2630 = vpack.c.b16 %v2227, %v2226
    %v2631 = vpack.c.b16 %v2229, %v2228
    %v2632 = vpack.c.b16 %v2231, %v2230
    %v2633 = vpack.c.b16 %v2233, %v2232
    %v2634 = vpack.c.b16 %v2235, %v2234
    %v2635 = vpack.c.b16 %v2237, %v2236
    %v2636 = vpack.c.b16 %v2239, %v2238
    %v2637 = vpack.c.b16 %v2241, %v2240
    %v2638 = vpack.c.b16 %v2243, %v2242
    %v2639 = vpack.c.b16 %v2245, %v2244
    %v2640 = vpack.c.b16 %v2247, %v2246
    %v2641 = vpack.c.b16 %v2249, %v2248
    %v2642 = vpack.c.b16 %v2251, %v2250
    %v2643 = vpack.c.b16 %v2253, %v2252
    %v2644 = vpack.c.b16 %v2255, %v2254
    %v2645 = vpack.c.b16 %v2257, %v2256
    %v2646 = vpack.c.b16 %v2259, %v2258
    %v2647 = vpack.c.b16 %v2261, %v2260
    %v2648 = vpack.c.b16 %v2263, %v2262
    %v2649 = vpack.c.b16 %v2265, %v2264
    %v2650 = vpack.c.b16 %v2267, %v2266
    %v2651 = vpack.c.b16 %v2269, %v2268
    %v2652 = vpack.c.b16 %v2271, %v2270
    %v2653 = vpack.c.b16 %v2273, %v2272
    %v2654 = vpack.c.b16 %v2275, %v2274
    %v2655 = vpack.c.b16 %v2277, %v2276
    %v2656 = vpack.c.b16 %v2279, %v2278
    %v2657 = vpack.c.b16 %v2281, %v2280
    %v2658 = vpack.c.b16 %v2283, %v2282
    %v2659 = vpack.c.b16 %v2285, %v2284
    %v2660 = vpack.c.b16 %v2287, %v2286
    %v2661 = vpack.c.b16 %v2289, %v2288
    %v2662 = vpack.c.b16 %v2291, %v2290
    %v2663 = vpack.c.b16 %v2293, %v2292
    %v2664 = vpack.c.b16 %v2295, %v2294
    %v2665 = vpack.c.b16 %v2297, %v2296
    %v2666 = vpack.c.b16 %v2299, %v2298
    %v2667 = vpack.c.b16 %v2301, %v2300
    %v2668 = vpack.c.b16 %v2303, %v2302
    %v2669 = vpack.c.b16 %v2305, %v2304
    %v2670 = vpack.c.b16 %v2307, %v2306
    %v2671 = vpack.c.b16 %v2309, %v2308
    %v2672 = vpack.c.b16 %v2311, %v2310
    %v2673 = vpack.c.b16 %v2313, %v2312
    %v2674 = vpack.c.b16 %v2315, %v2314
    %v2675 = vpack.c.b16 %v2317, %v2316
    %v2676 = vpack.c.b16 %v2319, %v2318
    %v2677 = vpack.c.b16 %v2321, %v2320
    %v2678 = vpack.c.b16 %v2323, %v2322
    %v2679 = vpack.c.b16 %v2325, %v2324
    %v2680 = vpack.c.b16 %v2327, %v2326
    %v2681 = vpack.c.b16 %v2329, %v2328
    %v2682 = vpack.c.b16 %v2331, %v2330
    %v2683 = vpack.c.b16 %v2333, %v2332
    %v2684 = vpack.c.b16 %v2335, %v2334
    %v2685 = vpack.c.b16 %v2337, %v2336
    %v2686 = vpack.c.b16 %v2339, %v2338
    %v2687 = vpack.c.b16 %v2341, %v2340
    %v2688 = vpack.c.b16 %v2343, %v2342
    %v2689 = vpack.c.b16 %v2345, %v2344
    %v2690 = vpack.c.b16 %v2347, %v2346
    %v2691 = vpack.c.b16 %v2349, %v2348
    %v2692 = vpack.c.b16 %v2351, %v2350
    %v2693 = vpack.c.b16 %v2353, %v2352
    %v2694 = vpack.c.b16 %v2355, %v2354
    %v2695 = vpack.c.b16 %v2357, %v2356
    %v2696 = vpack.c.b16 %v2359, %v2358
    %v2697 = vpack.c.b16 %v2361, %v2360
    %v2698 = vpack.c.b16 %v2363, %v2362
    %v2699 = vpack.c.b16 %v2365, %v2364
    %v2700 = vpack.c.b16 %v2367, %v2366
    %v2701 = vpack.c.b16 %v2369, %v2368
    %v2702 = vpack.c.b16 %v2371, %v2370
    %v2703 = vpack.c.b16 %v2373, %v2372
    %v2704 = vpack.c.b16 %v2375, %v2374
    %v2705 = vpack.c.b16 %v2377, %v2376
    %v2706 = vpack.c.b16 %v2379, %v2378
    %v2707 = vpack.c.b16 %v2381, %v2380
    %v2708 = vpack.c.b16 %v2383, %v2382
    %v2709 = vpack.c.b16 %v2385, %v2384
    %v2710 = vpack.c.b16 %v2387, %v2386
    %v2711 = vpack.c.b16 %v2389, %v2388
    %v2712 = vpack.c.b16 %v2391, %v2390
    %v2713 = vpack.c.b16 %v2393, %v2392
    %v2714 = vpack.c.b16 %v2395, %v2394
    %v2715 = vpack.c.b16 %v2397, %v2396
    %v2716 = vpack.c.b16 %v2399, %v2398
    %v2717 = vpack.c.b16 %v2401, %v2400
    %v2718 = vpack.c.b16 %v2403, %v2402
    %v2719 = vpack.c.b16 %v2405, %v2404
    %v2720 = vpack.c.b16 %v2407, %v2406
    %v2721 = vpack.c.b16 %v2409, %v2408
    %v2722 = vpack.c.b16 %v2411, %v2410
    %v2723 = vpack.c.b16 %v2413, %v2412
    %v2724 = vpack.c.b16 %v2415, %v2414
    %v2725 = vpack.c.b16 %v2417, %v2416
    %v2726 = vpack.c.b16 %v2419, %v2418
    %v2727 = vpack.c.b16 %v2421, %v2420
    %v2728 = vpack.c.b16 %v2423, %v2422
    %v2729 = vpack.c.b16 %v2425, %v2424
    %v2730 = vpack.c.b16 %v2427, %v2426
    %v2731 = vpack.c.b16 %v2429, %v2428
    %v2732 = vpack.c.b16 %v2431, %v2430
    %v2733 = vpack.c.b16 %v2433, %v2432
    %v2734 = vpack.c.b16 %v2435, %v2434
    %v2735 = vpack.c.b16 %v2437, %v2436
    %v2736 = vpack.c.b16 %v2439, %v2438
    %v2737 = vpack.c.b16 %v2441, %v2440
    %v2738 = vpack.c.b16 %v2443, %v2442
    %v2739 = vpack.c.b16 %v2445, %v2444
    %v2740 = vpack.c.b16 %v2447, %v2446
    %v2741 = vpack.c.b16 %v2449, %v2448
    %v2742 = vpack.c.b16 %v2451, %v2450
    %v2743 = vpack.c.b16 %v2453, %v2452
    %v2744 = vpack.c.b16 %v2455, %v2454
    %v2745 = vpack.c.b16 %v2457, %v2456
    %v2746 = vpack.c.b16 %v2459, %v2458
    %v2747 = vpack.c.b16 %v2461, %v2460
    %v2748 = vpack.c.b16 %v2463, %v2462
    %v2749 = vpack.c.b16 %v2465, %v2464
    %v2750 = vpack.c.b16 %v2467, %v2466
    %v2751 = vpack.c.b16 %v2469, %v2468
    %v2752 = vpack.c.b16 %v2471, %v2470
    %v2753 = vpack.c.b16 %v2473, %v2472
    %v2754 = vpack.c.b16 %v2475, %v2474
    %v2755 = vpack.c.b16 %v2477, %v2476
    %v2756 = vpack.c.b16 %v2479, %v2478
    %v2757 = vpack.c.b16 %v2481, %v2480
    %v2758 = vpack.c.b16 %v2483, %v2482
    %v2759 = vpack.c.b16 %v2485, %v2484
    %v2760 = vpack.c.b16 %v2487, %v2486
    %v2761 = vpack.c.b16 %v2489, %v2488
    %v2762 = vpack.c.b16 %v2491, %v2490
    %v2763 = vpack.c.b16 %v2493, %v2492
    %v2764 = vpack.c.b16 %v2495, %v2494
    %v2765 = vpack.c.b16 %v2497, %v2496
    %v2766 = vpack.c.b16 %v2499, %v2498
    %v2767 = vpack.c.b16 %v2501, %v2500
    %v2768 = vpack.c.b16 %v2503, %v2502
    %v2769 = vpack.c.b16 %v2505, %v2504
    %v2770 = vpack.c.b16 %v2507, %v2506
    %v2771 = vpack.c.b16 %v2509, %v2508
    %v2772 = vpack.c.b16 %v2511, %v2510
    %v2773 = vpack.c.b16 %v2513, %v2512
    %v2774 = vpack.c.b16 %v2515, %v2514
    %v2775 = vpack.c.b16 %v2517, %v2516
    %v2776 = vpack.c.b16 %v2519, %v2518
    %v2777 = vpack.c.b16 %v2521, %v2520
    %3034 = vmatprep.subr.bf16.mxu0 0
    %3035 = vmatpush1.bf16.msra.mxu0 %v2529
    %3036 = vmatprep.subr.bf16.mxu0 0
    %3037 = vmatpush1.bf16.msra.mxu0 %v2528
    %3038 = vmatprep.subr.bf16.mxu0 0
    %3039 = vmatpush1.bf16.msra.mxu0 %v2527
    %3040 = vmatprep.subr.bf16.mxu0 0
    %3041 = vmatpush1.bf16.msra.mxu0 %v2526
    %3042 = vmatprep.subr.bf16.mxu0 0
    %3043 = vmatpush1.bf16.msra.mxu0 %v2525
    %3044 = vmatprep.subr.bf16.mxu0 0
    %3045 = vmatpush1.bf16.msra.mxu0 %v2524
    %3046 = vmatprep.subr.bf16.mxu0 0
    %3047 = vmatpush1.bf16.msra.mxu0 %v2523
    %3048 = vmatprep.subr.bf16.mxu0 0
    %3049 = vmatpush1.bf16.msra.mxu0 %v2522
    %3050 = vmatprep.subr.bf16.mxu0 0
    %3051 = vmatpush2.bf16.msra.mxu0 %v2537
    %3052 = vmatprep.subr.bf16.mxu0 0
    %3053 = vmatpush2.bf16.msra.mxu0 %v2536
    %3054 = vmatprep.subr.bf16.mxu0 0
    %3055 = vmatpush2.bf16.msra.mxu0 %v2535
    %3056 = vmatprep.subr.bf16.mxu0 0
    %3057 = vmatpush2.bf16.msra.mxu0 %v2534
    %3058 = vmatprep.subr.bf16.mxu0 0
    %3059 = vmatpush2.bf16.msra.mxu0 %v2533
    %3060 = vmatprep.subr.bf16.mxu0 0
    %3061 = vmatpush2.bf16.msra.mxu0 %v2532
    %3062 = vmatprep.subr.bf16.mxu0 0
    %3063 = vmatpush2.bf16.msra.mxu0 %v2531
    %3064 = vmatprep.subr.bf16.mxu0 0
    %3065 = vmatpush2.bf16.msra.mxu0 %v2530
    %3066 = vmatprep.mubr.bf16.mxu0 %v443
    %3067 = vmatmul.mubr.bf16.gmra.mxu0 %v442
    %v3068 = vpop.f32.mrf.mxu0
    %v3069 = vadd.f32 0.0, %v3068
    %v3070 = vpop.f32.mrf.mxu0
    %v3071 = vpop.f32.mrf.mxu0
    %v3072 = vpop.f32.mrf.mxu0
    %3073 = vdwg.mxu0
    %3074 = vmatprep.subr.bf16.mxu0 0
    %3075 = vmatpush1.bf16.msra.mxu0 %v2545
    %3076 = vmatprep.subr.bf16.mxu0 0
    %3077 = vmatpush1.bf16.msra.mxu0 %v2544
    %3078 = vmatprep.subr.bf16.mxu0 0
    %3079 = vmatpush1.bf16.msra.mxu0 %v2543
    %3080 = vmatprep.subr.bf16.mxu0 0
    %3081 = vmatpush1.bf16.msra.mxu0 %v2542
    %3082 = vmatprep.subr.bf16.mxu0 0
    %3083 = vmatpush1.bf16.msra.mxu0 %v2541
    %3084 = vmatprep.subr.bf16.mxu0 0
    %3085 = vmatpush1.bf16.msra.mxu0 %v2540
    %3086 = vmatprep.subr.bf16.mxu0 0
    %3087 = vmatpush1.bf16.msra.mxu0 %v2539
    %3088 = vmatprep.subr.bf16.mxu0 0
    %3089 = vmatpush1.bf16.msra.mxu0 %v2538
    %3090 = vmatprep.subr.bf16.mxu0 0
    %3091 = vmatpush2.bf16.msra.mxu0 %v2553
    %3092 = vmatprep.subr.bf16.mxu0 0
    %3093 = vmatpush2.bf16.msra.mxu0 %v2552
    %3094 = vmatprep.subr.bf16.mxu0 0
    %3095 = vmatpush2.bf16.msra.mxu0 %v2551
    %3096 = vmatprep.subr.bf16.mxu0 0
    %3097 = vmatpush2.bf16.msra.mxu0 %v2550
    %3098 = vmatprep.subr.bf16.mxu0 0
    %3099 = vmatpush2.bf16.msra.mxu0 %v2549
    %3100 = vmatprep.subr.bf16.mxu0 0
    %3101 = vmatpush2.bf16.msra.mxu0 %v2548
    %3102 = vmatprep.subr.bf16.mxu0 0
    %3103 = vmatpush2.bf16.msra.mxu0 %v2547
    %3104 = vmatprep.subr.bf16.mxu0 0
    %3105 = vmatpush2.bf16.msra.mxu0 %v2546
    %3106 = vmatprep.mubr.bf16.mxu0 %v445
    %3107 = vmatmul.mubr.bf16.gmra.mxu0 %v444
    %v3108 = vpop.f32.mrf.mxu0
    %v3109 = vadd.f32 %v3069, %v3108
    %v3110 = vpop.f32.mrf.mxu0
    %v3111 = vpop.f32.mrf.mxu0
    %v3112 = vpop.f32.mrf.mxu0
    %3113 = vdwg.mxu0
    %3114 = vmatprep.subr.bf16.mxu0 0
    %3115 = vmatpush1.bf16.msra.mxu0 %v2561
    %3116 = vmatprep.subr.bf16.mxu0 0
    %3117 = vmatpush1.bf16.msra.mxu0 %v2560
    %3118 = vmatprep.subr.bf16.mxu0 0
    %3119 = vmatpush1.bf16.msra.mxu0 %v2559
    %3120 = vmatprep.subr.bf16.mxu0 0
    %3121 = vmatpush1.bf16.msra.mxu0 %v2558
    %3122 = vmatprep.subr.bf16.mxu0 0
    %3123 = vmatpush1.bf16.msra.mxu0 %v2557
    %3124 = vmatprep.subr.bf16.mxu0 0
    %3125 = vmatpush1.bf16.msra.mxu0 %v2556
    %3126 = vmatprep.subr.bf16.mxu0 0
    %3127 = vmatpush1.bf16.msra.mxu0 %v2555
    %3128 = vmatprep.subr.bf16.mxu0 0
    %3129 = vmatpush1.bf16.msra.mxu0 %v2554
    %3130 = vmatprep.subr.bf16.mxu0 0
    %3131 = vmatpush2.bf16.msra.mxu0 %v2569
    %3132 = vmatprep.subr.bf16.mxu0 0
    %3133 = vmatpush2.bf16.msra.mxu0 %v2568
    %3134 = vmatprep.subr.bf16.mxu0 0
    %3135 = vmatpush2.bf16.msra.mxu0 %v2567
    %3136 = vmatprep.subr.bf16.mxu0 0
    %3137 = vmatpush2.bf16.msra.mxu0 %v2566
    %3138 = vmatprep.subr.bf16.mxu0 0
    %3139 = vmatpush2.bf16.msra.mxu0 %v2565
    %3140 = vmatprep.subr.bf16.mxu0 0
    %3141 = vmatpush2.bf16.msra.mxu0 %v2564
    %3142 = vmatprep.subr.bf16.mxu0 0
    %3143 = vmatpush2.bf16.msra.mxu0 %v2563
    %3144 = vmatprep.subr.bf16.mxu0 0
    %3145 = vmatpush2.bf16.msra.mxu0 %v2562
    %3146 = vmatprep.mubr.bf16.mxu0 %v447
    %3147 = vmatmul.mubr.bf16.gmra.mxu0 %v446
    %v3148 = vpop.f32.mrf.mxu0
    %v3149 = vadd.f32 %v3109, %v3148
    %v3150 = vpop.f32.mrf.mxu0
    %v3151 = vpop.f32.mrf.mxu0
    %v3152 = vpop.f32.mrf.mxu0
    %3153 = vdwg.mxu0
    %3154 = vmatprep.subr.bf16.mxu0 0
    %3155 = vmatpush1.bf16.msra.mxu0 %v2577
    %3156 = vmatprep.subr.bf16.mxu0 0
    %3157 = vmatpush1.bf16.msra.mxu0 %v2576
    %3158 = vmatprep.subr.bf16.mxu0 0
    %3159 = vmatpush1.bf16.msra.mxu0 %v2575
    %3160 = vmatprep.subr.bf16.mxu0 0
    %3161 = vmatpush1.bf16.msra.mxu0 %v2574
    %3162 = vmatprep.subr.bf16.mxu0 0
    %3163 = vmatpush1.bf16.msra.mxu0 %v2573
    %3164 = vmatprep.subr.bf16.mxu0 0
    %3165 = vmatpush1.bf16.msra.mxu0 %v2572
    %3166 = vmatprep.subr.bf16.mxu0 0
    %3167 = vmatpush1.bf16.msra.mxu0 %v2571
    %3168 = vmatprep.subr.bf16.mxu0 0
    %3169 = vmatpush1.bf16.msra.mxu0 %v2570
    %3170 = vmatprep.subr.bf16.mxu0 0
    %3171 = vmatpush2.bf16.msra.mxu0 %v2585
    %3172 = vmatprep.subr.bf16.mxu0 0
    %3173 = vmatpush2.bf16.msra.mxu0 %v2584
    %3174 = vmatprep.subr.bf16.mxu0 0
    %3175 = vmatpush2.bf16.msra.mxu0 %v2583
    %3176 = vmatprep.subr.bf16.mxu0 0
    %3177 = vmatpush2.bf16.msra.mxu0 %v2582
    %3178 = vmatprep.subr.bf16.mxu0 0
    %3179 = vmatpush2.bf16.msra.mxu0 %v2581
    %3180 = vmatprep.subr.bf16.mxu0 0
    %3181 = vmatpush2.bf16.msra.mxu0 %v2580
    %3182 = vmatprep.subr.bf16.mxu0 0
    %3183 = vmatpush2.bf16.msra.mxu0 %v2579
    %3184 = vmatprep.subr.bf16.mxu0 0
    %3185 = vmatpush2.bf16.msra.mxu0 %v2578
    %3186 = vmatprep.mubr.bf16.mxu0 %v449
    %3187 = vmatmul.mubr.bf16.gmra.mxu0 %v448
    %v3188 = vpop.f32.mrf.mxu0
    %v3189 = vadd.f32 %v3149, %v3188
    %v3190 = vpop.f32.mrf.mxu0
    %v3191 = vpop.f32.mrf.mxu0
    %v3192 = vpop.f32.mrf.mxu0
    %3193 = vdwg.mxu0
    %3194 = vmatprep.subr.bf16.mxu0 0
    %3195 = vmatpush1.bf16.msra.mxu0 %v2593
    %3196 = vmatprep.subr.bf16.mxu0 0
    %3197 = vmatpush1.bf16.msra.mxu0 %v2592
    %3198 = vmatprep.subr.bf16.mxu0 0
    %3199 = vmatpush1.bf16.msra.mxu0 %v2591
    %3200 = vmatprep.subr.bf16.mxu0 0
    %3201 = vmatpush1.bf16.msra.mxu0 %v2590
    %3202 = vmatprep.subr.bf16.mxu0 0
    %3203 = vmatpush1.bf16.msra.mxu0 %v2589
    %3204 = vmatprep.subr.bf16.mxu0 0
    %3205 = vmatpush1.bf16.msra.mxu0 %v2588
    %3206 = vmatprep.subr.bf16.mxu0 0
    %3207 = vmatpush1.bf16.msra.mxu0 %v2587
    %3208 = vmatprep.subr.bf16.mxu0 0
    %3209 = vmatpush1.bf16.msra.mxu0 %v2586
    %3210 = vmatprep.subr.bf16.mxu0 0
    %3211 = vmatpush2.bf16.msra.mxu0 %v2601
    %3212 = vmatprep.subr.bf16.mxu0 0
    %3213 = vmatpush2.bf16.msra.mxu0 %v2600
    %3214 = vmatprep.subr.bf16.mxu0 0
    %3215 = vmatpush2.bf16.msra.mxu0 %v2599
    %3216 = vmatprep.subr.bf16.mxu0 0
    %3217 = vmatpush2.bf16.msra.mxu0 %v2598
    %3218 = vmatprep.subr.bf16.mxu0 0
    %3219 = vmatpush2.bf16.msra.mxu0 %v2597
    %3220 = vmatprep.subr.bf16.mxu0 0
    %3221 = vmatpush2.bf16.msra.mxu0 %v2596
    %3222 = vmatprep.subr.bf16.mxu0 0
    %3223 = vmatpush2.bf16.msra.mxu0 %v2595
    %3224 = vmatprep.subr.bf16.mxu0 0
    %3225 = vmatpush2.bf16.msra.mxu0 %v2594
    %3226 = vmatprep.mubr.bf16.mxu0 %v451
    %3227 = vmatmul.mubr.bf16.gmra.mxu0 %v450
    %v3228 = vpop.f32.mrf.mxu0
    %v3229 = vadd.f32 %v3189, %v3228
    %v3230 = vpop.f32.mrf.mxu0
    %v3231 = vpop.f32.mrf.mxu0
    %v3232 = vpop.f32.mrf.mxu0
    %3233 = vdwg.mxu0
    %3234 = vmatprep.subr.bf16.mxu0 0
    %3235 = vmatpush1.bf16.msra.mxu0 %v2609
    %3236 = vmatprep.subr.bf16.mxu0 0
    %3237 = vmatpush1.bf16.msra.mxu0 %v2608
    %3238 = vmatprep.subr.bf16.mxu0 0
    %3239 = vmatpush1.bf16.msra.mxu0 %v2607
    %3240 = vmatprep.subr.bf16.mxu0 0
    %3241 = vmatpush1.bf16.msra.mxu0 %v2606
    %3242 = vmatprep.subr.bf16.mxu0 0
    %3243 = vmatpush1.bf16.msra.mxu0 %v2605
    %3244 = vmatprep.subr.bf16.mxu0 0
    %3245 = vmatpush1.bf16.msra.mxu0 %v2604
    %3246 = vmatprep.subr.bf16.mxu0 0
    %3247 = vmatpush1.bf16.msra.mxu0 %v2603
    %3248 = vmatprep.subr.bf16.mxu0 0
    %3249 = vmatpush1.bf16.msra.mxu0 %v2602
    %3250 = vmatprep.subr.bf16.mxu0 0
    %3251 = vmatpush2.bf16.msra.mxu0 %v2617
    %3252 = vmatprep.subr.bf16.mxu0 0
    %3253 = vmatpush2.bf16.msra.mxu0 %v2616
    %3254 = vmatprep.subr.bf16.mxu0 0
    %3255 = vmatpush2.bf16.msra.mxu0 %v2615
    %3256 = vmatprep.subr.bf16.mxu0 0
    %3257 = vmatpush2.bf16.msra.mxu0 %v2614
    %3258 = vmatprep.subr.bf16.mxu0 0
    %3259 = vmatpush2.bf16.msra.mxu0 %v2613
    %3260 = vmatprep.subr.bf16.mxu0 0
    %3261 = vmatpush2.bf16.msra.mxu0 %v2612
    %3262 = vmatprep.subr.bf16.mxu0 0
    %3263 = vmatpush2.bf16.msra.mxu0 %v2611
    %3264 = vmatprep.subr.bf16.mxu0 0
    %3265 = vmatpush2.bf16.msra.mxu0 %v2610
    %3266 = vmatprep.mubr.bf16.mxu0 %v453
    %3267 = vmatmul.mubr.bf16.gmra.mxu0 %v452
    %v3268 = vpop.f32.mrf.mxu0
    %v3269 = vadd.f32 %v3229, %v3268
    %v3270 = vpop.f32.mrf.mxu0
    %v3271 = vpop.f32.mrf.mxu0
    %v3272 = vpop.f32.mrf.mxu0
    %3273 = vdwg.mxu0
    %3274 = vmatprep.subr.bf16.mxu0 0
    %3275 = vmatpush1.bf16.msra.mxu0 %v2625
    %3276 = vmatprep.subr.bf16.mxu0 0
    %3277 = vmatpush1.bf16.msra.mxu0 %v2624
    %3278 = vmatprep.subr.bf16.mxu0 0
    %3279 = vmatpush1.bf16.msra.mxu0 %v2623
    %3280 = vmatprep.subr.bf16.mxu0 0
    %3281 = vmatpush1.bf16.msra.mxu0 %v2622
    %3282 = vmatprep.subr.bf16.mxu0 0
    %3283 = vmatpush1.bf16.msra.mxu0 %v2621
    %3284 = vmatprep.subr.bf16.mxu0 0
    %3285 = vmatpush1.bf16.msra.mxu0 %v2620
    %3286 = vmatprep.subr.bf16.mxu0 0
    %3287 = vmatpush1.bf16.msra.mxu0 %v2619
    %3288 = vmatprep.subr.bf16.mxu0 0
    %3289 = vmatpush1.bf16.msra.mxu0 %v2618
    %3290 = vmatprep.subr.bf16.mxu0 0
    %3291 = vmatpush2.bf16.msra.mxu0 %v2633
    %3292 = vmatprep.subr.bf16.mxu0 0
    %3293 = vmatpush2.bf16.msra.mxu0 %v2632
    %3294 = vmatprep.subr.bf16.mxu0 0
    %3295 = vmatpush2.bf16.msra.mxu0 %v2631
    %3296 = vmatprep.subr.bf16.mxu0 0
    %3297 = vmatpush2.bf16.msra.mxu0 %v2630
    %3298 = vmatprep.subr.bf16.mxu0 0
    %3299 = vmatpush2.bf16.msra.mxu0 %v2629
    %3300 = vmatprep.subr.bf16.mxu0 0
    %3301 = vmatpush2.bf16.msra.mxu0 %v2628
    %3302 = vmatprep.subr.bf16.mxu0 0
    %3303 = vmatpush2.bf16.msra.mxu0 %v2627
    %3304 = vmatprep.subr.bf16.mxu0 0
    %3305 = vmatpush2.bf16.msra.mxu0 %v2626
    %3306 = vmatprep.mubr.bf16.mxu0 %v455
    %3307 = vmatmul.mubr.bf16.gmra.mxu0 %v454
    %v3308 = vpop.f32.mrf.mxu0
    %v3309 = vadd.f32 %v3269, %v3308
    %v3310 = vpop.f32.mrf.mxu0
    %v3311 = vpop.f32.mrf.mxu0
    %v3312 = vpop.f32.mrf.mxu0
    %3313 = vdwg.mxu0
    %3314 = vmatprep.subr.bf16.mxu0 0
    %3315 = vmatpush1.bf16.msra.mxu0 %v2641
    %3316 = vmatprep.subr.bf16.mxu0 0
    %3317 = vmatpush1.bf16.msra.mxu0 %v2640
    %3318 = vmatprep.subr.bf16.mxu0 0
    %3319 = vmatpush1.bf16.msra.mxu0 %v2639
    %3320 = vmatprep.subr.bf16.mxu0 0
    %3321 = vmatpush1.bf16.msra.mxu0 %v2638
    %3322 = vmatprep.subr.bf16.mxu0 0
    %3323 = vmatpush1.bf16.msra.mxu0 %v2637
    %3324 = vmatprep.subr.bf16.mxu0 0
    %3325 = vmatpush1.bf16.msra.mxu0 %v2636
    %3326 = vmatprep.subr.bf16.mxu0 0
    %3327 = vmatpush1.bf16.msra.mxu0 %v2635
    %3328 = vmatprep.subr.bf16.mxu0 0
    %3329 = vmatpush1.bf16.msra.mxu0 %v2634
    %3330 = vmatprep.subr.bf16.mxu0 0
    %3331 = vmatpush2.bf16.msra.mxu0 %v2649
    %3332 = vmatprep.subr.bf16.mxu0 0
    %3333 = vmatpush2.bf16.msra.mxu0 %v2648
    %3334 = vmatprep.subr.bf16.mxu0 0
    %3335 = vmatpush2.bf16.msra.mxu0 %v2647
    %3336 = vmatprep.subr.bf16.mxu0 0
    %3337 = vmatpush2.bf16.msra.mxu0 %v2646
    %3338 = vmatprep.subr.bf16.mxu0 0
    %3339 = vmatpush2.bf16.msra.mxu0 %v2645
    %3340 = vmatprep.subr.bf16.mxu0 0
    %3341 = vmatpush2.bf16.msra.mxu0 %v2644
    %3342 = vmatprep.subr.bf16.mxu0 0
    %3343 = vmatpush2.bf16.msra.mxu0 %v2643
    %3344 = vmatprep.subr.bf16.mxu0 0
    %3345 = vmatpush2.bf16.msra.mxu0 %v2642
    %3346 = vmatprep.mubr.bf16.mxu0 %v457
    %3347 = vmatmul.mubr.bf16.gmra.mxu0 %v456
    %v3348 = vpop.f32.mrf.mxu0
    %v3349 = vadd.f32 %v3309, %v3348
    %v3350 = vpop.f32.mrf.mxu0
    %v3351 = vpop.f32.mrf.mxu0
    %v3352 = vpop.f32.mrf.mxu0
    %3353 = vdwg.mxu0
    %3354 = vmatprep.subr.bf16.mxu0 0
    %3355 = vmatpush1.bf16.msra.mxu0 %v2657
    %3356 = vmatprep.subr.bf16.mxu0 0
    %3357 = vmatpush1.bf16.msra.mxu0 %v2656
    %3358 = vmatprep.subr.bf16.mxu0 0
    %3359 = vmatpush1.bf16.msra.mxu0 %v2655
    %3360 = vmatprep.subr.bf16.mxu0 0
    %3361 = vmatpush1.bf16.msra.mxu0 %v2654
    %3362 = vmatprep.subr.bf16.mxu0 0
    %3363 = vmatpush1.bf16.msra.mxu0 %v2653
    %3364 = vmatprep.subr.bf16.mxu0 0
    %3365 = vmatpush1.bf16.msra.mxu0 %v2652
    %3366 = vmatprep.subr.bf16.mxu0 0
    %3367 = vmatpush1.bf16.msra.mxu0 %v2651
    %3368 = vmatprep.subr.bf16.mxu0 0
    %3369 = vmatpush1.bf16.msra.mxu0 %v2650
    %3370 = vmatprep.subr.bf16.mxu0 0
    %3371 = vmatpush2.bf16.msra.mxu0 %v2665
    %3372 = vmatprep.subr.bf16.mxu0 0
    %3373 = vmatpush2.bf16.msra.mxu0 %v2664
    %3374 = vmatprep.subr.bf16.mxu0 0
    %3375 = vmatpush2.bf16.msra.mxu0 %v2663
    %3376 = vmatprep.subr.bf16.mxu0 0
    %3377 = vmatpush2.bf16.msra.mxu0 %v2662
    %3378 = vmatprep.subr.bf16.mxu0 0
    %3379 = vmatpush2.bf16.msra.mxu0 %v2661
    %3380 = vmatprep.subr.bf16.mxu0 0
    %3381 = vmatpush2.bf16.msra.mxu0 %v2660
    %3382 = vmatprep.subr.bf16.mxu0 0
    %3383 = vmatpush2.bf16.msra.mxu0 %v2659
    %3384 = vmatprep.subr.bf16.mxu0 0
    %3385 = vmatpush2.bf16.msra.mxu0 %v2658
    %3386 = vmatprep.mubr.bf16.mxu0 %v459
    %3387 = vmatmul.mubr.bf16.gmra.mxu0 %v458
    %v3388 = vpop.f32.mrf.mxu0
    %v3389 = vadd.f32 %v3349, %v3388
    %v3390 = vpop.f32.mrf.mxu0
    %v3391 = vpop.f32.mrf.mxu0
    %v3392 = vpop.f32.mrf.mxu0
    %3393 = vdwg.mxu0
    %3394 = vmatprep.subr.bf16.mxu0 0
    %3395 = vmatpush1.bf16.msra.mxu0 %v2673
    %3396 = vmatprep.subr.bf16.mxu0 0
    %3397 = vmatpush1.bf16.msra.mxu0 %v2672
    %3398 = vmatprep.subr.bf16.mxu0 0
    %3399 = vmatpush1.bf16.msra.mxu0 %v2671
    %3400 = vmatprep.subr.bf16.mxu0 0
    %3401 = vmatpush1.bf16.msra.mxu0 %v2670
    %3402 = vmatprep.subr.bf16.mxu0 0
    %3403 = vmatpush1.bf16.msra.mxu0 %v2669
    %3404 = vmatprep.subr.bf16.mxu0 0
    %3405 = vmatpush1.bf16.msra.mxu0 %v2668
    %3406 = vmatprep.subr.bf16.mxu0 0
    %3407 = vmatpush1.bf16.msra.mxu0 %v2667
    %3408 = vmatprep.subr.bf16.mxu0 0
    %3409 = vmatpush1.bf16.msra.mxu0 %v2666
    %3410 = vmatprep.subr.bf16.mxu0 0
    %3411 = vmatpush2.bf16.msra.mxu0 %v2681
    %3412 = vmatprep.subr.bf16.mxu0 0
    %3413 = vmatpush2.bf16.msra.mxu0 %v2680
    %3414 = vmatprep.subr.bf16.mxu0 0
    %3415 = vmatpush2.bf16.msra.mxu0 %v2679
    %3416 = vmatprep.subr.bf16.mxu0 0
    %3417 = vmatpush2.bf16.msra.mxu0 %v2678
    %3418 = vmatprep.subr.bf16.mxu0 0
    %3419 = vmatpush2.bf16.msra.mxu0 %v2677
    %3420 = vmatprep.subr.bf16.mxu0 0
    %3421 = vmatpush2.bf16.msra.mxu0 %v2676
    %3422 = vmatprep.subr.bf16.mxu0 0
    %3423 = vmatpush2.bf16.msra.mxu0 %v2675
    %3424 = vmatprep.subr.bf16.mxu0 0
    %3425 = vmatpush2.bf16.msra.mxu0 %v2674
    %3426 = vmatprep.mubr.bf16.mxu0 %v461
    %3427 = vmatmul.mubr.bf16.gmra.mxu0 %v460
    %v3428 = vpop.f32.mrf.mxu0
    %v3429 = vadd.f32 %v3389, %v3428
    %v3430 = vpop.f32.mrf.mxu0
    %v3431 = vpop.f32.mrf.mxu0
    %v3432 = vpop.f32.mrf.mxu0
    %3433 = vdwg.mxu0
    %3434 = vmatprep.subr.bf16.mxu0 0
    %3435 = vmatpush1.bf16.msra.mxu0 %v2689
    %3436 = vmatprep.subr.bf16.mxu0 0
    %3437 = vmatpush1.bf16.msra.mxu0 %v2688
    %3438 = vmatprep.subr.bf16.mxu0 0
    %3439 = vmatpush1.bf16.msra.mxu0 %v2687
    %3440 = vmatprep.subr.bf16.mxu0 0
    %3441 = vmatpush1.bf16.msra.mxu0 %v2686
    %3442 = vmatprep.subr.bf16.mxu0 0
    %3443 = vmatpush1.bf16.msra.mxu0 %v2685
    %3444 = vmatprep.subr.bf16.mxu0 0
    %3445 = vmatpush1.bf16.msra.mxu0 %v2684
    %3446 = vmatprep.subr.bf16.mxu0 0
    %3447 = vmatpush1.bf16.msra.mxu0 %v2683
    %3448 = vmatprep.subr.bf16.mxu0 0
    %3449 = vmatpush1.bf16.msra.mxu0 %v2682
    %3450 = vmatprep.subr.bf16.mxu0 0
    %3451 = vmatpush2.bf16.msra.mxu0 %v2697
    %3452 = vmatprep.subr.bf16.mxu0 0
    %3453 = vmatpush2.bf16.msra.mxu0 %v2696
    %3454 = vmatprep.subr.bf16.mxu0 0
    %3455 = vmatpush2.bf16.msra.mxu0 %v2695
    %3456 = vmatprep.subr.bf16.mxu0 0
    %3457 = vmatpush2.bf16.msra.mxu0 %v2694
    %3458 = vmatprep.subr.bf16.mxu0 0
    %3459 = vmatpush2.bf16.msra.mxu0 %v2693
    %3460 = vmatprep.subr.bf16.mxu0 0
    %3461 = vmatpush2.bf16.msra.mxu0 %v2692
    %3462 = vmatprep.subr.bf16.mxu0 0
    %3463 = vmatpush2.bf16.msra.mxu0 %v2691
    %3464 = vmatprep.subr.bf16.mxu0 0
    %3465 = vmatpush2.bf16.msra.mxu0 %v2690
    %3466 = vmatprep.mubr.bf16.mxu0 %v463
    %3467 = vmatmul.mubr.bf16.gmra.mxu0 %v462
    %v3468 = vpop.f32.mrf.mxu0
    %v3469 = vadd.f32 %v3429, %v3468
    %v3470 = vpop.f32.mrf.mxu0
    %v3471 = vpop.f32.mrf.mxu0
    %v3472 = vpop.f32.mrf.mxu0
    %3473 = vdwg.mxu0
    %3474 = vmatprep.subr.bf16.mxu0 0
    %3475 = vmatpush1.bf16.msra.mxu0 %v2705
    %3476 = vmatprep.subr.bf16.mxu0 0
    %3477 = vmatpush1.bf16.msra.mxu0 %v2704
    %3478 = vmatprep.subr.bf16.mxu0 0
    %3479 = vmatpush1.bf16.msra.mxu0 %v2703
    %3480 = vmatprep.subr.bf16.mxu0 0
    %3481 = vmatpush1.bf16.msra.mxu0 %v2702
    %3482 = vmatprep.subr.bf16.mxu0 0
    %3483 = vmatpush1.bf16.msra.mxu0 %v2701
    %3484 = vmatprep.subr.bf16.mxu0 0
    %3485 = vmatpush1.bf16.msra.mxu0 %v2700
    %3486 = vmatprep.subr.bf16.mxu0 0
    %3487 = vmatpush1.bf16.msra.mxu0 %v2699
    %3488 = vmatprep.subr.bf16.mxu0 0
    %3489 = vmatpush1.bf16.msra.mxu0 %v2698
    %3490 = vmatprep.subr.bf16.mxu0 0
    %3491 = vmatpush2.bf16.msra.mxu0 %v2713
    %3492 = vmatprep.subr.bf16.mxu0 0
    %3493 = vmatpush2.bf16.msra.mxu0 %v2712
    %3494 = vmatprep.subr.bf16.mxu0 0
    %3495 = vmatpush2.bf16.msra.mxu0 %v2711
    %3496 = vmatprep.subr.bf16.mxu0 0
    %3497 = vmatpush2.bf16.msra.mxu0 %v2710
    %3498 = vmatprep.subr.bf16.mxu0 0
    %3499 = vmatpush2.bf16.msra.mxu0 %v2709
    %3500 = vmatprep.subr.bf16.mxu0 0
    %3501 = vmatpush2.bf16.msra.mxu0 %v2708
    %3502 = vmatprep.subr.bf16.mxu0 0
    %3503 = vmatpush2.bf16.msra.mxu0 %v2707
    %3504 = vmatprep.subr.bf16.mxu0 0
    %3505 = vmatpush2.bf16.msra.mxu0 %v2706
    %3506 = vmatprep.mubr.bf16.mxu0 %v465
    %3507 = vmatmul.mubr.bf16.gmra.mxu0 %v464
    %v3508 = vpop.f32.mrf.mxu0
    %v3509 = vadd.f32 %v3469, %v3508
    %v3510 = vpop.f32.mrf.mxu0
    %v3511 = vpop.f32.mrf.mxu0
    %v3512 = vpop.f32.mrf.mxu0
    %3513 = vdwg.mxu0
    %3514 = vmatprep.subr.bf16.mxu0 0
    %3515 = vmatpush1.bf16.msra.mxu0 %v2721
    %3516 = vmatprep.subr.bf16.mxu0 0
    %3517 = vmatpush1.bf16.msra.mxu0 %v2720
    %3518 = vmatprep.subr.bf16.mxu0 0
    %3519 = vmatpush1.bf16.msra.mxu0 %v2719
    %3520 = vmatprep.subr.bf16.mxu0 0
    %3521 = vmatpush1.bf16.msra.mxu0 %v2718
    %3522 = vmatprep.subr.bf16.mxu0 0
    %3523 = vmatpush1.bf16.msra.mxu0 %v2717
    %3524 = vmatprep.subr.bf16.mxu0 0
    %3525 = vmatpush1.bf16.msra.mxu0 %v2716
    %3526 = vmatprep.subr.bf16.mxu0 0
    %3527 = vmatpush1.bf16.msra.mxu0 %v2715
    %3528 = vmatprep.subr.bf16.mxu0 0
    %3529 = vmatpush1.bf16.msra.mxu0 %v2714
    %3530 = vmatprep.subr.bf16.mxu0 0
    %3531 = vmatpush2.bf16.msra.mxu0 %v2729
    %3532 = vmatprep.subr.bf16.mxu0 0
    %3533 = vmatpush2.bf16.msra.mxu0 %v2728
    %3534 = vmatprep.subr.bf16.mxu0 0
    %3535 = vmatpush2.bf16.msra.mxu0 %v2727
    %3536 = vmatprep.subr.bf16.mxu0 0
    %3537 = vmatpush2.bf16.msra.mxu0 %v2726
    %3538 = vmatprep.subr.bf16.mxu0 0
    %3539 = vmatpush2.bf16.msra.mxu0 %v2725
    %3540 = vmatprep.subr.bf16.mxu0 0
    %3541 = vmatpush2.bf16.msra.mxu0 %v2724
    %3542 = vmatprep.subr.bf16.mxu0 0
    %3543 = vmatpush2.bf16.msra.mxu0 %v2723
    %3544 = vmatprep.subr.bf16.mxu0 0
    %3545 = vmatpush2.bf16.msra.mxu0 %v2722
    %3546 = vmatprep.mubr.bf16.mxu0 %v467
    %3547 = vmatmul.mubr.bf16.gmra.mxu0 %v466
    %v3548 = vpop.f32.mrf.mxu0
    %v3549 = vadd.f32 %v3509, %v3548
    %v3550 = vpop.f32.mrf.mxu0
    %v3551 = vpop.f32.mrf.mxu0
    %v3552 = vpop.f32.mrf.mxu0
    %3553 = vdwg.mxu0
    %3554 = vmatprep.subr.bf16.mxu0 0
    %3555 = vmatpush1.bf16.msra.mxu0 %v2737
    %3556 = vmatprep.subr.bf16.mxu0 0
    %3557 = vmatpush1.bf16.msra.mxu0 %v2736
    %3558 = vmatprep.subr.bf16.mxu0 0
    %3559 = vmatpush1.bf16.msra.mxu0 %v2735
    %3560 = vmatprep.subr.bf16.mxu0 0
    %3561 = vmatpush1.bf16.msra.mxu0 %v2734
    %3562 = vmatprep.subr.bf16.mxu0 0
    %3563 = vmatpush1.bf16.msra.mxu0 %v2733
    %3564 = vmatprep.subr.bf16.mxu0 0
    %3565 = vmatpush1.bf16.msra.mxu0 %v2732
    %3566 = vmatprep.subr.bf16.mxu0 0
    %3567 = vmatpush1.bf16.msra.mxu0 %v2731
    %3568 = vmatprep.subr.bf16.mxu0 0
    %3569 = vmatpush1.bf16.msra.mxu0 %v2730
    %3570 = vmatprep.subr.bf16.mxu0 0
    %3571 = vmatpush2.bf16.msra.mxu0 %v2745
    %3572 = vmatprep.subr.bf16.mxu0 0
    %3573 = vmatpush2.bf16.msra.mxu0 %v2744
    %3574 = vmatprep.subr.bf16.mxu0 0
    %3575 = vmatpush2.bf16.msra.mxu0 %v2743
    %3576 = vmatprep.subr.bf16.mxu0 0
    %3577 = vmatpush2.bf16.msra.mxu0 %v2742
    %3578 = vmatprep.subr.bf16.mxu0 0
    %3579 = vmatpush2.bf16.msra.mxu0 %v2741
    %3580 = vmatprep.subr.bf16.mxu0 0
    %3581 = vmatpush2.bf16.msra.mxu0 %v2740
    %3582 = vmatprep.subr.bf16.mxu0 0
    %3583 = vmatpush2.bf16.msra.mxu0 %v2739
    %3584 = vmatprep.subr.bf16.mxu0 0
    %3585 = vmatpush2.bf16.msra.mxu0 %v2738
    %3586 = vmatprep.mubr.bf16.mxu0 %v469
    %3587 = vmatmul.mubr.bf16.gmra.mxu0 %v468
    %v3588 = vpop.f32.mrf.mxu0
    %v3589 = vadd.f32 %v3549, %v3588
    %v3590 = vpop.f32.mrf.mxu0
    %v3591 = vpop.f32.mrf.mxu0
    %v3592 = vpop.f32.mrf.mxu0
    %3593 = vdwg.mxu0
    %3594 = vmatprep.subr.bf16.mxu0 0
    %3595 = vmatpush1.bf16.msra.mxu0 %v2753
    %3596 = vmatprep.subr.bf16.mxu0 0
    %3597 = vmatpush1.bf16.msra.mxu0 %v2752
    %3598 = vmatprep.subr.bf16.mxu0 0
    %3599 = vmatpush1.bf16.msra.mxu0 %v2751
    %3600 = vmatprep.subr.bf16.mxu0 0
    %3601 = vmatpush1.bf16.msra.mxu0 %v2750
    %3602 = vmatprep.subr.bf16.mxu0 0
    %3603 = vmatpush1.bf16.msra.mxu0 %v2749
    %3604 = vmatprep.subr.bf16.mxu0 0
    %3605 = vmatpush1.bf16.msra.mxu0 %v2748
    %3606 = vmatprep.subr.bf16.mxu0 0
    %3607 = vmatpush1.bf16.msra.mxu0 %v2747
    %3608 = vmatprep.subr.bf16.mxu0 0
    %3609 = vmatpush1.bf16.msra.mxu0 %v2746
    %3610 = vmatprep.subr.bf16.mxu0 0
    %3611 = vmatpush2.bf16.msra.mxu0 %v2761
    %3612 = vmatprep.subr.bf16.mxu0 0
    %3613 = vmatpush2.bf16.msra.mxu0 %v2760
    %3614 = vmatprep.subr.bf16.mxu0 0
    %3615 = vmatpush2.bf16.msra.mxu0 %v2759
    %3616 = vmatprep.subr.bf16.mxu0 0
    %3617 = vmatpush2.bf16.msra.mxu0 %v2758
    %3618 = vmatprep.subr.bf16.mxu0 0
    %3619 = vmatpush2.bf16.msra.mxu0 %v2757
    %3620 = vmatprep.subr.bf16.mxu0 0
    %3621 = vmatpush2.bf16.msra.mxu0 %v2756
    %3622 = vmatprep.subr.bf16.mxu0 0
    %3623 = vmatpush2.bf16.msra.mxu0 %v2755
    %3624 = vmatprep.subr.bf16.mxu0 0
    %3625 = vmatpush2.bf16.msra.mxu0 %v2754
    %3626 = vmatprep.mubr.bf16.mxu0 %v471
    %3627 = vmatmul.mubr.bf16.gmra.mxu0 %v470
    %v3628 = vpop.f32.mrf.mxu0
    %v3629 = vadd.f32 %v3589, %v3628
    %v3630 = vpop.f32.mrf.mxu0
    %v3631 = vpop.f32.mrf.mxu0
    %v3632 = vpop.f32.mrf.mxu0
    %3633 = vdwg.mxu0
    %3634 = vmatprep.subr.bf16.mxu0 0
    %3635 = vmatpush1.bf16.msra.mxu0 %v2769
    %3636 = vmatprep.subr.bf16.mxu0 0
    %3637 = vmatpush1.bf16.msra.mxu0 %v2768
    %3638 = vmatprep.subr.bf16.mxu0 0
    %3639 = vmatpush1.bf16.msra.mxu0 %v2767
    %3640 = vmatprep.subr.bf16.mxu0 0
    %3641 = vmatpush1.bf16.msra.mxu0 %v2766
    %3642 = vmatprep.subr.bf16.mxu0 0
    %3643 = vmatpush1.bf16.msra.mxu0 %v2765
    %3644 = vmatprep.subr.bf16.mxu0 0
    %3645 = vmatpush1.bf16.msra.mxu0 %v2764
    %3646 = vmatprep.subr.bf16.mxu0 0
    %3647 = vmatpush1.bf16.msra.mxu0 %v2763
    %3648 = vmatprep.subr.bf16.mxu0 0
    %3649 = vmatpush1.bf16.msra.mxu0 %v2762
    %3650 = vmatprep.subr.bf16.mxu0 0
    %3651 = vmatpush2.bf16.msra.mxu0 %v2777
    %3652 = vmatprep.subr.bf16.mxu0 0
    %3653 = vmatpush2.bf16.msra.mxu0 %v2776
    %3654 = vmatprep.subr.bf16.mxu0 0
    %3655 = vmatpush2.bf16.msra.mxu0 %v2775
    %3656 = vmatprep.subr.bf16.mxu0 0
    %3657 = vmatpush2.bf16.msra.mxu0 %v2774
    %3658 = vmatprep.subr.bf16.mxu0 0
    %3659 = vmatpush2.bf16.msra.mxu0 %v2773
    %3660 = vmatprep.subr.bf16.mxu0 0
    %3661 = vmatpush2.bf16.msra.mxu0 %v2772
    %3662 = vmatprep.subr.bf16.mxu0 0
    %3663 = vmatpush2.bf16.msra.mxu0 %v2771
    %3664 = vmatprep.subr.bf16.mxu0 0
    %3665 = vmatpush2.bf16.msra.mxu0 %v2770
    %3666 = vmatprep.mubr.bf16.mxu0 %v473
    %3667 = vmatmul.mubr.bf16.gmra.mxu0 %v472
    %v3668 = vpop.f32.mrf.mxu0
    %v3669 = vadd.f32 %v3629, %v3668
    %v3670 = vpop.f32.mrf.mxu0
    %v3671 = vpop.f32.mrf.mxu0
    %v3672 = vpop.f32.mrf.mxu0
    %3673 = vdwg.mxu0
    %v4186 = vunpack.c.l.b16 %v474
    %v4187 = vunpack.c.l.b16 %v475
    %v4188 = vunpack.c.l.b16 %v476
    %v4189 = vunpack.c.l.b16 %v477
    %v4190 = vunpack.c.l.b16 %v478
    %v4191 = vunpack.c.l.b16 %v479
    %v4192 = vunpack.c.l.b16 %v480
    %v4193 = vunpack.c.l.b16 %v481
    %v4194 = vunpack.c.l.b16 %v482
    %v4195 = vunpack.c.l.b16 %v483
    %v4196 = vunpack.c.l.b16 %v484
    %v4197 = vunpack.c.l.b16 %v485
    %v4198 = vunpack.c.l.b16 %v486
    %v4199 = vunpack.c.l.b16 %v487
    %v4200 = vunpack.c.l.b16 %v488
    %v4201 = vunpack.c.l.b16 %v489
    %v4202 = vunpack.c.l.b16 %v490
    %v4203 = vunpack.c.l.b16 %v491
    %v4204 = vunpack.c.l.b16 %v492
    %v4205 = vunpack.c.l.b16 %v493
    %v4206 = vunpack.c.l.b16 %v494
    %v4207 = vunpack.c.l.b16 %v495
    %v4208 = vunpack.c.l.b16 %v496
    %v4209 = vunpack.c.l.b16 %v497
    %v4210 = vunpack.c.l.b16 %v498
    %v4211 = vunpack.c.l.b16 %v499
    %v4212 = vunpack.c.l.b16 %v500
    %v4213 = vunpack.c.l.b16 %v501
    %v4214 = vunpack.c.l.b16 %v502
    %v4215 = vunpack.c.l.b16 %v503
    %v4216 = vunpack.c.l.b16 %v504
    %v4217 = vunpack.c.l.b16 %v505
    %v4218 = vunpack.c.l.b16 %v506
    %v4219 = vunpack.c.l.b16 %v507
    %v4220 = vunpack.c.l.b16 %v508
    %v4221 = vunpack.c.l.b16 %v509
    %v4222 = vunpack.c.l.b16 %v510
    %v4223 = vunpack.c.l.b16 %v511
    %v4224 = vunpack.c.l.b16 %v512
    %v4225 = vunpack.c.l.b16 %v513
    %v4226 = vunpack.c.l.b16 %v514
    %v4227 = vunpack.c.l.b16 %v515
    %v4228 = vunpack.c.l.b16 %v516
    %v4229 = vunpack.c.l.b16 %v517
    %v4230 = vunpack.c.l.b16 %v518
    %v4231 = vunpack.c.l.b16 %v519
    %v4232 = vunpack.c.l.b16 %v520
    %v4233 = vunpack.c.l.b16 %v521
    %v4234 = vunpack.c.l.b16 %v522
    %v4235 = vunpack.c.l.b16 %v523
    %v4236 = vunpack.c.l.b16 %v524
    %v4237 = vunpack.c.l.b16 %v525
    %v4238 = vunpack.c.l.b16 %v526
    %v4239 = vunpack.c.l.b16 %v527
    %v4240 = vunpack.c.l.b16 %v528
    %v4241 = vunpack.c.l.b16 %v529
    %v4242 = vunpack.c.l.b16 %v530
    %v4243 = vunpack.c.l.b16 %v531
    %v4244 = vunpack.c.l.b16 %v532
    %v4245 = vunpack.c.l.b16 %v533
    %v4246 = vunpack.c.l.b16 %v534
    %v4247 = vunpack.c.l.b16 %v535
    %v4248 = vunpack.c.l.b16 %v536
    %v4249 = vunpack.c.l.b16 %v537
    %v4250 = vunpack.c.l.b16 %v538
    %v4251 = vunpack.c.l.b16 %v539
    %v4252 = vunpack.c.l.b16 %v540
    %v4253 = vunpack.c.l.b16 %v541
    %v4254 = vunpack.c.l.b16 %v542
    %v4255 = vunpack.c.l.b16 %v543
    %v4256 = vunpack.c.l.b16 %v544
    %v4257 = vunpack.c.l.b16 %v545
    %v4258 = vunpack.c.l.b16 %v546
    %v4259 = vunpack.c.l.b16 %v547
    %v4260 = vunpack.c.l.b16 %v548
    %v4261 = vunpack.c.l.b16 %v549
    %v4262 = vunpack.c.l.b16 %v550
    %v4263 = vunpack.c.l.b16 %v551
    %v4264 = vunpack.c.l.b16 %v552
    %v4265 = vunpack.c.l.b16 %v553
    %v4266 = vunpack.c.l.b16 %v554
    %v4267 = vunpack.c.l.b16 %v555
    %v4268 = vunpack.c.l.b16 %v556
    %v4269 = vunpack.c.l.b16 %v557
    %v4270 = vunpack.c.l.b16 %v558
    %v4271 = vunpack.c.l.b16 %v559
    %v4272 = vunpack.c.l.b16 %v560
    %v4273 = vunpack.c.l.b16 %v561
    %v4274 = vunpack.c.l.b16 %v562
    %v4275 = vunpack.c.l.b16 %v563
    %v4276 = vunpack.c.l.b16 %v564
    %v4277 = vunpack.c.l.b16 %v565
    %v4278 = vunpack.c.l.b16 %v566
    %v4279 = vunpack.c.l.b16 %v567
    %v4280 = vunpack.c.l.b16 %v568
    %v4281 = vunpack.c.l.b16 %v569
    %v4282 = vunpack.c.l.b16 %v570
    %v4283 = vunpack.c.l.b16 %v571
    %v4284 = vunpack.c.l.b16 %v572
    %v4285 = vunpack.c.l.b16 %v573
    %v4286 = vunpack.c.l.b16 %v574
    %v4287 = vunpack.c.l.b16 %v575
    %v4288 = vunpack.c.l.b16 %v576
    %v4289 = vunpack.c.l.b16 %v577
    %v4290 = vunpack.c.l.b16 %v578
    %v4291 = vunpack.c.l.b16 %v579
    %v4292 = vunpack.c.l.b16 %v580
    %v4293 = vunpack.c.l.b16 %v581
    %v4294 = vunpack.c.l.b16 %v582
    %v4295 = vunpack.c.l.b16 %v583
    %v4296 = vunpack.c.l.b16 %v584
    %v4297 = vunpack.c.l.b16 %v585
    %v4298 = vunpack.c.l.b16 %v586
    %v4299 = vunpack.c.l.b16 %v587
    %v4300 = vunpack.c.l.b16 %v588
    %v4301 = vunpack.c.l.b16 %v589
    %v4302 = vunpack.c.l.b16 %v590
    %v4303 = vunpack.c.l.b16 %v591
    %v4304 = vunpack.c.l.b16 %v592
    %v4305 = vunpack.c.l.b16 %v593
    %v4306 = vunpack.c.l.b16 %v594
    %v4307 = vunpack.c.l.b16 %v595
    %v4308 = vunpack.c.l.b16 %v596
    %v4309 = vunpack.c.l.b16 %v597
    %v4310 = vunpack.c.l.b16 %v598
    %v4311 = vunpack.c.l.b16 %v599
    %v4312 = vunpack.c.l.b16 %v600
    %v4313 = vunpack.c.l.b16 %v601
    %v4314 = vunpack.c.l.b16 %v602
    %v4315 = vunpack.c.l.b16 %v603
    %v4316 = vunpack.c.l.b16 %v604
    %v4317 = vunpack.c.l.b16 %v605
    %v4318 = vunpack.c.l.b16 %v606
    %v4319 = vunpack.c.l.b16 %v607
    %v4320 = vunpack.c.l.b16 %v608
    %v4321 = vunpack.c.l.b16 %v609
    %v4322 = vunpack.c.l.b16 %v610
    %v4323 = vunpack.c.l.b16 %v611
    %v4324 = vunpack.c.l.b16 %v612
    %v4325 = vunpack.c.l.b16 %v613
    %v4326 = vunpack.c.l.b16 %v614
    %v4327 = vunpack.c.l.b16 %v615
    %v4328 = vunpack.c.l.b16 %v616
    %v4329 = vunpack.c.l.b16 %v617
    %v4330 = vunpack.c.l.b16 %v618
    %v4331 = vunpack.c.l.b16 %v619
    %v4332 = vunpack.c.l.b16 %v620
    %v4333 = vunpack.c.l.b16 %v621
    %v4334 = vunpack.c.l.b16 %v622
    %v4335 = vunpack.c.l.b16 %v623
    %v4336 = vunpack.c.l.b16 %v624
    %v4337 = vunpack.c.l.b16 %v625
    %v4338 = vunpack.c.l.b16 %v626
    %v4339 = vunpack.c.l.b16 %v627
    %v4340 = vunpack.c.l.b16 %v628
    %v4341 = vunpack.c.l.b16 %v629
    %v4342 = vunpack.c.l.b16 %v630
    %v4343 = vunpack.c.l.b16 %v631
    %v4344 = vunpack.c.l.b16 %v632
    %v4345 = vunpack.c.l.b16 %v633
    %v4346 = vunpack.c.l.b16 %v634
    %v4347 = vunpack.c.l.b16 %v635
    %v4348 = vunpack.c.l.b16 %v636
    %v4349 = vunpack.c.l.b16 %v637
    %v4350 = vunpack.c.l.b16 %v638
    %v4351 = vunpack.c.l.b16 %v639
    %v4352 = vunpack.c.l.b16 %v640
    %v4353 = vunpack.c.l.b16 %v641
    %v4354 = vunpack.c.l.b16 %v642
    %v4355 = vunpack.c.l.b16 %v643
    %v4356 = vunpack.c.l.b16 %v644
    %v4357 = vunpack.c.l.b16 %v645
    %v4358 = vunpack.c.l.b16 %v646
    %v4359 = vunpack.c.l.b16 %v647
    %v4360 = vunpack.c.l.b16 %v648
    %v4361 = vunpack.c.l.b16 %v649
    %v4362 = vunpack.c.l.b16 %v650
    %v4363 = vunpack.c.l.b16 %v651
    %v4364 = vunpack.c.l.b16 %v652
    %v4365 = vunpack.c.l.b16 %v653
    %v4366 = vunpack.c.l.b16 %v654
    %v4367 = vunpack.c.l.b16 %v655
    %v4368 = vunpack.c.l.b16 %v656
    %v4369 = vunpack.c.l.b16 %v657
    %v4370 = vunpack.c.l.b16 %v658
    %v4371 = vunpack.c.l.b16 %v659
    %v4372 = vunpack.c.l.b16 %v660
    %v4373 = vunpack.c.l.b16 %v661
    %v4374 = vunpack.c.l.b16 %v662
    %v4375 = vunpack.c.l.b16 %v663
    %v4376 = vunpack.c.l.b16 %v664
    %v4377 = vunpack.c.l.b16 %v665
    %v4378 = vunpack.c.l.b16 %v666
    %v4379 = vunpack.c.l.b16 %v667
    %v4380 = vunpack.c.l.b16 %v668
    %v4381 = vunpack.c.l.b16 %v669
    %v4382 = vunpack.c.l.b16 %v670
    %v4383 = vunpack.c.l.b16 %v671
    %v4384 = vunpack.c.l.b16 %v672
    %v4385 = vunpack.c.l.b16 %v673
    %v4386 = vunpack.c.l.b16 %v674
    %v4387 = vunpack.c.l.b16 %v675
    %v4388 = vunpack.c.l.b16 %v676
    %v4389 = vunpack.c.l.b16 %v677
    %v4390 = vunpack.c.l.b16 %v678
    %v4391 = vunpack.c.l.b16 %v679
    %v4392 = vunpack.c.l.b16 %v680
    %v4393 = vunpack.c.l.b16 %v681
    %v4394 = vunpack.c.l.b16 %v682
    %v4395 = vunpack.c.l.b16 %v683
    %v4396 = vunpack.c.l.b16 %v684
    %v4397 = vunpack.c.l.b16 %v685
    %v4398 = vunpack.c.l.b16 %v686
    %v4399 = vunpack.c.l.b16 %v687
    %v4400 = vunpack.c.l.b16 %v688
    %v4401 = vunpack.c.l.b16 %v689
    %v4402 = vunpack.c.l.b16 %v690
    %v4403 = vunpack.c.l.b16 %v691
    %v4404 = vunpack.c.l.b16 %v692
    %v4405 = vunpack.c.l.b16 %v693
    %v4406 = vunpack.c.l.b16 %v694
    %v4407 = vunpack.c.l.b16 %v695
    %v4408 = vunpack.c.l.b16 %v696
    %v4409 = vunpack.c.l.b16 %v697
    %v4410 = vunpack.c.l.b16 %v698
    %v4411 = vunpack.c.l.b16 %v699
    %v4412 = vunpack.c.l.b16 %v700
    %v4413 = vunpack.c.l.b16 %v701
    %v4414 = vunpack.c.l.b16 %v702
    %v4415 = vunpack.c.l.b16 %v703
    %v4416 = vunpack.c.l.b16 %v704
    %v4417 = vunpack.c.l.b16 %v705
    %v4418 = vunpack.c.l.b16 %v706
    %v4419 = vunpack.c.l.b16 %v707
    %v4420 = vunpack.c.l.b16 %v708
    %v4421 = vunpack.c.l.b16 %v709
    %v4422 = vunpack.c.l.b16 %v710
    %v4423 = vunpack.c.l.b16 %v711
    %v4424 = vunpack.c.l.b16 %v712
    %v4425 = vunpack.c.l.b16 %v713
    %v4426 = vunpack.c.l.b16 %v714
    %v4427 = vunpack.c.l.b16 %v715
    %v4428 = vunpack.c.l.b16 %v716
    %v4429 = vunpack.c.l.b16 %v717
    %v4430 = vunpack.c.l.b16 %v718
    %v4431 = vunpack.c.l.b16 %v719
    %v4432 = vunpack.c.l.b16 %v720
    %v4433 = vunpack.c.l.b16 %v721
    %v4434 = vunpack.c.l.b16 %v722
    %v4435 = vunpack.c.l.b16 %v723
    %v4436 = vunpack.c.l.b16 %v724
    %v4437 = vunpack.c.l.b16 %v725
    %v4438 = vunpack.c.l.b16 %v726
    %v4439 = vunpack.c.l.b16 %v727
    %v4440 = vunpack.c.l.b16 %v728
    %v4441 = vunpack.c.l.b16 %v729
    %v4442 = vunpack.c.l.b16 %v730
    %v4443 = vunpack.c.l.b16 %v731
    %v4444 = vunpack.c.l.b16 %v732
    %v4445 = vunpack.c.l.b16 %v733
    %v4446 = vunpack.c.l.b16 %v734
    %v4447 = vunpack.c.l.b16 %v735
    %v4448 = vunpack.c.l.b16 %v736
    %v4449 = vunpack.c.l.b16 %v737
    %v4450 = vunpack.c.l.b16 %v738
    %v4451 = vunpack.c.l.b16 %v739
    %v4452 = vunpack.c.l.b16 %v740
    %v4453 = vunpack.c.l.b16 %v741
    %v4454 = vunpack.c.l.b16 %v742
    %v4455 = vunpack.c.l.b16 %v743
    %v4456 = vunpack.c.l.b16 %v744
    %v4457 = vunpack.c.l.b16 %v745
    %v4458 = vunpack.c.l.b16 %v746
    %v4459 = vunpack.c.l.b16 %v747
    %v4460 = vunpack.c.l.b16 %v748
    %v4461 = vunpack.c.l.b16 %v749
    %v4462 = vunpack.c.l.b16 %v750
    %v4463 = vunpack.c.l.b16 %v751
    %v4464 = vunpack.c.l.b16 %v752
    %v4465 = vunpack.c.l.b16 %v753
    %v4466 = vunpack.c.l.b16 %v754
    %v4467 = vunpack.c.l.b16 %v755
    %v4468 = vunpack.c.l.b16 %v756
    %v4469 = vunpack.c.l.b16 %v757
    %v4470 = vunpack.c.l.b16 %v758
    %v4471 = vunpack.c.l.b16 %v759
    %v4472 = vunpack.c.l.b16 %v760
    %v4473 = vunpack.c.l.b16 %v761
    %v4474 = vunpack.c.l.b16 %v762
    %v4475 = vunpack.c.l.b16 %v763
    %v4476 = vunpack.c.l.b16 %v764
    %v4477 = vunpack.c.l.b16 %v765
    %v4478 = vunpack.c.l.b16 %v766
    %v4479 = vunpack.c.l.b16 %v767
    %v4480 = vunpack.c.l.b16 %v768
    %v4481 = vunpack.c.l.b16 %v769
    %v4482 = vunpack.c.l.b16 %v770
    %v4483 = vunpack.c.l.b16 %v771
    %v4484 = vunpack.c.l.b16 %v772
    %v4485 = vunpack.c.l.b16 %v773
    %v4486 = vunpack.c.l.b16 %v774
    %v4487 = vunpack.c.l.b16 %v775
    %v4488 = vunpack.c.l.b16 %v776
    %v4489 = vunpack.c.l.b16 %v777
    %v4490 = vunpack.c.l.b16 %v778
    %v4491 = vunpack.c.l.b16 %v779
    %v4492 = vunpack.c.l.b16 %v780
    %v4493 = vunpack.c.l.b16 %v781
    %v4494 = vunpack.c.l.b16 %v782
    %v4495 = vunpack.c.l.b16 %v783
    %v4496 = vunpack.c.l.b16 %v784
    %v4497 = vunpack.c.l.b16 %v785
    %v4498 = vunpack.c.l.b16 %v786
    %v4499 = vunpack.c.l.b16 %v787
    %v4500 = vunpack.c.l.b16 %v788
    %v4501 = vunpack.c.l.b16 %v789
    %v4502 = vunpack.c.l.b16 %v790
    %v4503 = vunpack.c.l.b16 %v791
    %v4504 = vunpack.c.l.b16 %v792
    %v4505 = vunpack.c.l.b16 %v793
    %v4506 = vunpack.c.l.b16 %v794
    %v4507 = vunpack.c.l.b16 %v795
    %v4508 = vunpack.c.l.b16 %v796
    %v4509 = vunpack.c.l.b16 %v797
    %v4510 = vunpack.c.l.b16 %v798
    %v4511 = vunpack.c.l.b16 %v799
    %v4512 = vunpack.c.l.b16 %v800
    %v4513 = vunpack.c.l.b16 %v801
    %v4514 = vunpack.c.l.b16 %v802
    %v4515 = vunpack.c.l.b16 %v803
    %v4516 = vunpack.c.l.b16 %v804
    %v4517 = vunpack.c.l.b16 %v805
    %v4518 = vunpack.c.l.b16 %v806
    %v4519 = vunpack.c.l.b16 %v807
    %v4520 = vunpack.c.l.b16 %v808
    %v4521 = vunpack.c.l.b16 %v809
    %v4522 = vunpack.c.l.b16 %v810
    %v4523 = vunpack.c.l.b16 %v811
    %v4524 = vunpack.c.l.b16 %v812
    %v4525 = vunpack.c.l.b16 %v813
    %v4526 = vunpack.c.l.b16 %v814
    %v4527 = vunpack.c.l.b16 %v815
    %v4528 = vunpack.c.l.b16 %v816
    %v4529 = vunpack.c.l.b16 %v817
    %v4530 = vunpack.c.l.b16 %v818
    %v4531 = vunpack.c.l.b16 %v819
    %v4532 = vunpack.c.l.b16 %v820
    %v4533 = vunpack.c.l.b16 %v821
    %v4534 = vunpack.c.l.b16 %v822
    %v4535 = vunpack.c.l.b16 %v823
    %v4536 = vunpack.c.l.b16 %v824
    %v4537 = vunpack.c.l.b16 %v825
    %v4538 = vunpack.c.l.b16 %v826
    %v4539 = vunpack.c.l.b16 %v827
    %v4540 = vunpack.c.l.b16 %v828
    %v4541 = vunpack.c.l.b16 %v829
    %v4542 = vunpack.c.l.b16 %v830
    %v4543 = vunpack.c.l.b16 %v831
    %v4544 = vunpack.c.l.b16 %v832
    %v4545 = vunpack.c.l.b16 %v833
    %v4546 = vunpack.c.l.b16 %v834
    %v4547 = vunpack.c.l.b16 %v835
    %v4548 = vunpack.c.l.b16 %v836
    %v4549 = vunpack.c.l.b16 %v837
    %v4550 = vunpack.c.l.b16 %v838
    %v4551 = vunpack.c.l.b16 %v839
    %v4552 = vunpack.c.l.b16 %v840
    %v4553 = vunpack.c.l.b16 %v841
    %v4554 = vunpack.c.l.b16 %v842
    %v4555 = vunpack.c.l.b16 %v843
    %v4556 = vunpack.c.l.b16 %v844
    %v4557 = vunpack.c.l.b16 %v845
    %v4558 = vunpack.c.l.b16 %v846
    %v4559 = vunpack.c.l.b16 %v847
    %v4560 = vunpack.c.l.b16 %v848
    %v4561 = vunpack.c.l.b16 %v849
    %v4562 = vunpack.c.l.b16 %v850
    %v4563 = vunpack.c.l.b16 %v851
    %v4564 = vunpack.c.l.b16 %v852
    %v4565 = vunpack.c.l.b16 %v853
    %v4566 = vunpack.c.l.b16 %v854
    %v4567 = vunpack.c.l.b16 %v855
    %v4568 = vunpack.c.l.b16 %v856
    %v4569 = vunpack.c.l.b16 %v857
    %v4570 = vunpack.c.l.b16 %v858
    %v4571 = vunpack.c.l.b16 %v859
    %v4572 = vunpack.c.l.b16 %v860
    %v4573 = vunpack.c.l.b16 %v861
    %v4574 = vunpack.c.l.b16 %v862
    %v4575 = vunpack.c.l.b16 %v863
    %v4576 = vunpack.c.l.b16 %v864
    %v4577 = vunpack.c.l.b16 %v865
    %v4578 = vunpack.c.l.b16 %v866
    %v4579 = vunpack.c.l.b16 %v867
    %v4580 = vunpack.c.l.b16 %v868
    %v4581 = vunpack.c.l.b16 %v869
    %v4582 = vunpack.c.l.b16 %v870
    %v4583 = vunpack.c.l.b16 %v871
    %v4584 = vunpack.c.l.b16 %v872
    %v4585 = vunpack.c.l.b16 %v873
    %v4586 = vunpack.c.l.b16 %v874
    %v4587 = vunpack.c.l.b16 %v875
    %v4588 = vunpack.c.l.b16 %v876
    %v4589 = vunpack.c.l.b16 %v877
    %v4590 = vunpack.c.l.b16 %v878
    %v4591 = vunpack.c.l.b16 %v879
    %v4592 = vunpack.c.l.b16 %v880
    %v4593 = vunpack.c.l.b16 %v881
    %v4594 = vunpack.c.l.b16 %v882
    %v4595 = vunpack.c.l.b16 %v883
    %v4596 = vunpack.c.l.b16 %v884
    %v4597 = vunpack.c.l.b16 %v885
    %v4598 = vunpack.c.l.b16 %v886
    %v4599 = vunpack.c.l.b16 %v887
    %v4600 = vunpack.c.l.b16 %v888
    %v4601 = vunpack.c.l.b16 %v889
    %v4602 = vunpack.c.l.b16 %v890
    %v4603 = vunpack.c.l.b16 %v891
    %v4604 = vunpack.c.l.b16 %v892
    %v4605 = vunpack.c.l.b16 %v893
    %v4606 = vunpack.c.l.b16 %v894
    %v4607 = vunpack.c.l.b16 %v895
    %v4608 = vunpack.c.l.b16 %v896
    %v4609 = vunpack.c.l.b16 %v897
    %v4610 = vunpack.c.l.b16 %v898
    %v4611 = vunpack.c.l.b16 %v899
    %v4612 = vunpack.c.l.b16 %v900
    %v4613 = vunpack.c.l.b16 %v901
    %v4614 = vunpack.c.l.b16 %v902
    %v4615 = vunpack.c.l.b16 %v903
    %v4616 = vunpack.c.l.b16 %v904
    %v4617 = vunpack.c.l.b16 %v905
    %v4618 = vunpack.c.l.b16 %v906
    %v4619 = vunpack.c.l.b16 %v907
    %v4620 = vunpack.c.l.b16 %v908
    %v4621 = vunpack.c.l.b16 %v909
    %v4622 = vunpack.c.l.b16 %v910
    %v4623 = vunpack.c.l.b16 %v911
    %v4624 = vunpack.c.l.b16 %v912
    %v4625 = vunpack.c.l.b16 %v913
    %v4626 = vunpack.c.l.b16 %v914
    %v4627 = vunpack.c.l.b16 %v915
    %v4628 = vunpack.c.l.b16 %v916
    %v4629 = vunpack.c.l.b16 %v917
    %v4630 = vunpack.c.l.b16 %v918
    %v4631 = vunpack.c.l.b16 %v919
    %v4632 = vunpack.c.l.b16 %v920
    %v4633 = vunpack.c.l.b16 %v921
    %v4634 = vunpack.c.l.b16 %v922
    %v4635 = vunpack.c.l.b16 %v923
    %v4636 = vunpack.c.l.b16 %v924
    %v4637 = vunpack.c.l.b16 %v925
    %v4638 = vunpack.c.l.b16 %v926
    %v4639 = vunpack.c.l.b16 %v927
    %v4640 = vunpack.c.l.b16 %v928
    %v4641 = vunpack.c.l.b16 %v929
    %v4642 = vunpack.c.l.b16 %v930
    %v4643 = vunpack.c.l.b16 %v931
    %v4644 = vunpack.c.l.b16 %v932
    %v4645 = vunpack.c.l.b16 %v933
    %v4646 = vunpack.c.l.b16 %v934
    %v4647 = vunpack.c.l.b16 %v935
    %v4648 = vunpack.c.l.b16 %v936
    %v4649 = vunpack.c.l.b16 %v937
    %v4650 = vunpack.c.l.b16 %v938
    %v4651 = vunpack.c.l.b16 %v939
    %v4652 = vunpack.c.l.b16 %v940
    %v4653 = vunpack.c.l.b16 %v941
    %v4654 = vunpack.c.l.b16 %v942
    %v4655 = vunpack.c.l.b16 %v943
    %v4656 = vunpack.c.l.b16 %v944
    %v4657 = vunpack.c.l.b16 %v945
    %v4658 = vunpack.c.l.b16 %v946
    %v4659 = vunpack.c.l.b16 %v947
    %v4660 = vunpack.c.l.b16 %v948
    %v4661 = vunpack.c.l.b16 %v949
    %v4662 = vunpack.c.l.b16 %v950
    %v4663 = vunpack.c.l.b16 %v951
    %v4664 = vunpack.c.l.b16 %v952
    %v4665 = vunpack.c.l.b16 %v953
    %v4666 = vunpack.c.l.b16 %v954
    %v4667 = vunpack.c.l.b16 %v955
    %v4668 = vunpack.c.l.b16 %v956
    %v4669 = vunpack.c.l.b16 %v957
    %v4670 = vunpack.c.l.b16 %v958
    %v4671 = vunpack.c.l.b16 %v959
    %v4672 = vunpack.c.l.b16 %v960
    %v4673 = vunpack.c.l.b16 %v961
    %v4674 = vunpack.c.l.b16 %v962
    %v4675 = vunpack.c.l.b16 %v963
    %v4676 = vunpack.c.l.b16 %v964
    %v4677 = vunpack.c.l.b16 %v965
    %v4678 = vunpack.c.l.b16 %v966
    %v4679 = vunpack.c.l.b16 %v967
    %v4680 = vunpack.c.l.b16 %v968
    %v4681 = vunpack.c.l.b16 %v969
    %v4682 = vunpack.c.l.b16 %v970
    %v4683 = vunpack.c.l.b16 %v971
    %v4684 = vunpack.c.l.b16 %v972
    %v4685 = vunpack.c.l.b16 %v973
    %v4686 = vunpack.c.l.b16 %v974
    %v4687 = vunpack.c.l.b16 %v975
    %v4688 = vunpack.c.l.b16 %v976
    %v4689 = vunpack.c.l.b16 %v977
    %v4690 = vunpack.c.l.b16 %v978
    %v4691 = vunpack.c.l.b16 %v979
    %v4692 = vunpack.c.l.b16 %v980
    %v4693 = vunpack.c.l.b16 %v981
    %v4694 = vunpack.c.l.b16 %v982
    %v4695 = vunpack.c.l.b16 %v983
    %v4696 = vunpack.c.l.b16 %v984
    %v4697 = vunpack.c.l.b16 %v985
    %v4698 = vpack.c.b16 %v4187, %v4186
    %v4699 = vpack.c.b16 %v4189, %v4188
    %v4700 = vpack.c.b16 %v4191, %v4190
    %v4701 = vpack.c.b16 %v4193, %v4192
    %v4702 = vpack.c.b16 %v4195, %v4194
    %v4703 = vpack.c.b16 %v4197, %v4196
    %v4704 = vpack.c.b16 %v4199, %v4198
    %v4705 = vpack.c.b16 %v4201, %v4200
    %v4706 = vpack.c.b16 %v4203, %v4202
    %v4707 = vpack.c.b16 %v4205, %v4204
    %v4708 = vpack.c.b16 %v4207, %v4206
    %v4709 = vpack.c.b16 %v4209, %v4208
    %v4710 = vpack.c.b16 %v4211, %v4210
    %v4711 = vpack.c.b16 %v4213, %v4212
    %v4712 = vpack.c.b16 %v4215, %v4214
    %v4713 = vpack.c.b16 %v4217, %v4216
    %v4714 = vpack.c.b16 %v4219, %v4218
    %v4715 = vpack.c.b16 %v4221, %v4220
    %v4716 = vpack.c.b16 %v4223, %v4222
    %v4717 = vpack.c.b16 %v4225, %v4224
    %v4718 = vpack.c.b16 %v4227, %v4226
    %v4719 = vpack.c.b16 %v4229, %v4228
    %v4720 = vpack.c.b16 %v4231, %v4230
    %v4721 = vpack.c.b16 %v4233, %v4232
    %v4722 = vpack.c.b16 %v4235, %v4234
    %v4723 = vpack.c.b16 %v4237, %v4236
    %v4724 = vpack.c.b16 %v4239, %v4238
    %v4725 = vpack.c.b16 %v4241, %v4240
    %v4726 = vpack.c.b16 %v4243, %v4242
    %v4727 = vpack.c.b16 %v4245, %v4244
    %v4728 = vpack.c.b16 %v4247, %v4246
    %v4729 = vpack.c.b16 %v4249, %v4248
    %v4730 = vpack.c.b16 %v4251, %v4250
    %v4731 = vpack.c.b16 %v4253, %v4252
    %v4732 = vpack.c.b16 %v4255, %v4254
    %v4733 = vpack.c.b16 %v4257, %v4256
    %v4734 = vpack.c.b16 %v4259, %v4258
    %v4735 = vpack.c.b16 %v4261, %v4260
    %v4736 = vpack.c.b16 %v4263, %v4262
    %v4737 = vpack.c.b16 %v4265, %v4264
    %v4738 = vpack.c.b16 %v4267, %v4266
    %v4739 = vpack.c.b16 %v4269, %v4268
    %v4740 = vpack.c.b16 %v4271, %v4270
    %v4741 = vpack.c.b16 %v4273, %v4272
    %v4742 = vpack.c.b16 %v4275, %v4274
    %v4743 = vpack.c.b16 %v4277, %v4276
    %v4744 = vpack.c.b16 %v4279, %v4278
    %v4745 = vpack.c.b16 %v4281, %v4280
    %v4746 = vpack.c.b16 %v4283, %v4282
    %v4747 = vpack.c.b16 %v4285, %v4284
    %v4748 = vpack.c.b16 %v4287, %v4286
    %v4749 = vpack.c.b16 %v4289, %v4288
    %v4750 = vpack.c.b16 %v4291, %v4290
    %v4751 = vpack.c.b16 %v4293, %v4292
    %v4752 = vpack.c.b16 %v4295, %v4294
    %v4753 = vpack.c.b16 %v4297, %v4296
    %v4754 = vpack.c.b16 %v4299, %v4298
    %v4755 = vpack.c.b16 %v4301, %v4300
    %v4756 = vpack.c.b16 %v4303, %v4302
    %v4757 = vpack.c.b16 %v4305, %v4304
    %v4758 = vpack.c.b16 %v4307, %v4306
    %v4759 = vpack.c.b16 %v4309, %v4308
    %v4760 = vpack.c.b16 %v4311, %v4310
    %v4761 = vpack.c.b16 %v4313, %v4312
    %v4762 = vpack.c.b16 %v4315, %v4314
    %v4763 = vpack.c.b16 %v4317, %v4316
    %v4764 = vpack.c.b16 %v4319, %v4318
    %v4765 = vpack.c.b16 %v4321, %v4320
    %v4766 = vpack.c.b16 %v4323, %v4322
    %v4767 = vpack.c.b16 %v4325, %v4324
    %v4768 = vpack.c.b16 %v4327, %v4326
    %v4769 = vpack.c.b16 %v4329, %v4328
    %v4770 = vpack.c.b16 %v4331, %v4330
    %v4771 = vpack.c.b16 %v4333, %v4332
    %v4772 = vpack.c.b16 %v4335, %v4334
    %v4773 = vpack.c.b16 %v4337, %v4336
    %v4774 = vpack.c.b16 %v4339, %v4338
    %v4775 = vpack.c.b16 %v4341, %v4340
    %v4776 = vpack.c.b16 %v4343, %v4342
    %v4777 = vpack.c.b16 %v4345, %v4344
    %v4778 = vpack.c.b16 %v4347, %v4346
    %v4779 = vpack.c.b16 %v4349, %v4348
    %v4780 = vpack.c.b16 %v4351, %v4350
    %v4781 = vpack.c.b16 %v4353, %v4352
    %v4782 = vpack.c.b16 %v4355, %v4354
    %v4783 = vpack.c.b16 %v4357, %v4356
    %v4784 = vpack.c.b16 %v4359, %v4358
    %v4785 = vpack.c.b16 %v4361, %v4360
    %v4786 = vpack.c.b16 %v4363, %v4362
    %v4787 = vpack.c.b16 %v4365, %v4364
    %v4788 = vpack.c.b16 %v4367, %v4366
    %v4789 = vpack.c.b16 %v4369, %v4368
    %v4790 = vpack.c.b16 %v4371, %v4370
    %v4791 = vpack.c.b16 %v4373, %v4372
    %v4792 = vpack.c.b16 %v4375, %v4374
    %v4793 = vpack.c.b16 %v4377, %v4376
    %v4794 = vpack.c.b16 %v4379, %v4378
    %v4795 = vpack.c.b16 %v4381, %v4380
    %v4796 = vpack.c.b16 %v4383, %v4382
    %v4797 = vpack.c.b16 %v4385, %v4384
    %v4798 = vpack.c.b16 %v4387, %v4386
    %v4799 = vpack.c.b16 %v4389, %v4388
    %v4800 = vpack.c.b16 %v4391, %v4390
    %v4801 = vpack.c.b16 %v4393, %v4392
    %v4802 = vpack.c.b16 %v4395, %v4394
    %v4803 = vpack.c.b16 %v4397, %v4396
    %v4804 = vpack.c.b16 %v4399, %v4398
    %v4805 = vpack.c.b16 %v4401, %v4400
    %v4806 = vpack.c.b16 %v4403, %v4402
    %v4807 = vpack.c.b16 %v4405, %v4404
    %v4808 = vpack.c.b16 %v4407, %v4406
    %v4809 = vpack.c.b16 %v4409, %v4408
    %v4810 = vpack.c.b16 %v4411, %v4410
    %v4811 = vpack.c.b16 %v4413, %v4412
    %v4812 = vpack.c.b16 %v4415, %v4414
    %v4813 = vpack.c.b16 %v4417, %v4416
    %v4814 = vpack.c.b16 %v4419, %v4418
    %v4815 = vpack.c.b16 %v4421, %v4420
    %v4816 = vpack.c.b16 %v4423, %v4422
    %v4817 = vpack.c.b16 %v4425, %v4424
    %v4818 = vpack.c.b16 %v4427, %v4426
    %v4819 = vpack.c.b16 %v4429, %v4428
    %v4820 = vpack.c.b16 %v4431, %v4430
    %v4821 = vpack.c.b16 %v4433, %v4432
    %v4822 = vpack.c.b16 %v4435, %v4434
    %v4823 = vpack.c.b16 %v4437, %v4436
    %v4824 = vpack.c.b16 %v4439, %v4438
    %v4825 = vpack.c.b16 %v4441, %v4440
    %v4826 = vpack.c.b16 %v4443, %v4442
    %v4827 = vpack.c.b16 %v4445, %v4444
    %v4828 = vpack.c.b16 %v4447, %v4446
    %v4829 = vpack.c.b16 %v4449, %v4448
    %v4830 = vpack.c.b16 %v4451, %v4450
    %v4831 = vpack.c.b16 %v4453, %v4452
    %v4832 = vpack.c.b16 %v4455, %v4454
    %v4833 = vpack.c.b16 %v4457, %v4456
    %v4834 = vpack.c.b16 %v4459, %v4458
    %v4835 = vpack.c.b16 %v4461, %v4460
    %v4836 = vpack.c.b16 %v4463, %v4462
    %v4837 = vpack.c.b16 %v4465, %v4464
    %v4838 = vpack.c.b16 %v4467, %v4466
    %v4839 = vpack.c.b16 %v4469, %v4468
    %v4840 = vpack.c.b16 %v4471, %v4470
    %v4841 = vpack.c.b16 %v4473, %v4472
    %v4842 = vpack.c.b16 %v4475, %v4474
    %v4843 = vpack.c.b16 %v4477, %v4476
    %v4844 = vpack.c.b16 %v4479, %v4478
    %v4845 = vpack.c.b16 %v4481, %v4480
    %v4846 = vpack.c.b16 %v4483, %v4482
    %v4847 = vpack.c.b16 %v4485, %v4484
    %v4848 = vpack.c.b16 %v4487, %v4486
    %v4849 = vpack.c.b16 %v4489, %v4488
    %v4850 = vpack.c.b16 %v4491, %v4490
    %v4851 = vpack.c.b16 %v4493, %v4492
    %v4852 = vpack.c.b16 %v4495, %v4494
    %v4853 = vpack.c.b16 %v4497, %v4496
    %v4854 = vpack.c.b16 %v4499, %v4498
    %v4855 = vpack.c.b16 %v4501, %v4500
    %v4856 = vpack.c.b16 %v4503, %v4502
    %v4857 = vpack.c.b16 %v4505, %v4504
    %v4858 = vpack.c.b16 %v4507, %v4506
    %v4859 = vpack.c.b16 %v4509, %v4508
    %v4860 = vpack.c.b16 %v4511, %v4510
    %v4861 = vpack.c.b16 %v4513, %v4512
    %v4862 = vpack.c.b16 %v4515, %v4514
    %v4863 = vpack.c.b16 %v4517, %v4516
    %v4864 = vpack.c.b16 %v4519, %v4518
    %v4865 = vpack.c.b16 %v4521, %v4520
    %v4866 = vpack.c.b16 %v4523, %v4522
    %v4867 = vpack.c.b16 %v4525, %v4524
    %v4868 = vpack.c.b16 %v4527, %v4526
    %v4869 = vpack.c.b16 %v4529, %v4528
    %v4870 = vpack.c.b16 %v4531, %v4530
    %v4871 = vpack.c.b16 %v4533, %v4532
    %v4872 = vpack.c.b16 %v4535, %v4534
    %v4873 = vpack.c.b16 %v4537, %v4536
    %v4874 = vpack.c.b16 %v4539, %v4538
    %v4875 = vpack.c.b16 %v4541, %v4540
    %v4876 = vpack.c.b16 %v4543, %v4542
    %v4877 = vpack.c.b16 %v4545, %v4544
    %v4878 = vpack.c.b16 %v4547, %v4546
    %v4879 = vpack.c.b16 %v4549, %v4548
    %v4880 = vpack.c.b16 %v4551, %v4550
    %v4881 = vpack.c.b16 %v4553, %v4552
    %v4882 = vpack.c.b16 %v4555, %v4554
    %v4883 = vpack.c.b16 %v4557, %v4556
    %v4884 = vpack.c.b16 %v4559, %v4558
    %v4885 = vpack.c.b16 %v4561, %v4560
    %v4886 = vpack.c.b16 %v4563, %v4562
    %v4887 = vpack.c.b16 %v4565, %v4564
    %v4888 = vpack.c.b16 %v4567, %v4566
    %v4889 = vpack.c.b16 %v4569, %v4568
    %v4890 = vpack.c.b16 %v4571, %v4570
    %v4891 = vpack.c.b16 %v4573, %v4572
    %v4892 = vpack.c.b16 %v4575, %v4574
    %v4893 = vpack.c.b16 %v4577, %v4576
    %v4894 = vpack.c.b16 %v4579, %v4578
    %v4895 = vpack.c.b16 %v4581, %v4580
    %v4896 = vpack.c.b16 %v4583, %v4582
    %v4897 = vpack.c.b16 %v4585, %v4584
    %v4898 = vpack.c.b16 %v4587, %v4586
    %v4899 = vpack.c.b16 %v4589, %v4588
    %v4900 = vpack.c.b16 %v4591, %v4590
    %v4901 = vpack.c.b16 %v4593, %v4592
    %v4902 = vpack.c.b16 %v4595, %v4594
    %v4903 = vpack.c.b16 %v4597, %v4596
    %v4904 = vpack.c.b16 %v4599, %v4598
    %v4905 = vpack.c.b16 %v4601, %v4600
    %v4906 = vpack.c.b16 %v4603, %v4602
    %v4907 = vpack.c.b16 %v4605, %v4604
    %v4908 = vpack.c.b16 %v4607, %v4606
    %v4909 = vpack.c.b16 %v4609, %v4608
    %v4910 = vpack.c.b16 %v4611, %v4610
    %v4911 = vpack.c.b16 %v4613, %v4612
    %v4912 = vpack.c.b16 %v4615, %v4614
    %v4913 = vpack.c.b16 %v4617, %v4616
    %v4914 = vpack.c.b16 %v4619, %v4618
    %v4915 = vpack.c.b16 %v4621, %v4620
    %v4916 = vpack.c.b16 %v4623, %v4622
    %v4917 = vpack.c.b16 %v4625, %v4624
    %v4918 = vpack.c.b16 %v4627, %v4626
    %v4919 = vpack.c.b16 %v4629, %v4628
    %v4920 = vpack.c.b16 %v4631, %v4630
    %v4921 = vpack.c.b16 %v4633, %v4632
    %v4922 = vpack.c.b16 %v4635, %v4634
    %v4923 = vpack.c.b16 %v4637, %v4636
    %v4924 = vpack.c.b16 %v4639, %v4638
    %v4925 = vpack.c.b16 %v4641, %v4640
    %v4926 = vpack.c.b16 %v4643, %v4642
    %v4927 = vpack.c.b16 %v4645, %v4644
    %v4928 = vpack.c.b16 %v4647, %v4646
    %v4929 = vpack.c.b16 %v4649, %v4648
    %v4930 = vpack.c.b16 %v4651, %v4650
    %v4931 = vpack.c.b16 %v4653, %v4652
    %v4932 = vpack.c.b16 %v4655, %v4654
    %v4933 = vpack.c.b16 %v4657, %v4656
    %v4934 = vpack.c.b16 %v4659, %v4658
    %v4935 = vpack.c.b16 %v4661, %v4660
    %v4936 = vpack.c.b16 %v4663, %v4662
    %v4937 = vpack.c.b16 %v4665, %v4664
    %v4938 = vpack.c.b16 %v4667, %v4666
    %v4939 = vpack.c.b16 %v4669, %v4668
    %v4940 = vpack.c.b16 %v4671, %v4670
    %v4941 = vpack.c.b16 %v4673, %v4672
    %v4942 = vpack.c.b16 %v4675, %v4674
    %v4943 = vpack.c.b16 %v4677, %v4676
    %v4944 = vpack.c.b16 %v4679, %v4678
    %v4945 = vpack.c.b16 %v4681, %v4680
    %v4946 = vpack.c.b16 %v4683, %v4682
    %v4947 = vpack.c.b16 %v4685, %v4684
    %v4948 = vpack.c.b16 %v4687, %v4686
    %v4949 = vpack.c.b16 %v4689, %v4688
    %v4950 = vpack.c.b16 %v4691, %v4690
    %v4951 = vpack.c.b16 %v4693, %v4692
    %v4952 = vpack.c.b16 %v4695, %v4694
    %v4953 = vpack.c.b16 %v4697, %v4696
    %5210 = vmatprep.subr.bf16.mxu0 0
    %5211 = vmatpush1.bf16.msra.mxu0 %v4705
    %5212 = vmatprep.subr.bf16.mxu0 0
    %5213 = vmatpush1.bf16.msra.mxu0 %v4704
    %5214 = vmatprep.subr.bf16.mxu0 0
    %5215 = vmatpush1.bf16.msra.mxu0 %v4703
    %5216 = vmatprep.subr.bf16.mxu0 0
    %5217 = vmatpush1.bf16.msra.mxu0 %v4702
    %5218 = vmatprep.subr.bf16.mxu0 0
    %5219 = vmatpush1.bf16.msra.mxu0 %v4701
    %5220 = vmatprep.subr.bf16.mxu0 0
    %5221 = vmatpush1.bf16.msra.mxu0 %v4700
    %5222 = vmatprep.subr.bf16.mxu0 0
    %5223 = vmatpush1.bf16.msra.mxu0 %v4699
    %5224 = vmatprep.subr.bf16.mxu0 0
    %5225 = vmatpush1.bf16.msra.mxu0 %v4698
    %5226 = vmatprep.subr.bf16.mxu0 0
    %5227 = vmatpush2.bf16.msra.mxu0 %v4713
    %5228 = vmatprep.subr.bf16.mxu0 0
    %5229 = vmatpush2.bf16.msra.mxu0 %v4712
    %5230 = vmatprep.subr.bf16.mxu0 0
    %5231 = vmatpush2.bf16.msra.mxu0 %v4711
    %5232 = vmatprep.subr.bf16.mxu0 0
    %5233 = vmatpush2.bf16.msra.mxu0 %v4710
    %5234 = vmatprep.subr.bf16.mxu0 0
    %5235 = vmatpush2.bf16.msra.mxu0 %v4709
    %5236 = vmatprep.subr.bf16.mxu0 0
    %5237 = vmatpush2.bf16.msra.mxu0 %v4708
    %5238 = vmatprep.subr.bf16.mxu0 0
    %5239 = vmatpush2.bf16.msra.mxu0 %v4707
    %5240 = vmatprep.subr.bf16.mxu0 0
    %5241 = vmatpush2.bf16.msra.mxu0 %v4706
    %5242 = vmatprep.mubr.bf16.mxu0 %v243
    %5243 = vmatmul.mubr.bf16.gmra.mxu0 %v242
    %v5244 = vpop.f32.mrf.mxu0
    %v5245 = vadd.f32 %v3669, %v5244
    %v5246 = vpop.f32.mrf.mxu0
    %v5247 = vpop.f32.mrf.mxu0
    %v5248 = vpop.f32.mrf.mxu0
    %5249 = vdwg.mxu0
    %5250 = vmatprep.subr.bf16.mxu0 0
    %5251 = vmatpush1.bf16.msra.mxu0 %v4721
    %5252 = vmatprep.subr.bf16.mxu0 0
    %5253 = vmatpush1.bf16.msra.mxu0 %v4720
    %5254 = vmatprep.subr.bf16.mxu0 0
    %5255 = vmatpush1.bf16.msra.mxu0 %v4719
    %5256 = vmatprep.subr.bf16.mxu0 0
    %5257 = vmatpush1.bf16.msra.mxu0 %v4718
    %5258 = vmatprep.subr.bf16.mxu0 0
    %5259 = vmatpush1.bf16.msra.mxu0 %v4717
    %5260 = vmatprep.subr.bf16.mxu0 0
    %5261 = vmatpush1.bf16.msra.mxu0 %v4716
    %5262 = vmatprep.subr.bf16.mxu0 0
    %5263 = vmatpush1.bf16.msra.mxu0 %v4715
    %5264 = vmatprep.subr.bf16.mxu0 0
    %5265 = vmatpush1.bf16.msra.mxu0 %v4714
    %5266 = vmatprep.subr.bf16.mxu0 0
    %5267 = vmatpush2.bf16.msra.mxu0 %v4729
    %5268 = vmatprep.subr.bf16.mxu0 0
    %5269 = vmatpush2.bf16.msra.mxu0 %v4728
    %5270 = vmatprep.subr.bf16.mxu0 0
    %5271 = vmatpush2.bf16.msra.mxu0 %v4727
    %5272 = vmatprep.subr.bf16.mxu0 0
    %5273 = vmatpush2.bf16.msra.mxu0 %v4726
    %5274 = vmatprep.subr.bf16.mxu0 0
    %5275 = vmatpush2.bf16.msra.mxu0 %v4725
    %5276 = vmatprep.subr.bf16.mxu0 0
    %5277 = vmatpush2.bf16.msra.mxu0 %v4724
    %5278 = vmatprep.subr.bf16.mxu0 0
    %5279 = vmatpush2.bf16.msra.mxu0 %v4723
    %5280 = vmatprep.subr.bf16.mxu0 0
    %5281 = vmatpush2.bf16.msra.mxu0 %v4722
    %5282 = vmatprep.mubr.bf16.mxu0 %v245
    %5283 = vmatmul.mubr.bf16.gmra.mxu0 %v244
    %v5284 = vpop.f32.mrf.mxu0
    %v5285 = vadd.f32 %v5245, %v5284
    %v5286 = vpop.f32.mrf.mxu0
    %v5287 = vpop.f32.mrf.mxu0
    %v5288 = vpop.f32.mrf.mxu0
    %5289 = vdwg.mxu0
    %5290 = vmatprep.subr.bf16.mxu0 0
    %5291 = vmatpush1.bf16.msra.mxu0 %v4737
    %5292 = vmatprep.subr.bf16.mxu0 0
    %5293 = vmatpush1.bf16.msra.mxu0 %v4736
    %5294 = vmatprep.subr.bf16.mxu0 0
    %5295 = vmatpush1.bf16.msra.mxu0 %v4735
    %5296 = vmatprep.subr.bf16.mxu0 0
    %5297 = vmatpush1.bf16.msra.mxu0 %v4734
    %5298 = vmatprep.subr.bf16.mxu0 0
    %5299 = vmatpush1.bf16.msra.mxu0 %v4733
    %5300 = vmatprep.subr.bf16.mxu0 0
    %5301 = vmatpush1.bf16.msra.mxu0 %v4732
    %5302 = vmatprep.subr.bf16.mxu0 0
    %5303 = vmatpush1.bf16.msra.mxu0 %v4731
    %5304 = vmatprep.subr.bf16.mxu0 0
    %5305 = vmatpush1.bf16.msra.mxu0 %v4730
    %5306 = vmatprep.subr.bf16.mxu0 0
    %5307 = vmatpush2.bf16.msra.mxu0 %v4745
    %5308 = vmatprep.subr.bf16.mxu0 0
    %5309 = vmatpush2.bf16.msra.mxu0 %v4744
    %5310 = vmatprep.subr.bf16.mxu0 0
    %5311 = vmatpush2.bf16.msra.mxu0 %v4743
    %5312 = vmatprep.subr.bf16.mxu0 0
    %5313 = vmatpush2.bf16.msra.mxu0 %v4742
    %5314 = vmatprep.subr.bf16.mxu0 0
    %5315 = vmatpush2.bf16.msra.mxu0 %v4741
    %5316 = vmatprep.subr.bf16.mxu0 0
    %5317 = vmatpush2.bf16.msra.mxu0 %v4740
    %5318 = vmatprep.subr.bf16.mxu0 0
    %5319 = vmatpush2.bf16.msra.mxu0 %v4739
    %5320 = vmatprep.subr.bf16.mxu0 0
    %5321 = vmatpush2.bf16.msra.mxu0 %v4738
    %5322 = vmatprep.mubr.bf16.mxu0 %v247
    %5323 = vmatmul.mubr.bf16.gmra.mxu0 %v246
    %v5324 = vpop.f32.mrf.mxu0
    %v5325 = vadd.f32 %v5285, %v5324
    %v5326 = vpop.f32.mrf.mxu0
    %v5327 = vpop.f32.mrf.mxu0
    %v5328 = vpop.f32.mrf.mxu0
    %5329 = vdwg.mxu0
    %5330 = vmatprep.subr.bf16.mxu0 0
    %5331 = vmatpush1.bf16.msra.mxu0 %v4753
    %5332 = vmatprep.subr.bf16.mxu0 0
    %5333 = vmatpush1.bf16.msra.mxu0 %v4752
    %5334 = vmatprep.subr.bf16.mxu0 0
    %5335 = vmatpush1.bf16.msra.mxu0 %v4751
    %5336 = vmatprep.subr.bf16.mxu0 0
    %5337 = vmatpush1.bf16.msra.mxu0 %v4750
    %5338 = vmatprep.subr.bf16.mxu0 0
    %5339 = vmatpush1.bf16.msra.mxu0 %v4749
    %5340 = vmatprep.subr.bf16.mxu0 0
    %5341 = vmatpush1.bf16.msra.mxu0 %v4748
    %5342 = vmatprep.subr.bf16.mxu0 0
    %5343 = vmatpush1.bf16.msra.mxu0 %v4747
    %5344 = vmatprep.subr.bf16.mxu0 0
    %5345 = vmatpush1.bf16.msra.mxu0 %v4746
    %5346 = vmatprep.subr.bf16.mxu0 0
    %5347 = vmatpush2.bf16.msra.mxu0 %v4761
    %5348 = vmatprep.subr.bf16.mxu0 0
    %5349 = vmatpush2.bf16.msra.mxu0 %v4760
    %5350 = vmatprep.subr.bf16.mxu0 0
    %5351 = vmatpush2.bf16.msra.mxu0 %v4759
    %5352 = vmatprep.subr.bf16.mxu0 0
    %5353 = vmatpush2.bf16.msra.mxu0 %v4758
    %5354 = vmatprep.subr.bf16.mxu0 0
    %5355 = vmatpush2.bf16.msra.mxu0 %v4757
    %5356 = vmatprep.subr.bf16.mxu0 0
    %5357 = vmatpush2.bf16.msra.mxu0 %v4756
    %5358 = vmatprep.subr.bf16.mxu0 0
    %5359 = vmatpush2.bf16.msra.mxu0 %v4755
    %5360 = vmatprep.subr.bf16.mxu0 0
    %5361 = vmatpush2.bf16.msra.mxu0 %v4754
    %5362 = vmatprep.mubr.bf16.mxu0 %v249
    %5363 = vmatmul.mubr.bf16.gmra.mxu0 %v248
    %v5364 = vpop.f32.mrf.mxu0
    %v5365 = vadd.f32 %v5325, %v5364
    %v5366 = vpop.f32.mrf.mxu0
    %v5367 = vpop.f32.mrf.mxu0
    %v5368 = vpop.f32.mrf.mxu0
    %5369 = vdwg.mxu0
    %5370 = vmatprep.subr.bf16.mxu0 0
    %5371 = vmatpush1.bf16.msra.mxu0 %v4769
    %5372 = vmatprep.subr.bf16.mxu0 0
    %5373 = vmatpush1.bf16.msra.mxu0 %v4768
    %5374 = vmatprep.subr.bf16.mxu0 0
    %5375 = vmatpush1.bf16.msra.mxu0 %v4767
    %5376 = vmatprep.subr.bf16.mxu0 0
    %5377 = vmatpush1.bf16.msra.mxu0 %v4766
    %5378 = vmatprep.subr.bf16.mxu0 0
    %5379 = vmatpush1.bf16.msra.mxu0 %v4765
    %5380 = vmatprep.subr.bf16.mxu0 0
    %5381 = vmatpush1.bf16.msra.mxu0 %v4764
    %5382 = vmatprep.subr.bf16.mxu0 0
    %5383 = vmatpush1.bf16.msra.mxu0 %v4763
    %5384 = vmatprep.subr.bf16.mxu0 0
    %5385 = vmatpush1.bf16.msra.mxu0 %v4762
    %5386 = vmatprep.subr.bf16.mxu0 0
    %5387 = vmatpush2.bf16.msra.mxu0 %v4777
    %5388 = vmatprep.subr.bf16.mxu0 0
    %5389 = vmatpush2.bf16.msra.mxu0 %v4776
    %5390 = vmatprep.subr.bf16.mxu0 0
    %5391 = vmatpush2.bf16.msra.mxu0 %v4775
    %5392 = vmatprep.subr.bf16.mxu0 0
    %5393 = vmatpush2.bf16.msra.mxu0 %v4774
    %5394 = vmatprep.subr.bf16.mxu0 0
    %5395 = vmatpush2.bf16.msra.mxu0 %v4773
    %5396 = vmatprep.subr.bf16.mxu0 0
    %5397 = vmatpush2.bf16.msra.mxu0 %v4772
    %5398 = vmatprep.subr.bf16.mxu0 0
    %5399 = vmatpush2.bf16.msra.mxu0 %v4771
    %5400 = vmatprep.subr.bf16.mxu0 0
    %5401 = vmatpush2.bf16.msra.mxu0 %v4770
    %5402 = vmatprep.mubr.bf16.mxu0 %v251
    %5403 = vmatmul.mubr.bf16.gmra.mxu0 %v250
    %v5404 = vpop.f32.mrf.mxu0
    %v5405 = vadd.f32 %v5365, %v5404
    %v5406 = vpop.f32.mrf.mxu0
    %v5407 = vpop.f32.mrf.mxu0
    %v5408 = vpop.f32.mrf.mxu0
    %5409 = vdwg.mxu0
    %5410 = vmatprep.subr.bf16.mxu0 0
    %5411 = vmatpush1.bf16.msra.mxu0 %v4785
    %5412 = vmatprep.subr.bf16.mxu0 0
    %5413 = vmatpush1.bf16.msra.mxu0 %v4784
    %5414 = vmatprep.subr.bf16.mxu0 0
    %5415 = vmatpush1.bf16.msra.mxu0 %v4783
    %5416 = vmatprep.subr.bf16.mxu0 0
    %5417 = vmatpush1.bf16.msra.mxu0 %v4782
    %5418 = vmatprep.subr.bf16.mxu0 0
    %5419 = vmatpush1.bf16.msra.mxu0 %v4781
    %5420 = vmatprep.subr.bf16.mxu0 0
    %5421 = vmatpush1.bf16.msra.mxu0 %v4780
    %5422 = vmatprep.subr.bf16.mxu0 0
    %5423 = vmatpush1.bf16.msra.mxu0 %v4779
    %5424 = vmatprep.subr.bf16.mxu0 0
    %5425 = vmatpush1.bf16.msra.mxu0 %v4778
    %5426 = vmatprep.subr.bf16.mxu0 0
    %5427 = vmatpush2.bf16.msra.mxu0 %v4793
    %5428 = vmatprep.subr.bf16.mxu0 0
    %5429 = vmatpush2.bf16.msra.mxu0 %v4792
    %5430 = vmatprep.subr.bf16.mxu0 0
    %5431 = vmatpush2.bf16.msra.mxu0 %v4791
    %5432 = vmatprep.subr.bf16.mxu0 0
    %5433 = vmatpush2.bf16.msra.mxu0 %v4790
    %5434 = vmatprep.subr.bf16.mxu0 0
    %5435 = vmatpush2.bf16.msra.mxu0 %v4789
    %5436 = vmatprep.subr.bf16.mxu0 0
    %5437 = vmatpush2.bf16.msra.mxu0 %v4788
    %5438 = vmatprep.subr.bf16.mxu0 0
    %5439 = vmatpush2.bf16.msra.mxu0 %v4787
    %5440 = vmatprep.subr.bf16.mxu0 0
    %5441 = vmatpush2.bf16.msra.mxu0 %v4786
    %5442 = vmatprep.mubr.bf16.mxu0 %v253
    %5443 = vmatmul.mubr.bf16.gmra.mxu0 %v252
    %v5444 = vpop.f32.mrf.mxu0
    %v5445 = vadd.f32 %v5405, %v5444
    %v5446 = vpop.f32.mrf.mxu0
    %v5447 = vpop.f32.mrf.mxu0
    %v5448 = vpop.f32.mrf.mxu0
    %5449 = vdwg.mxu0
    %5450 = vmatprep.subr.bf16.mxu0 0
    %5451 = vmatpush1.bf16.msra.mxu0 %v4801
    %5452 = vmatprep.subr.bf16.mxu0 0
    %5453 = vmatpush1.bf16.msra.mxu0 %v4800
    %5454 = vmatprep.subr.bf16.mxu0 0
    %5455 = vmatpush1.bf16.msra.mxu0 %v4799
    %5456 = vmatprep.subr.bf16.mxu0 0
    %5457 = vmatpush1.bf16.msra.mxu0 %v4798
    %5458 = vmatprep.subr.bf16.mxu0 0
    %5459 = vmatpush1.bf16.msra.mxu0 %v4797
    %5460 = vmatprep.subr.bf16.mxu0 0
    %5461 = vmatpush1.bf16.msra.mxu0 %v4796
    %5462 = vmatprep.subr.bf16.mxu0 0
    %5463 = vmatpush1.bf16.msra.mxu0 %v4795
    %5464 = vmatprep.subr.bf16.mxu0 0
    %5465 = vmatpush1.bf16.msra.mxu0 %v4794
    %5466 = vmatprep.subr.bf16.mxu0 0
    %5467 = vmatpush2.bf16.msra.mxu0 %v4809
    %5468 = vmatprep.subr.bf16.mxu0 0
    %5469 = vmatpush2.bf16.msra.mxu0 %v4808
    %5470 = vmatprep.subr.bf16.mxu0 0
    %5471 = vmatpush2.bf16.msra.mxu0 %v4807
    %5472 = vmatprep.subr.bf16.mxu0 0
    %5473 = vmatpush2.bf16.msra.mxu0 %v4806
    %5474 = vmatprep.subr.bf16.mxu0 0
    %5475 = vmatpush2.bf16.msra.mxu0 %v4805
    %5476 = vmatprep.subr.bf16.mxu0 0
    %5477 = vmatpush2.bf16.msra.mxu0 %v4804
    %5478 = vmatprep.subr.bf16.mxu0 0
    %5479 = vmatpush2.bf16.msra.mxu0 %v4803
    %5480 = vmatprep.subr.bf16.mxu0 0
    %5481 = vmatpush2.bf16.msra.mxu0 %v4802
    %5482 = vmatprep.mubr.bf16.mxu0 %v255
    %5483 = vmatmul.mubr.bf16.gmra.mxu0 %v254
    %v5484 = vpop.f32.mrf.mxu0
    %v5485 = vadd.f32 %v5445, %v5484
    %v5486 = vpop.f32.mrf.mxu0
    %v5487 = vpop.f32.mrf.mxu0
    %v5488 = vpop.f32.mrf.mxu0
    %5489 = vdwg.mxu0
    %5490 = vmatprep.subr.bf16.mxu0 0
    %5491 = vmatpush1.bf16.msra.mxu0 %v4817
    %5492 = vmatprep.subr.bf16.mxu0 0
    %5493 = vmatpush1.bf16.msra.mxu0 %v4816
    %5494 = vmatprep.subr.bf16.mxu0 0
    %5495 = vmatpush1.bf16.msra.mxu0 %v4815
    %5496 = vmatprep.subr.bf16.mxu0 0
    %5497 = vmatpush1.bf16.msra.mxu0 %v4814
    %5498 = vmatprep.subr.bf16.mxu0 0
    %5499 = vmatpush1.bf16.msra.mxu0 %v4813
    %5500 = vmatprep.subr.bf16.mxu0 0
    %5501 = vmatpush1.bf16.msra.mxu0 %v4812
    %5502 = vmatprep.subr.bf16.mxu0 0
    %5503 = vmatpush1.bf16.msra.mxu0 %v4811
    %5504 = vmatprep.subr.bf16.mxu0 0
    %5505 = vmatpush1.bf16.msra.mxu0 %v4810
    %5506 = vmatprep.subr.bf16.mxu0 0
    %5507 = vmatpush2.bf16.msra.mxu0 %v4825
    %5508 = vmatprep.subr.bf16.mxu0 0
    %5509 = vmatpush2.bf16.msra.mxu0 %v4824
    %5510 = vmatprep.subr.bf16.mxu0 0
    %5511 = vmatpush2.bf16.msra.mxu0 %v4823
    %5512 = vmatprep.subr.bf16.mxu0 0
    %5513 = vmatpush2.bf16.msra.mxu0 %v4822
    %5514 = vmatprep.subr.bf16.mxu0 0
    %5515 = vmatpush2.bf16.msra.mxu0 %v4821
    %5516 = vmatprep.subr.bf16.mxu0 0
    %5517 = vmatpush2.bf16.msra.mxu0 %v4820
    %5518 = vmatprep.subr.bf16.mxu0 0
    %5519 = vmatpush2.bf16.msra.mxu0 %v4819
    %5520 = vmatprep.subr.bf16.mxu0 0
    %5521 = vmatpush2.bf16.msra.mxu0 %v4818
    %5522 = vmatprep.mubr.bf16.mxu0 %v257
    %5523 = vmatmul.mubr.bf16.gmra.mxu0 %v256
    %v5524 = vpop.f32.mrf.mxu0
    %v5525 = vadd.f32 %v5485, %v5524
    %v5526 = vpop.f32.mrf.mxu0
    %v5527 = vpop.f32.mrf.mxu0
    %v5528 = vpop.f32.mrf.mxu0
    %5529 = vdwg.mxu0
    %5530 = vmatprep.subr.bf16.mxu0 0
    %5531 = vmatpush1.bf16.msra.mxu0 %v4833
    %5532 = vmatprep.subr.bf16.mxu0 0
    %5533 = vmatpush1.bf16.msra.mxu0 %v4832
    %5534 = vmatprep.subr.bf16.mxu0 0
    %5535 = vmatpush1.bf16.msra.mxu0 %v4831
    %5536 = vmatprep.subr.bf16.mxu0 0
    %5537 = vmatpush1.bf16.msra.mxu0 %v4830
    %5538 = vmatprep.subr.bf16.mxu0 0
    %5539 = vmatpush1.bf16.msra.mxu0 %v4829
    %5540 = vmatprep.subr.bf16.mxu0 0
    %5541 = vmatpush1.bf16.msra.mxu0 %v4828
    %5542 = vmatprep.subr.bf16.mxu0 0
    %5543 = vmatpush1.bf16.msra.mxu0 %v4827
    %5544 = vmatprep.subr.bf16.mxu0 0
    %5545 = vmatpush1.bf16.msra.mxu0 %v4826
    %5546 = vmatprep.subr.bf16.mxu0 0
    %5547 = vmatpush2.bf16.msra.mxu0 %v4841
    %5548 = vmatprep.subr.bf16.mxu0 0
    %5549 = vmatpush2.bf16.msra.mxu0 %v4840
    %5550 = vmatprep.subr.bf16.mxu0 0
    %5551 = vmatpush2.bf16.msra.mxu0 %v4839
    %5552 = vmatprep.subr.bf16.mxu0 0
    %5553 = vmatpush2.bf16.msra.mxu0 %v4838
    %5554 = vmatprep.subr.bf16.mxu0 0
    %5555 = vmatpush2.bf16.msra.mxu0 %v4837
    %5556 = vmatprep.subr.bf16.mxu0 0
    %5557 = vmatpush2.bf16.msra.mxu0 %v4836
    %5558 = vmatprep.subr.bf16.mxu0 0
    %5559 = vmatpush2.bf16.msra.mxu0 %v4835
    %5560 = vmatprep.subr.bf16.mxu0 0
    %5561 = vmatpush2.bf16.msra.mxu0 %v4834
    %5562 = vmatprep.mubr.bf16.mxu0 %v259
    %5563 = vmatmul.mubr.bf16.gmra.mxu0 %v258
    %v5564 = vpop.f32.mrf.mxu0
    %v5565 = vadd.f32 %v5525, %v5564
    %v5566 = vpop.f32.mrf.mxu0
    %v5567 = vpop.f32.mrf.mxu0
    %v5568 = vpop.f32.mrf.mxu0
    %5569 = vdwg.mxu0
    %5570 = vmatprep.subr.bf16.mxu0 0
    %5571 = vmatpush1.bf16.msra.mxu0 %v4849
    %5572 = vmatprep.subr.bf16.mxu0 0
    %5573 = vmatpush1.bf16.msra.mxu0 %v4848
    %5574 = vmatprep.subr.bf16.mxu0 0
    %5575 = vmatpush1.bf16.msra.mxu0 %v4847
    %5576 = vmatprep.subr.bf16.mxu0 0
    %5577 = vmatpush1.bf16.msra.mxu0 %v4846
    %5578 = vmatprep.subr.bf16.mxu0 0
    %5579 = vmatpush1.bf16.msra.mxu0 %v4845
    %5580 = vmatprep.subr.bf16.mxu0 0
    %5581 = vmatpush1.bf16.msra.mxu0 %v4844
    %5582 = vmatprep.subr.bf16.mxu0 0
    %5583 = vmatpush1.bf16.msra.mxu0 %v4843
    %5584 = vmatprep.subr.bf16.mxu0 0
    %5585 = vmatpush1.bf16.msra.mxu0 %v4842
    %5586 = vmatprep.subr.bf16.mxu0 0
    %5587 = vmatpush2.bf16.msra.mxu0 %v4857
    %5588 = vmatprep.subr.bf16.mxu0 0
    %5589 = vmatpush2.bf16.msra.mxu0 %v4856
    %5590 = vmatprep.subr.bf16.mxu0 0
    %5591 = vmatpush2.bf16.msra.mxu0 %v4855
    %5592 = vmatprep.subr.bf16.mxu0 0
    %5593 = vmatpush2.bf16.msra.mxu0 %v4854
    %5594 = vmatprep.subr.bf16.mxu0 0
    %5595 = vmatpush2.bf16.msra.mxu0 %v4853
    %5596 = vmatprep.subr.bf16.mxu0 0
    %5597 = vmatpush2.bf16.msra.mxu0 %v4852
    %5598 = vmatprep.subr.bf16.mxu0 0
    %5599 = vmatpush2.bf16.msra.mxu0 %v4851
    %5600 = vmatprep.subr.bf16.mxu0 0
    %5601 = vmatpush2.bf16.msra.mxu0 %v4850
    %5602 = vmatprep.mubr.bf16.mxu0 %v261
    %5603 = vmatmul.mubr.bf16.gmra.mxu0 %v260
    %v5604 = vpop.f32.mrf.mxu0
    %v5605 = vadd.f32 %v5565, %v5604
    %v5606 = vpop.f32.mrf.mxu0
    %v5607 = vpop.f32.mrf.mxu0
    %v5608 = vpop.f32.mrf.mxu0
    %5609 = vdwg.mxu0
    %5610 = vmatprep.subr.bf16.mxu0 0
    %5611 = vmatpush1.bf16.msra.mxu0 %v4865
    %5612 = vmatprep.subr.bf16.mxu0 0
    %5613 = vmatpush1.bf16.msra.mxu0 %v4864
    %5614 = vmatprep.subr.bf16.mxu0 0
    %5615 = vmatpush1.bf16.msra.mxu0 %v4863
    %5616 = vmatprep.subr.bf16.mxu0 0
    %5617 = vmatpush1.bf16.msra.mxu0 %v4862
    %5618 = vmatprep.subr.bf16.mxu0 0
    %5619 = vmatpush1.bf16.msra.mxu0 %v4861
    %5620 = vmatprep.subr.bf16.mxu0 0
    %5621 = vmatpush1.bf16.msra.mxu0 %v4860
    %5622 = vmatprep.subr.bf16.mxu0 0
    %5623 = vmatpush1.bf16.msra.mxu0 %v4859
    %5624 = vmatprep.subr.bf16.mxu0 0
    %5625 = vmatpush1.bf16.msra.mxu0 %v4858
    %5626 = vmatprep.subr.bf16.mxu0 0
    %5627 = vmatpush2.bf16.msra.mxu0 %v4873
    %5628 = vmatprep.subr.bf16.mxu0 0
    %5629 = vmatpush2.bf16.msra.mxu0 %v4872
    %5630 = vmatprep.subr.bf16.mxu0 0
    %5631 = vmatpush2.bf16.msra.mxu0 %v4871
    %5632 = vmatprep.subr.bf16.mxu0 0
    %5633 = vmatpush2.bf16.msra.mxu0 %v4870
    %5634 = vmatprep.subr.bf16.mxu0 0
    %5635 = vmatpush2.bf16.msra.mxu0 %v4869
    %5636 = vmatprep.subr.bf16.mxu0 0
    %5637 = vmatpush2.bf16.msra.mxu0 %v4868
    %5638 = vmatprep.subr.bf16.mxu0 0
    %5639 = vmatpush2.bf16.msra.mxu0 %v4867
    %5640 = vmatprep.subr.bf16.mxu0 0
    %5641 = vmatpush2.bf16.msra.mxu0 %v4866
    %5642 = vmatprep.mubr.bf16.mxu0 %v263
    %5643 = vmatmul.mubr.bf16.gmra.mxu0 %v262
    %v5644 = vpop.f32.mrf.mxu0
    %v5645 = vadd.f32 %v5605, %v5644
    %v5646 = vpop.f32.mrf.mxu0
    %v5647 = vpop.f32.mrf.mxu0
    %v5648 = vpop.f32.mrf.mxu0
    %5649 = vdwg.mxu0
    %5650 = vmatprep.subr.bf16.mxu0 0
    %5651 = vmatpush1.bf16.msra.mxu0 %v4881
    %5652 = vmatprep.subr.bf16.mxu0 0
    %5653 = vmatpush1.bf16.msra.mxu0 %v4880
    %5654 = vmatprep.subr.bf16.mxu0 0
    %5655 = vmatpush1.bf16.msra.mxu0 %v4879
    %5656 = vmatprep.subr.bf16.mxu0 0
    %5657 = vmatpush1.bf16.msra.mxu0 %v4878
    %5658 = vmatprep.subr.bf16.mxu0 0
    %5659 = vmatpush1.bf16.msra.mxu0 %v4877
    %5660 = vmatprep.subr.bf16.mxu0 0
    %5661 = vmatpush1.bf16.msra.mxu0 %v4876
    %5662 = vmatprep.subr.bf16.mxu0 0
    %5663 = vmatpush1.bf16.msra.mxu0 %v4875
    %5664 = vmatprep.subr.bf16.mxu0 0
    %5665 = vmatpush1.bf16.msra.mxu0 %v4874
    %5666 = vmatprep.subr.bf16.mxu0 0
    %5667 = vmatpush2.bf16.msra.mxu0 %v4889
    %5668 = vmatprep.subr.bf16.mxu0 0
    %5669 = vmatpush2.bf16.msra.mxu0 %v4888
    %5670 = vmatprep.subr.bf16.mxu0 0
    %5671 = vmatpush2.bf16.msra.mxu0 %v4887
    %5672 = vmatprep.subr.bf16.mxu0 0
    %5673 = vmatpush2.bf16.msra.mxu0 %v4886
    %5674 = vmatprep.subr.bf16.mxu0 0
    %5675 = vmatpush2.bf16.msra.mxu0 %v4885
    %5676 = vmatprep.subr.bf16.mxu0 0
    %5677 = vmatpush2.bf16.msra.mxu0 %v4884
    %5678 = vmatprep.subr.bf16.mxu0 0
    %5679 = vmatpush2.bf16.msra.mxu0 %v4883
    %5680 = vmatprep.subr.bf16.mxu0 0
    %5681 = vmatpush2.bf16.msra.mxu0 %v4882
    %5682 = vmatprep.mubr.bf16.mxu0 %v265
    %5683 = vmatmul.mubr.bf16.gmra.mxu0 %v264
    %v5684 = vpop.f32.mrf.mxu0
    %v5685 = vadd.f32 %v5645, %v5684
    %v5686 = vpop.f32.mrf.mxu0
    %v5687 = vpop.f32.mrf.mxu0
    %v5688 = vpop.f32.mrf.mxu0
    %5689 = vdwg.mxu0
    %5690 = vmatprep.subr.bf16.mxu0 0
    %5691 = vmatpush1.bf16.msra.mxu0 %v4897
    %5692 = vmatprep.subr.bf16.mxu0 0
    %5693 = vmatpush1.bf16.msra.mxu0 %v4896
    %5694 = vmatprep.subr.bf16.mxu0 0
    %5695 = vmatpush1.bf16.msra.mxu0 %v4895
    %5696 = vmatprep.subr.bf16.mxu0 0
    %5697 = vmatpush1.bf16.msra.mxu0 %v4894
    %5698 = vmatprep.subr.bf16.mxu0 0
    %5699 = vmatpush1.bf16.msra.mxu0 %v4893
    %5700 = vmatprep.subr.bf16.mxu0 0
    %5701 = vmatpush1.bf16.msra.mxu0 %v4892
    %5702 = vmatprep.subr.bf16.mxu0 0
    %5703 = vmatpush1.bf16.msra.mxu0 %v4891
    %5704 = vmatprep.subr.bf16.mxu0 0
    %5705 = vmatpush1.bf16.msra.mxu0 %v4890
    %5706 = vmatprep.subr.bf16.mxu0 0
    %5707 = vmatpush2.bf16.msra.mxu0 %v4905
    %5708 = vmatprep.subr.bf16.mxu0 0
    %5709 = vmatpush2.bf16.msra.mxu0 %v4904
    %5710 = vmatprep.subr.bf16.mxu0 0
    %5711 = vmatpush2.bf16.msra.mxu0 %v4903
    %5712 = vmatprep.subr.bf16.mxu0 0
    %5713 = vmatpush2.bf16.msra.mxu0 %v4902
    %5714 = vmatprep.subr.bf16.mxu0 0
    %5715 = vmatpush2.bf16.msra.mxu0 %v4901
    %5716 = vmatprep.subr.bf16.mxu0 0
    %5717 = vmatpush2.bf16.msra.mxu0 %v4900
    %5718 = vmatprep.subr.bf16.mxu0 0
    %5719 = vmatpush2.bf16.msra.mxu0 %v4899
    %5720 = vmatprep.subr.bf16.mxu0 0
    %5721 = vmatpush2.bf16.msra.mxu0 %v4898
    %5722 = vmatprep.mubr.bf16.mxu0 %v267
    %5723 = vmatmul.mubr.bf16.gmra.mxu0 %v266
    %v5724 = vpop.f32.mrf.mxu0
    %v5725 = vadd.f32 %v5685, %v5724
    %v5726 = vpop.f32.mrf.mxu0
    %v5727 = vpop.f32.mrf.mxu0
    %v5728 = vpop.f32.mrf.mxu0
    %5729 = vdwg.mxu0
    %5730 = vmatprep.subr.bf16.mxu0 0
    %5731 = vmatpush1.bf16.msra.mxu0 %v4913
    %5732 = vmatprep.subr.bf16.mxu0 0
    %5733 = vmatpush1.bf16.msra.mxu0 %v4912
    %5734 = vmatprep.subr.bf16.mxu0 0
    %5735 = vmatpush1.bf16.msra.mxu0 %v4911
    %5736 = vmatprep.subr.bf16.mxu0 0
    %5737 = vmatpush1.bf16.msra.mxu0 %v4910
    %5738 = vmatprep.subr.bf16.mxu0 0
    %5739 = vmatpush1.bf16.msra.mxu0 %v4909
    %5740 = vmatprep.subr.bf16.mxu0 0
    %5741 = vmatpush1.bf16.msra.mxu0 %v4908
    %5742 = vmatprep.subr.bf16.mxu0 0
    %5743 = vmatpush1.bf16.msra.mxu0 %v4907
    %5744 = vmatprep.subr.bf16.mxu0 0
    %5745 = vmatpush1.bf16.msra.mxu0 %v4906
    %5746 = vmatprep.subr.bf16.mxu0 0
    %5747 = vmatpush2.bf16.msra.mxu0 %v4921
    %5748 = vmatprep.subr.bf16.mxu0 0
    %5749 = vmatpush2.bf16.msra.mxu0 %v4920
    %5750 = vmatprep.subr.bf16.mxu0 0
    %5751 = vmatpush2.bf16.msra.mxu0 %v4919
    %5752 = vmatprep.subr.bf16.mxu0 0
    %5753 = vmatpush2.bf16.msra.mxu0 %v4918
    %5754 = vmatprep.subr.bf16.mxu0 0
    %5755 = vmatpush2.bf16.msra.mxu0 %v4917
    %5756 = vmatprep.subr.bf16.mxu0 0
    %5757 = vmatpush2.bf16.msra.mxu0 %v4916
    %5758 = vmatprep.subr.bf16.mxu0 0
    %5759 = vmatpush2.bf16.msra.mxu0 %v4915
    %5760 = vmatprep.subr.bf16.mxu0 0
    %5761 = vmatpush2.bf16.msra.mxu0 %v4914
    %5762 = vmatprep.mubr.bf16.mxu0 %v269
    %5763 = vmatmul.mubr.bf16.gmra.mxu0 %v268
    %v5764 = vpop.f32.mrf.mxu0
    %v5765 = vadd.f32 %v5725, %v5764
    %v5766 = vpop.f32.mrf.mxu0
    %v5767 = vpop.f32.mrf.mxu0
    %v5768 = vpop.f32.mrf.mxu0
    %5769 = vdwg.mxu0
    %5770 = vmatprep.subr.bf16.mxu0 0
    %5771 = vmatpush1.bf16.msra.mxu0 %v4929
    %5772 = vmatprep.subr.bf16.mxu0 0
    %5773 = vmatpush1.bf16.msra.mxu0 %v4928
    %5774 = vmatprep.subr.bf16.mxu0 0
    %5775 = vmatpush1.bf16.msra.mxu0 %v4927
    %5776 = vmatprep.subr.bf16.mxu0 0
    %5777 = vmatpush1.bf16.msra.mxu0 %v4926
    %5778 = vmatprep.subr.bf16.mxu0 0
    %5779 = vmatpush1.bf16.msra.mxu0 %v4925
    %5780 = vmatprep.subr.bf16.mxu0 0
    %5781 = vmatpush1.bf16.msra.mxu0 %v4924
    %5782 = vmatprep.subr.bf16.mxu0 0
    %5783 = vmatpush1.bf16.msra.mxu0 %v4923
    %5784 = vmatprep.subr.bf16.mxu0 0
    %5785 = vmatpush1.bf16.msra.mxu0 %v4922
    %5786 = vmatprep.subr.bf16.mxu0 0
    %5787 = vmatpush2.bf16.msra.mxu0 %v4937
    %5788 = vmatprep.subr.bf16.mxu0 0
    %5789 = vmatpush2.bf16.msra.mxu0 %v4936
    %5790 = vmatprep.subr.bf16.mxu0 0
    %5791 = vmatpush2.bf16.msra.mxu0 %v4935
    %5792 = vmatprep.subr.bf16.mxu0 0
    %5793 = vmatpush2.bf16.msra.mxu0 %v4934
    %5794 = vmatprep.subr.bf16.mxu0 0
    %5795 = vmatpush2.bf16.msra.mxu0 %v4933
    %5796 = vmatprep.subr.bf16.mxu0 0
    %5797 = vmatpush2.bf16.msra.mxu0 %v4932
    %5798 = vmatprep.subr.bf16.mxu0 0
    %5799 = vmatpush2.bf16.msra.mxu0 %v4931
    %5800 = vmatprep.subr.bf16.mxu0 0
    %5801 = vmatpush2.bf16.msra.mxu0 %v4930
    %5802 = vmatprep.mubr.bf16.mxu0 %v271
    %5803 = vmatmul.mubr.bf16.gmra.mxu0 %v270
    %v5804 = vpop.f32.mrf.mxu0
    %v5805 = vadd.f32 %v5765, %v5804
    %v5806 = vpop.f32.mrf.mxu0
    %v5807 = vpop.f32.mrf.mxu0
    %v5808 = vpop.f32.mrf.mxu0
    %5809 = vdwg.mxu0
    %5810 = vmatprep.subr.bf16.mxu0 0
    %5811 = vmatpush1.bf16.msra.mxu0 %v4945
    %5812 = vmatprep.subr.bf16.mxu0 0
    %5813 = vmatpush1.bf16.msra.mxu0 %v4944
    %5814 = vmatprep.subr.bf16.mxu0 0
    %5815 = vmatpush1.bf16.msra.mxu0 %v4943
    %5816 = vmatprep.subr.bf16.mxu0 0
    %5817 = vmatpush1.bf16.msra.mxu0 %v4942
    %5818 = vmatprep.subr.bf16.mxu0 0
    %5819 = vmatpush1.bf16.msra.mxu0 %v4941
    %5820 = vmatprep.subr.bf16.mxu0 0
    %5821 = vmatpush1.bf16.msra.mxu0 %v4940
    %5822 = vmatprep.subr.bf16.mxu0 0
    %5823 = vmatpush1.bf16.msra.mxu0 %v4939
    %5824 = vmatprep.subr.bf16.mxu0 0
    %5825 = vmatpush1.bf16.msra.mxu0 %v4938
    %5826 = vmatprep.subr.bf16.mxu0 0
    %5827 = vmatpush2.bf16.msra.mxu0 %v4953
    %5828 = vmatprep.subr.bf16.mxu0 0
    %5829 = vmatpush2.bf16.msra.mxu0 %v4952
    %5830 = vmatprep.subr.bf16.mxu0 0
    %5831 = vmatpush2.bf16.msra.mxu0 %v4951
    %5832 = vmatprep.subr.bf16.mxu0 0
    %5833 = vmatpush2.bf16.msra.mxu0 %v4950
    %5834 = vmatprep.subr.bf16.mxu0 0
    %5835 = vmatpush2.bf16.msra.mxu0 %v4949
    %5836 = vmatprep.subr.bf16.mxu0 0
    %5837 = vmatpush2.bf16.msra.mxu0 %v4948
    %5838 = vmatprep.subr.bf16.mxu0 0
    %5839 = vmatpush2.bf16.msra.mxu0 %v4947
    %5840 = vmatprep.subr.bf16.mxu0 0
    %5841 = vmatpush2.bf16.msra.mxu0 %v4946
    %5842 = vmatprep.mubr.bf16.mxu0 %v273
    %5843 = vmatmul.mubr.bf16.gmra.mxu0 %v272
    %v5844 = vpop.f32.mrf.mxu0
    %v5845 = vadd.f32 %v5805, %v5844
    %v5846 = vpop.f32.mrf.mxu0
    %v5847 = vpop.f32.mrf.mxu0
    %v5848 = vpop.f32.mrf.mxu0
    %5849 = vdwg.mxu0
    %s5850 = sld [smem:[#allocation2]]
    %v5851 = vstv %s5850
    %v5852 = vadd.f32 %v5845, %v5851
    %v5853 = vxor.u32 %v5852, 2147483648
    %v5854 = vmul.f32 %v5853, 1.442695
    %v5855 = vpow.pop %v5854
    %v5856 = vadd.f32 %v5855, 1.0
    %v5857 = vrcp.pop %v5856
    %v5858 = vmul.f32 1.0, %v5857
    %5859 = vst [vmem:[#allocation11] sm:$0x1] %v5858
    // Predicated region
    $region38: #{tpu_custom_call.1} parent=1 // pred_check
      _
    $region39: #{tpu_custom_call.1} parent=1 // pred_check_branch
      %5861 = sbr.rel (0) target = $region41
    $region40: #{tpu_custom_call.1} parent=1 // pred_region
      %s5863 = ssub.s32 16, 16
      %5864 = vsyncadd [#allocation5], %s5863
      %s5866 = sshll.u32 [#allocation11], 4
      %s5867 = int_to_ptr.vmem [resolvable:$true] %s5866
      %5869 = dma.vmem_to_hbm [thread:$0]  %s5867, 16, %s5, [#allocation5]
    $region41: #{tpu_custom_call.1} parent=1 // pred_fallthru
      _
    // Predicated region
    $region42: #{tpu_custom_call.1} parent=1 // pred_check
      _
    $region43: #{tpu_custom_call.1} parent=1 // pred_check_branch
      %5871 = sbr.rel (0) target = $region45
    $region44: #{tpu_custom_call.1} parent=1 // pred_region
      %5872 = dma.done [#allocation5], 16
    $region45: #{tpu_custom_call.1} parent=1 // pred_fallthru
      _
    %5873 = vsyncpa [#allocation4], 1
    %5874 = vsyncpa [#allocation7], 1
    %5875 = vsyncpa [#allocation10], 1
    %5876 = vsyncpa [#allocation5], 1

</llo_original>
